<compile_context>
chip_gen: v7x
topology: tpu7x:2x2x1
jax: 0.10.0
libtpu: 0.0.40
codegen_flags: <defaults>
</compile_context>

<pallas_src>
import math
import functools

import jax
import jax.numpy as jnp
from jax import lax
from jax.experimental import pallas as pl
from jax.experimental.pallas import tpu as pltpu


def _round_up(v, m):
    return ((v + m - 1) // m) * m


def _pad_to(a, shape):
    pads = [(0, s - d) for d, s in zip(a.shape, shape)]
    return jnp.pad(a, pads)


# --------------------------------------------------------------------------------------
# Pallas kernel: both directions merged along the batch axis; single invocation.
# --------------------------------------------------------------------------------------
def _bimru_kernel(x2_ref, rhs_ref, wgp_ref, bias_ref, out_ref, lhs_ref, subgx_ref,
                  *, windows, T, B2, D_pad, d_model):
    half = windows // 2
    scale = 1.0 / math.sqrt(d_model)

    # ---------------- Phase 1: fused unfolded LHS via bulk time-shifted copies ----------
    # Window element j of step t is x[clamp(max(t-half,0)+j, 0, T-1)], valid iff
    # max(t-half,0)+j <= min(t+half, T-1) (zero otherwise).  For t >= half this is a pure
    # time shift by (j-half); the first `half` rows are pinned at index j.  All slice
    # starts/sizes below are static Python ints, so this is a few bulk VMEM copies.
    for j in range(windows):
        s = j - half
        col = slice(j * D_pad, (j + 1) * D_pad)
        if s <= 0:
            lhs_ref[pl.ds(half, T - half), :, col] = (
                x2_ref[pl.ds(half + s, T - half)].astype(jnp.bfloat16))
        else:
            n = T - half - s                       # >= 1 because T >= windows
            lhs_ref[pl.ds(half, n), :, col] = (
                x2_ref[pl.ds(half + s, n)].astype(jnp.bfloat16))
            lhs_ref[pl.ds(T - s, s), :, col] = jnp.zeros((s, B2, D_pad), jnp.bfloat16)
        for th in range(half):                     # boundary head rows (tiny, static)
            if j - half <= th:
                lhs_ref[th, :, col] = x2_ref[j].astype(jnp.bfloat16)
            else:
                lhs_ref[th, :, col] = jnp.zeros((B2, D_pad), jnp.bfloat16)

    # ---------------- Phase 2: one fused MXU matmul over ALL timesteps -------------------
    # (T*B2, windows*D_pad) @ (windows*D_pad, 2*D_pad) -> [sub_feat | gate_x] + biases,
    # chunked over T and written straight into subgx_ref (no oversized SSA accumulators).
    bias = bias_ref[...]                           # (1, 2*D_pad) f32
    tc = min(T, max(1, 512 // B2))
    for t0 in range(0, T, tc):
        n = min(tc, T - t0)
        lhs_chunk = lhs_ref[pl.ds(t0, n)].reshape(n * B2, windows * D_pad)
        res = jnp.dot(lhs_chunk, rhs_ref[...], preferred_element_type=jnp.float32)
        subgx_ref[pl.ds(t0, n)] = (res + bias).reshape(n, B2, 2 * D_pad)

    # ---------------- Phase 3: light serial recurrence (f32) -----------------------------
    def step(t, prev):                             # prev: (B2, D_pad) running state
        lo = jnp.maximum(t - half, 0)
        hi = jnp.minimum(t + half, T - 1)
        rows = []
        for j in range(windows):                   # read window rows directly from x
            idx = lo + j
            src = jnp.minimum(idx, T - 1)
            rows.append(jnp.where(idx <= hi, x2_ref[src], 0.0))

        # softmax(prev . row_j / sqrt(D)) via per-window lane reductions (XLU slot)
        scores = [jnp.sum(r * prev, axis=-1, keepdims=True) * scale for r in rows]
        m = scores[0]
        for sc in scores[1:]:
            m = jnp.maximum(m, sc)
        exps = [jnp.exp(sc - m) for sc in scores]
        denom = exps[0]
        for e in exps[1:]:
            denom = denom + e
        inv = 1.0 / denom                          # exact: feeds the recurrence

        new_prev = exps[0] * inv * rows[0]
        for j in range(1, windows):
            new_prev = new_prev + exps[j] * inv * rows[j]

        sg = subgx_ref[t]                          # (B2, 2*D_pad): [sub_feat | gate_x]
        gate = jax.nn.sigmoid(
            sg[:, D_pad:] + jnp.dot(new_prev, wgp_ref[...],
                                    preferred_element_type=jnp.float32))
        out = sg[:, :D_pad] + new_prev * gate
        out_ref[t] = out                           # lane-dense store
        return out

    unroll = True if T <= 32 else 4
    lax.fori_loop(0, T, step, jnp.zeros((B2, D_pad), jnp.float32), unroll=unroll)


# --------------------------------------------------------------------------------------
# Wrapper: pads to (8, 128) tiles, merges fwd + reversed-sequence runs into one call.
# --------------------------------------------------------------------------------------
def bimru_forward(x, fw_params, bw_params, windows):
    """BiMRU.forward: returns (forward_out, backward_out), each (B, T, D)."""
    del bw_params  # The original PyTorch BiMRU reuses self.forward_RW for BOTH directions
    #                and never re-reverses the backward output — reproduced faithfully.
    B, T, D = x.shape
    assert windows % 2 == 1, "window_size must be odd (as used by the original module)"
    assert T >= windows, "sequence length must be >= window_size"
    B_pad = max(8, _round_up(B, 8))
    D_pad = max(128, _round_up(D, 128))
    B2 = 2 * B_pad

    w_mlp, b_mlp, w_gate, b_gate = [p.astype(jnp.float32) for p in fw_params]

    # RHS for the fused Phase-2 matmul: per-window K blocks, [W_mlp | W_gate_x] along N.
    w_mlp_blk = _pad_to(w_mlp.reshape(windows, D, D), (windows, D_pad, D_pad))
    w_gx_blk = _pad_to(w_gate[:windows * D].reshape(windows, D, D),
                       (windows, D_pad, D_pad))
    rhs = jnp.concatenate([w_mlp_blk, w_gx_blk], axis=2)            # (w, D_pad, 2*D_pad)
    rhs = rhs.reshape(windows * D_pad, 2 * D_pad).astype(jnp.bfloat16)
    w_gp = _pad_to(w_gate[windows * D:], (D_pad, D_pad))            # prev-state gate part
    bias = jnp.concatenate([_pad_to(b_mlp.reshape(1, D), (1, D_pad)),
                            _pad_to(b_gate.reshape(1, D), (1, D_pad))], axis=1)

    # Time-major x with forward batch rows [0:B_pad) and reversed-sequence rows [B_pad:2B_pad).
    x_tbd = jnp.transpose(x.astype(jnp.float32), (1, 0, 2))         # (T, B, D)
    x_fwd = _pad_to(x_tbd, (T, B_pad, D_pad))
    x_bwd = _pad_to(x_tbd[::-1], (T, B_pad, D_pad))
    x2 = jnp.concatenate([x_fwd, x_bwd], axis=1)                    # (T, 2*B_pad, D_pad)

    kernel = functools.partial(_bimru_kernel, windows=windows, T=T, B2=B2,
                               D_pad=D_pad, d_model=D)

    # VMEM budget derived from actual shapes (double-buffered ins/outs + scratch + slack).
    f32b, bf16b = 4, 2
    io_bytes = (x2.size * f32b + rhs.size * bf16b + w_gp.size * f32b + bias.size * f32b
                + T * B2 * D_pad * f32b)
    scratch_bytes = T * B2 * windows * D_pad * bf16b + T * B2 * 2 * D_pad * f32b
    vmem_bytes = min(max(2 * io_bytes + scratch_bytes + (4 << 20), 16 << 20), 64 << 20)

    out = pl.pallas_call(
        kernel,
        out_shape=jax.ShapeDtypeStruct((T, B2, D_pad), jnp.float32),
        grid=(1,),
        in_specs=[
            pl.BlockSpec((T, B2, D_pad), lambda i: (0, 0, 0)),             # x (both dirs)
            pl.BlockSpec((windows * D_pad, 2 * D_pad), lambda i: (0, 0)),  # fused RHS (bf16)
            pl.BlockSpec((D_pad, D_pad), lambda i: (0, 0)),                # W_gate_prev
            pl.BlockSpec((1, 2 * D_pad), lambda i: (0, 0)),                # [b_mlp | b_gate]
        ],
        out_specs=pl.BlockSpec((T, B2, D_pad), lambda i: (0, 0, 0)),
        scratch_shapes=[
            pltpu.VMEM((T, B2, windows * D_pad), jnp.bfloat16),   # fused unfolded LHS
            pltpu.VMEM((T, B2, 2 * D_pad), jnp.float32),          # [sub_feat | gate_x]
        ],
        compiler_params=pltpu.CompilerParams(
            dimension_semantics=("arbitrary",),
            vmem_limit_bytes=int(vmem_bytes)),
    )(x2, rhs, w_gp, bias)

    fwd = jnp.transpose(out[:, :B, :D], (1, 0, 2))
    bwd = jnp.transpose(out[:, B_pad:B_pad + B, :D], (1, 0, 2))
    return fwd, bwd


# --------------------------------------------------------------------------------------
# Pure-JAX reference (mirrors the PyTorch loop) for correctness checking.
# --------------------------------------------------------------------------------------
def mru_reference(x, params, windows):
    w_mlp, b_mlp, w_gate, b_gate = params
    B, T, D = x.shape
    prev = jnp.zeros((B, D), jnp.float32)
    outs = []
    for t in range(T):
        idxs = []
        for u in range(1, windows // 2 + 1):
            if t - u >= 0:
                idxs.append(t - u)
            if t + u <= T - 1:
                idxs.append(t + u)
        idxs.append(t)
        idxs.sort()
        sub = x[:, jnp.array(idxs), :]
        if len(idxs) < windows:
            sub = jnp.concatenate(
                [sub, jnp.zeros((B, windows - len(idxs), D), jnp.float32)], axis=1)
        scores = jnp.einsum('bd,bwd->bw', prev, sub) / math.sqrt(D)
        prob = jax.nn.softmax(scores, axis=-1)
        new_prev = jnp.einsum('bw,bwd->bd', prob, sub)
        temp1 = sub.reshape(B, windows * D)
        temp2 = jnp.concatenate([sub, new_prev[:, None, :]], axis=1).reshape(
            B, (windows + 1) * D)
        sub_feat = temp1 @ w_mlp + b_mlp
        gate = jax.nn.sigmoid(temp2 @ w_gate + b_gate)
        out = sub_feat + new_prev * gate
        prev = out
        outs.append(out)
    return jnp.stack(outs, axis=1)


# --------------------------------------------------------------------------------------
# Deterministic parameter init (matches nn.Linear shapes; weights stored as (in, out)).
# --------------------------------------------------------------------------------------
def init_linear(key, in_f, out_f):
    k1, k2 = jax.random.split(key)
    bound = 1.0 / math.sqrt(in_f)
    w_t = jax.random.uniform(k1, (in_f, out_f), jnp.float32, -bound, bound)
    b = jax.random.uniform(k2, (out_f,), jnp.float32, -bound, bound)
    return w_t, b


def init_mru_params(key, hidden_dim, windows):
    k1, k2 = jax.random.split(key)
    w_mlp, b_mlp = init_linear(k1, windows * hidden_dim, hidden_dim)
    w_gate, b_gate = init_linear(k2, (windows + 1) * hidden_dim, hidden_dim)
    return (w_mlp, b_mlp, w_gate, b_gate)


if __name__ == "__main__":
    B, T, D = 2, 8, 32
    WINDOWS = 3  # must be odd (as in the original module's usage)

    key = jax.random.PRNGKey(0)
    kx, kfw, kbw = jax.random.split(key, 3)
    x = jax.random.normal(kx, (B, T, D), jnp.float32)

    fw_params = init_mru_params(kfw, D, WINDOWS)
    bw_params = init_mru_params(kbw, D, WINDOWS)  # like barward_RW: allocated, unused by forward

    fwd_out, bwd_out = jax.jit(
        functools.partial(bimru_forward, windows=WINDOWS))(x, fw_params, bw_params)
    jax.block_until_ready((fwd_out, bwd_out))

    # Check against a pure-JAX f32 reference of the PyTorch semantics.  The Phase-2 matmul
    # runs in bf16 on the MXU (f32 accumulation), so the tolerance is relaxed accordingly.
    ref_fwd = mru_reference(x, fw_params, WINDOWS)
    ref_bwd = mru_reference(x[:, ::-1, :], fw_params, WINDOWS)
    assert jnp.allclose(fwd_out, ref_fwd, atol=5e-2, rtol=5e-2), "forward mismatch"
    assert jnp.allclose(bwd_out, ref_bwd, atol=5e-2, rtol=5e-2), "backward mismatch"

    print("KERNEL_OK")
</pallas_src>

<mosaic_0001>
module attributes {stable_mosaic.version = 11 : i64} {
  func.func @_bimru_kernel(%arg0: i32, %arg1: memref<8x16x128xf32, #tpu.memory_space<vmem>>, %arg2: memref<384x256xbf16, #tpu.memory_space<vmem>>, %arg3: memref<128x128xf32, #tpu.memory_space<vmem>>, %arg4: memref<1x256xf32, #tpu.memory_space<vmem>>, %arg5: memref<8x16x128xf32, #tpu.memory_space<vmem>>, %arg6: memref<8x16x384xbf16, #tpu.memory_space<vmem>>, %arg7: memref<8x16x256xf32, #tpu.memory_space<vmem>>) attributes {dimension_semantics = [#tpu.dimension_semantics<arbitrary>], iteration_bounds = array<i64: 1>, scalar_prefetch = 0 : i64, scratch_operands = 2 : i64, tpu.core_type = #tpu.core_type<tc>, window_params = [{pipeline_mode = #tpu.pipeline_mode<synchronous>, transform_indices = @transform_0, window_bounds = array<i64: 8, 16, 128>}, {pipeline_mode = #tpu.pipeline_mode<synchronous>, transform_indices = @transform_1, window_bounds = array<i64: 384, 256>}, {pipeline_mode = #tpu.pipeline_mode<synchronous>, transform_indices = @transform_2, window_bounds = array<i64: 128, 128>}, {pipeline_mode = #tpu.pipeline_mode<synchronous>, transform_indices = @transform_3, window_bounds = array<i64: 1, 256>}, {pipeline_mode = #tpu.pipeline_mode<synchronous>, transform_indices = @transform_4, window_bounds = array<i64: 8, 16, 128>}]} {
    %c0 = arith.constant 0 : index
    %c0_0 = arith.constant 0 : index
    %c0_1 = arith.constant 0 : index
    %0 = vector.load %arg1[%c0, %c0_0, %c0_1] : memref<8x16x128xf32, #tpu.memory_space<vmem>>, vector<7x16x128xf32>
    %1 = arith.truncf %0 : vector<7x16x128xf32> to vector<7x16x128xbf16>
    %c1 = arith.constant 1 : index
    %c0_2 = arith.constant 0 : index
    %c0_3 = arith.constant 0 : index
    %2 = vector.load %arg6[%c1, %c0_2, %c0_3] : memref<8x16x384xbf16, #tpu.memory_space<vmem>>, vector<7x16x128xbf16>
    tpu.vector_store %arg6[%c1, %c0_2, %c0_3], %1 {strides = array<i32>} : memref<8x16x384xbf16, #tpu.memory_space<vmem>>, vector<7x16x128xbf16>,
    %c0_4 = arith.constant 0 : index
    %c0_5 = arith.constant 0 : index
    %c0_6 = arith.constant 0 : index
    %3 = vector.load %arg1[%c0_4, %c0_5, %c0_6] : memref<8x16x128xf32, #tpu.memory_space<vmem>>, vector<1x16x128xf32>
    %4 = vector.shape_cast %3 : vector<1x16x128xf32> to vector<16x128xf32>
    %5 = arith.truncf %4 : vector<16x128xf32> to vector<16x128xbf16>
    %c0_7 = arith.constant 0 : index
    %c0_8 = arith.constant 0 : index
    %c0_9 = arith.constant 0 : index
    %6 = vector.load %arg6[%c0_7, %c0_8, %c0_9] : memref<8x16x384xbf16, #tpu.memory_space<vmem>>, vector<1x16x128xbf16>
    %7 = vector.shape_cast %6 : vector<1x16x128xbf16> to vector<16x128xbf16>
    %8 = vector.shape_cast %5 : vector<16x128xbf16> to vector<1x16x128xbf16>
    tpu.vector_store %arg6[%c0_7, %c0_8, %c0_9], %8 {strides = array<i32>} : memref<8x16x384xbf16, #tpu.memory_space<vmem>>, vector<1x16x128xbf16>,
    %c1_10 = arith.constant 1 : index
    %c0_11 = arith.constant 0 : index
    %c0_12 = arith.constant 0 : index
    %9 = vector.load %arg1[%c1_10, %c0_11, %c0_12] : memref<8x16x128xf32, #tpu.memory_space<vmem>>, vector<7x16x128xf32>
    %10 = arith.truncf %9 : vector<7x16x128xf32> to vector<7x16x128xbf16>
    %c1_13 = arith.constant 1 : index
    %c0_14 = arith.constant 0 : index
    %c128 = arith.constant 128 : index
    %11 = vector.load %arg6[%c1_13, %c0_14, %c128] : memref<8x16x384xbf16, #tpu.memory_space<vmem>>, vector<7x16x128xbf16>
    tpu.vector_store %arg6[%c1_13, %c0_14, %c128], %10 {strides = array<i32>} : memref<8x16x384xbf16, #tpu.memory_space<vmem>>, vector<7x16x128xbf16>,
    %c1_15 = arith.constant 1 : index
    %c0_16 = arith.constant 0 : index
    %c0_17 = arith.constant 0 : index
    %12 = vector.load %arg1[%c1_15, %c0_16, %c0_17] : memref<8x16x128xf32, #tpu.memory_space<vmem>>, vector<1x16x128xf32>
    %13 = vector.shape_cast %12 : vector<1x16x128xf32> to vector<16x128xf32>
    %14 = arith.truncf %13 : vector<16x128xf32> to vector<16x128xbf16>
    %c0_18 = arith.constant 0 : index
    %c0_19 = arith.constant 0 : index
    %c128_20 = arith.constant 128 : index
    %15 = vector.load %arg6[%c0_18, %c0_19, %c128_20] : memref<8x16x384xbf16, #tpu.memory_space<vmem>>, vector<1x16x128xbf16>
    %16 = vector.shape_cast %15 : vector<1x16x128xbf16> to vector<16x128xbf16>
    %17 = vector.shape_cast %14 : vector<16x128xbf16> to vector<1x16x128xbf16>
    tpu.vector_store %arg6[%c0_18, %c0_19, %c128_20], %17 {strides = array<i32>} : memref<8x16x384xbf16, #tpu.memory_space<vmem>>, vector<1x16x128xbf16>,
    %c2 = arith.constant 2 : index
    %c0_21 = arith.constant 0 : index
    %c0_22 = arith.constant 0 : index
    %18 = vector.load %arg1[%c2, %c0_21, %c0_22] : memref<8x16x128xf32, #tpu.memory_space<vmem>>, vector<6x16x128xf32>
    %19 = arith.truncf %18 : vector<6x16x128xf32> to vector<6x16x128xbf16>
    %c1_23 = arith.constant 1 : index
    %c0_24 = arith.constant 0 : index
    %c256 = arith.constant 256 : index
    %20 = vector.load %arg6[%c1_23, %c0_24, %c256] : memref<8x16x384xbf16, #tpu.memory_space<vmem>>, vector<6x16x128xbf16>
    tpu.vector_store %arg6[%c1_23, %c0_24, %c256], %19 {strides = array<i32>} : memref<8x16x384xbf16, #tpu.memory_space<vmem>>, vector<6x16x128xbf16>,
    %cst = arith.constant 0.000000e+00 : bf16
    %21 = vector.broadcast %cst : bf16 to vector<1x16x128xbf16>
    %c7 = arith.constant 7 : index
    %c0_25 = arith.constant 0 : index
    %c256_26 = arith.constant 256 : index
    %22 = vector.load %arg6[%c7, %c0_25, %c256_26] : memref<8x16x384xbf16, #tpu.memory_space<vmem>>, vector<1x16x128xbf16>
    tpu.vector_store %arg6[%c7, %c0_25, %c256_26], %21 {strides = array<i32>} : memref<8x16x384xbf16, #tpu.memory_space<vmem>>, vector<1x16x128xbf16>,
    %cst_27 = arith.constant 0.000000e+00 : bf16
    %23 = vector.broadcast %cst_27 : bf16 to vector<16x128xbf16>
    %c0_28 = arith.constant 0 : index
    %c0_29 = arith.constant 0 : index
    %c256_30 = arith.constant 256 : index
    %24 = vector.load %arg6[%c0_28, %c0_29, %c256_30] : memref<8x16x384xbf16, #tpu.memory_space<vmem>>, vector<1x16x128xbf16>
    %25 = vector.shape_cast %24 : vector<1x16x128xbf16> to vector<16x128xbf16>
    %26 = vector.shape_cast %23 : vector<16x128xbf16> to vector<1x16x128xbf16>
    tpu.vector_store %arg6[%c0_28, %c0_29, %c256_30], %26 {strides = array<i32>} : memref<8x16x384xbf16, #tpu.memory_space<vmem>>, vector<1x16x128xbf16>,
    %c0_31 = arith.constant 0 : index
    %c0_32 = arith.constant 0 : index
    %27 = vector.load %arg4[%c0_31, %c0_32] : memref<1x256xf32, #tpu.memory_space<vmem>>, vector<1x256xf32>
    %c0_33 = arith.constant 0 : index
    %c0_34 = arith.constant 0 : index
    %c0_35 = arith.constant 0 : index
    %28 = vector.load %arg6[%c0_33, %c0_34, %c0_35] : memref<8x16x384xbf16, #tpu.memory_space<vmem>>, vector<8x16x384xbf16>
    %29 = vector.shape_cast %28 : vector<8x16x384xbf16> to vector<128x384xbf16>
    %c0_36 = arith.constant 0 : index
    %c0_37 = arith.constant 0 : index
    %30 = vector.load %arg2[%c0_36, %c0_37] : memref<384x256xbf16, #tpu.memory_space<vmem>>, vector<384x256xbf16>
    %cst_38 = arith.constant dense<0.000000e+00> : vector<128x256xf32>
    %31 = tpu.matmul %29, %30, %cst_38 {dimension_numbers = #tpu.dot_dimension_numbers<[1], [0], [0], [1], [0, 0, 1, 1], [], []>} : vector<128x384xbf16>, vector<384x256xbf16>, vector<128x256xf32> -> vector<128x256xf32>
    %32 = vector.broadcast %27 : vector<1x256xf32> to vector<128x256xf32>
    %33 = arith.addf %31, %32 : vector<128x256xf32>
    %34 = vector.shape_cast %33 : vector<128x256xf32> to vector<8x16x256xf32>
    %c0_39 = arith.constant 0 : index
    %c0_40 = arith.constant 0 : index
    %c0_41 = arith.constant 0 : index
    %35 = vector.load %arg7[%c0_39, %c0_40, %c0_41] : memref<8x16x256xf32, #tpu.memory_space<vmem>>, vector<8x16x256xf32>
    tpu.vector_store %arg7[%c0_39, %c0_40, %c0_41], %34 {strides = array<i32>} : memref<8x16x256xf32, #tpu.memory_space<vmem>>, vector<8x16x256xf32>,
    %cst_42 = arith.constant 0.000000e+00 : f32
    %36 = vector.broadcast %cst_42 : f32 to vector<16x128xf32>
    %c0_i32 = arith.constant 0 : i32
    %c1_i32 = arith.constant 1 : i32
    %37 = arith.subi %c0_i32, %c1_i32 : i32
    %c0_i32_43 = arith.constant 0 : i32
    %38 = arith.maxsi %37, %c0_i32_43 : i32
    %c1_i32_44 = arith.constant 1 : i32
    %39 = arith.addi %c0_i32, %c1_i32_44 : i32
    %c7_i32 = arith.constant 7 : i32
    %40 = arith.minsi %39, %c7_i32 : i32
    %c0_i32_45 = arith.constant 0 : i32
    %41 = arith.addi %38, %c0_i32_45 : i32
    %c7_i32_46 = arith.constant 7 : i32
    %42 = arith.minsi %41, %c7_i32_46 : i32
    %43 = arith.cmpi sle, %41, %40 : i32
    %44 = arith.index_cast %42 : i32 to index
    %c0_47 = arith.constant 0 : index
    %c0_48 = arith.constant 0 : index
    %45 = vector.load %arg1[%44, %c0_47, %c0_48] : memref<8x16x128xf32, #tpu.memory_space<vmem>>, vector<1x16x128xf32>
    %46 = vector.shape_cast %45 : vector<1x16x128xf32> to vector<16x128xf32>
    %cst_49 = arith.constant 0.000000e+00 : f32
    %47 = vector.broadcast %cst_49 : f32 to vector<16x128xf32>
    %48 = arith.select %43, %46, %47 : vector<16x128xf32>
    %c1_i32_50 = arith.constant 1 : i32
    %49 = arith.addi %38, %c1_i32_50 : i32
    %c7_i32_51 = arith.constant 7 : i32
    %50 = arith.minsi %49, %c7_i32_51 : i32
    %51 = arith.cmpi sle, %49, %40 : i32
    %52 = arith.index_cast %50 : i32 to index
    %c0_52 = arith.constant 0 : index
    %c0_53 = arith.constant 0 : index
    %53 = vector.load %arg1[%52, %c0_52, %c0_53] : memref<8x16x128xf32, #tpu.memory_space<vmem>>, vector<1x16x128xf32>
    %54 = vector.shape_cast %53 : vector<1x16x128xf32> to vector<16x128xf32>
    %cst_54 = arith.constant 0.000000e+00 : f32
    %55 = vector.broadcast %cst_54 : f32 to vector<16x128xf32>
    %56 = arith.select %51, %54, %55 : vector<16x128xf32>
    %c2_i32 = arith.constant 2 : i32
    %57 = arith.addi %38, %c2_i32 : i32
    %c7_i32_55 = arith.constant 7 : i32
    %58 = arith.minsi %57, %c7_i32_55 : i32
    %59 = arith.cmpi sle, %57, %40 : i32
    %60 = arith.index_cast %58 : i32 to index
    %c0_56 = arith.constant 0 : index
    %c0_57 = arith.constant 0 : index
    %61 = vector.load %arg1[%60, %c0_56, %c0_57] : memref<8x16x128xf32, #tpu.memory_space<vmem>>, vector<1x16x128xf32>
    %62 = vector.shape_cast %61 : vector<1x16x128xf32> to vector<16x128xf32>
    %cst_58 = arith.constant 0.000000e+00 : f32
    %63 = vector.broadcast %cst_58 : f32 to vector<16x128xf32>
    %64 = arith.select %59, %62, %63 : vector<16x128xf32>
    %65 = arith.mulf %48, %36 : vector<16x128xf32>
    %cst_59 = arith.constant dense<0.000000e+00> : vector<16xf32>
    %66 = vector.multi_reduction <add>, %65, %cst_59 [1] : vector<16x128xf32> to vector<16xf32>
    %67 = vector.shape_cast %66 : vector<16xf32> to vector<16x1xf32>
    %cst_60 = arith.constant 0.176776692 : f32
    %68 = vector.broadcast %cst_60 : f32 to vector<16x1xf32>
    %69 = arith.mulf %67, %68 : vector<16x1xf32>
    %70 = arith.mulf %56, %36 : vector<16x128xf32>
    %cst_61 = arith.constant dense<0.000000e+00> : vector<16xf32>
    %71 = vector.multi_reduction <add>, %70, %cst_61 [1] : vector<16x128xf32> to vector<16xf32>
    %72 = vector.shape_cast %71 : vector<16xf32> to vector<16x1xf32>
    %cst_62 = arith.constant 0.176776692 : f32
    %73 = vector.broadcast %cst_62 : f32 to vector<16x1xf32>
    %74 = arith.mulf %72, %73 : vector<16x1xf32>
    %75 = arith.mulf %64, %36 : vector<16x128xf32>
    %cst_63 = arith.constant dense<0.000000e+00> : vector<16xf32>
    %76 = vector.multi_reduction <add>, %75, %cst_63 [1] : vector<16x128xf32> to vector<16xf32>
    %77 = vector.shape_cast %76 : vector<16xf32> to vector<16x1xf32>
    %cst_64 = arith.constant 0.176776692 : f32
    %78 = vector.broadcast %cst_64 : f32 to vector<16x1xf32>
    %79 = arith.mulf %77, %78 : vector<16x1xf32>
    %80 = arith.maximumf %69, %74 : vector<16x1xf32>
    %81 = arith.maximumf %80, %79 : vector<16x1xf32>
    %82 = arith.subf %69, %81 : vector<16x1xf32>
    %83 = math.exp %82 : vector<16x1xf32>
    %84 = arith.subf %74, %81 : vector<16x1xf32>
    %85 = math.exp %84 : vector<16x1xf32>
    %86 = arith.subf %79, %81 : vector<16x1xf32>
    %87 = math.exp %86 : vector<16x1xf32>
    %88 = arith.addf %83, %85 : vector<16x1xf32>
    %89 = arith.addf %88, %87 : vector<16x1xf32>
    %cst_65 = arith.constant 1.000000e+00 : f32
    %90 = vector.broadcast %cst_65 : f32 to vector<16x1xf32>
    %91 = arith.divf %90, %89 : vector<16x1xf32>
    %92 = arith.mulf %83, %91 : vector<16x1xf32>
    %93 = vector.broadcast %92 : vector<16x1xf32> to vector<16x128xf32>
    %94 = arith.mulf %93, %48 : vector<16x128xf32>
    %95 = arith.mulf %85, %91 : vector<16x1xf32>
    %96 = vector.broadcast %95 : vector<16x1xf32> to vector<16x128xf32>
    %97 = arith.mulf %96, %56 : vector<16x128xf32>
    %98 = arith.addf %94, %97 : vector<16x128xf32>
    %99 = arith.mulf %87, %91 : vector<16x1xf32>
    %100 = vector.broadcast %99 : vector<16x1xf32> to vector<16x128xf32>
    %101 = arith.mulf %100, %64 : vector<16x128xf32>
    %102 = arith.addf %98, %101 : vector<16x128xf32>
    %103 = arith.index_cast %c0_i32 : i32 to index
    %c0_66 = arith.constant 0 : index
    %c0_67 = arith.constant 0 : index
    %104 = vector.load %arg7[%103, %c0_66, %c0_67] : memref<8x16x256xf32, #tpu.memory_space<vmem>>, vector<1x16x256xf32>
    %105 = vector.shape_cast %104 : vector<1x16x256xf32> to vector<16x256xf32>
    %106 = vector.extract_strided_slice %105 {offsets = [0, 128], sizes = [16, 128], strides = [1, 1]} : vector<16x256xf32> to vector<16x128xf32>
    %c0_68 = arith.constant 0 : index
    %c0_69 = arith.constant 0 : index
    %107 = vector.load %arg3[%c0_68, %c0_69] : memref<128x128xf32, #tpu.memory_space<vmem>>, vector<128x128xf32>
    %cst_70 = arith.constant dense<0.000000e+00> : vector<16x128xf32>
    %108 = tpu.matmul %102, %107, %cst_70 {dimension_numbers = #tpu.dot_dimension_numbers<[1], [0], [0], [1], [0, 0, 1, 1], [], []>} : vector<16x128xf32>, vector<128x128xf32>, vector<16x128xf32> -> vector<16x128xf32>
    %109 = arith.addf %106, %108 : vector<16x128xf32>
    %110 = arith.negf %109 : vector<16x128xf32>
    %111 = math.exp %110 : vector<16x128xf32>
    %cst_71 = arith.constant 1.000000e+00 : f32
    %112 = vector.broadcast %cst_71 : f32 to vector<16x128xf32>
    %113 = arith.addf %112, %111 : vector<16x128xf32>
    %114 = arith.divf %112, %113 : vector<16x128xf32>
    %115 = vector.extract_strided_slice %105 {offsets = [0, 0], sizes = [16, 128], strides = [1, 1]} : vector<16x256xf32> to vector<16x128xf32>
    %116 = arith.mulf %102, %114 : vector<16x128xf32>
    %117 = arith.addf %115, %116 : vector<16x128xf32>
    %118 = arith.index_cast %c0_i32 : i32 to index
    %c0_72 = arith.constant 0 : index
    %c0_73 = arith.constant 0 : index
    %119 = vector.load %arg5[%118, %c0_72, %c0_73] : memref<8x16x128xf32, #tpu.memory_space<vmem>>, vector<1x16x128xf32>
    %120 = vector.shape_cast %119 : vector<1x16x128xf32> to vector<16x128xf32>
    %121 = vector.shape_cast %117 : vector<16x128xf32> to vector<1x16x128xf32>
    tpu.vector_store %arg5[%118, %c0_72, %c0_73], %121 {strides = array<i32>} : memref<8x16x128xf32, #tpu.memory_space<vmem>>, vector<1x16x128xf32>,
    %c1_i32_74 = arith.constant 1 : i32
    %c1_i32_75 = arith.constant 1 : i32
    %122 = arith.subi %c1_i32_74, %c1_i32_75 : i32
    %c0_i32_76 = arith.constant 0 : i32
    %123 = arith.maxsi %122, %c0_i32_76 : i32
    %c1_i32_77 = arith.constant 1 : i32
    %124 = arith.addi %c1_i32_74, %c1_i32_77 : i32
    %c7_i32_78 = arith.constant 7 : i32
    %125 = arith.minsi %124, %c7_i32_78 : i32
    %c0_i32_79 = arith.constant 0 : i32
    %126 = arith.addi %123, %c0_i32_79 : i32
    %c7_i32_80 = arith.constant 7 : i32
    %127 = arith.minsi %126, %c7_i32_80 : i32
    %128 = arith.cmpi sle, %126, %125 : i32
    %129 = arith.index_cast %127 : i32 to index
    %c0_81 = arith.constant 0 : index
    %c0_82 = arith.constant 0 : index
    %130 = vector.load %arg1[%129, %c0_81, %c0_82] : memref<8x16x128xf32, #tpu.memory_space<vmem>>, vector<1x16x128xf32>
    %131 = vector.shape_cast %130 : vector<1x16x128xf32> to vector<16x128xf32>
    %cst_83 = arith.constant 0.000000e+00 : f32
    %132 = vector.broadcast %cst_83 : f32 to vector<16x128xf32>
    %133 = arith.select %128, %131, %132 : vector<16x128xf32>
    %c1_i32_84 = arith.constant 1 : i32
    %134 = arith.addi %123, %c1_i32_84 : i32
    %c7_i32_85 = arith.constant 7 : i32
    %135 = arith.minsi %134, %c7_i32_85 : i32
    %136 = arith.cmpi sle, %134, %125 : i32
    %137 = arith.index_cast %135 : i32 to index
    %c0_86 = arith.constant 0 : index
    %c0_87 = arith.constant 0 : index
    %138 = vector.load %arg1[%137, %c0_86, %c0_87] : memref<8x16x128xf32, #tpu.memory_space<vmem>>, vector<1x16x128xf32>
    %139 = vector.shape_cast %138 : vector<1x16x128xf32> to vector<16x128xf32>
    %cst_88 = arith.constant 0.000000e+00 : f32
    %140 = vector.broadcast %cst_88 : f32 to vector<16x128xf32>
    %141 = arith.select %136, %139, %140 : vector<16x128xf32>
    %c2_i32_89 = arith.constant 2 : i32
    %142 = arith.addi %123, %c2_i32_89 : i32
    %c7_i32_90 = arith.constant 7 : i32
    %143 = arith.minsi %142, %c7_i32_90 : i32
    %144 = arith.cmpi sle, %142, %125 : i32
    %145 = arith.index_cast %143 : i32 to index
    %c0_91 = arith.constant 0 : index
    %c0_92 = arith.constant 0 : index
    %146 = vector.load %arg1[%145, %c0_91, %c0_92] : memref<8x16x128xf32, #tpu.memory_space<vmem>>, vector<1x16x128xf32>
    %147 = vector.shape_cast %146 : vector<1x16x128xf32> to vector<16x128xf32>
    %cst_93 = arith.constant 0.000000e+00 : f32
    %148 = vector.broadcast %cst_93 : f32 to vector<16x128xf32>
    %149 = arith.select %144, %147, %148 : vector<16x128xf32>
    %150 = arith.mulf %133, %117 : vector<16x128xf32>
    %cst_94 = arith.constant dense<0.000000e+00> : vector<16xf32>
    %151 = vector.multi_reduction <add>, %150, %cst_94 [1] : vector<16x128xf32> to vector<16xf32>
    %152 = vector.shape_cast %151 : vector<16xf32> to vector<16x1xf32>
    %cst_95 = arith.constant 0.176776692 : f32
    %153 = vector.broadcast %cst_95 : f32 to vector<16x1xf32>
    %154 = arith.mulf %152, %153 : vector<16x1xf32>
    %155 = arith.mulf %141, %117 : vector<16x128xf32>
    %cst_96 = arith.constant dense<0.000000e+00> : vector<16xf32>
    %156 = vector.multi_reduction <add>, %155, %cst_96 [1] : vector<16x128xf32> to vector<16xf32>
    %157 = vector.shape_cast %156 : vector<16xf32> to vector<16x1xf32>
    %cst_97 = arith.constant 0.176776692 : f32
    %158 = vector.broadcast %cst_97 : f32 to vector<16x1xf32>
    %159 = arith.mulf %157, %158 : vector<16x1xf32>
    %160 = arith.mulf %149, %117 : vector<16x128xf32>
    %cst_98 = arith.constant dense<0.000000e+00> : vector<16xf32>
    %161 = vector.multi_reduction <add>, %160, %cst_98 [1] : vector<16x128xf32> to vector<16xf32>
    %162 = vector.shape_cast %161 : vector<16xf32> to vector<16x1xf32>
    %cst_99 = arith.constant 0.176776692 : f32
    %163 = vector.broadcast %cst_99 : f32 to vector<16x1xf32>
    %164 = arith.mulf %162, %163 : vector<16x1xf32>
    %165 = arith.maximumf %154, %159 : vector<16x1xf32>
    %166 = arith.maximumf %165, %164 : vector<16x1xf32>
    %167 = arith.subf %154, %166 : vector<16x1xf32>
    %168 = math.exp %167 : vector<16x1xf32>
    %169 = arith.subf %159, %166 : vector<16x1xf32>
    %170 = math.exp %169 : vector<16x1xf32>
    %171 = arith.subf %164, %166 : vector<16x1xf32>
    %172 = math.exp %171 : vector<16x1xf32>
    %173 = arith.addf %168, %170 : vector<16x1xf32>
    %174 = arith.addf %173, %172 : vector<16x1xf32>
    %cst_100 = arith.constant 1.000000e+00 : f32
    %175 = vector.broadcast %cst_100 : f32 to vector<16x1xf32>
    %176 = arith.divf %175, %174 : vector<16x1xf32>
    %177 = arith.mulf %168, %176 : vector<16x1xf32>
    %178 = vector.broadcast %177 : vector<16x1xf32> to vector<16x128xf32>
    %179 = arith.mulf %178, %133 : vector<16x128xf32>
    %180 = arith.mulf %170, %176 : vector<16x1xf32>
    %181 = vector.broadcast %180 : vector<16x1xf32> to vector<16x128xf32>
    %182 = arith.mulf %181, %141 : vector<16x128xf32>
    %183 = arith.addf %179, %182 : vector<16x128xf32>
    %184 = arith.mulf %172, %176 : vector<16x1xf32>
    %185 = vector.broadcast %184 : vector<16x1xf32> to vector<16x128xf32>
    %186 = arith.mulf %185, %149 : vector<16x128xf32>
    %187 = arith.addf %183, %186 : vector<16x128xf32>
    %188 = arith.index_cast %c1_i32_74 : i32 to index
    %c0_101 = arith.constant 0 : index
    %c0_102 = arith.constant 0 : index
    %189 = vector.load %arg7[%188, %c0_101, %c0_102] : memref<8x16x256xf32, #tpu.memory_space<vmem>>, vector<1x16x256xf32>
    %190 = vector.shape_cast %189 : vector<1x16x256xf32> to vector<16x256xf32>
    %191 = vector.extract_strided_slice %190 {offsets = [0, 128], sizes = [16, 128], strides = [1, 1]} : vector<16x256xf32> to vector<16x128xf32>
    %c0_103 = arith.constant 0 : index
    %c0_104 = arith.constant 0 : index
    %192 = vector.load %arg3[%c0_103, %c0_104] : memref<128x128xf32, #tpu.memory_space<vmem>>, vector<128x128xf32>
    %cst_105 = arith.constant dense<0.000000e+00> : vector<16x128xf32>
    %193 = tpu.matmul %187, %192, %cst_105 {dimension_numbers = #tpu.dot_dimension_numbers<[1], [0], [0], [1], [0, 0, 1, 1], [], []>} : vector<16x128xf32>, vector<128x128xf32>, vector<16x128xf32> -> vector<16x128xf32>
    %194 = arith.addf %191, %193 : vector<16x128xf32>
    %195 = arith.negf %194 : vector<16x128xf32>
    %196 = math.exp %195 : vector<16x128xf32>
    %cst_106 = arith.constant 1.000000e+00 : f32
    %197 = vector.broadcast %cst_106 : f32 to vector<16x128xf32>
    %198 = arith.addf %197, %196 : vector<16x128xf32>
    %199 = arith.divf %197, %198 : vector<16x128xf32>
    %200 = vector.extract_strided_slice %190 {offsets = [0, 0], sizes = [16, 128], strides = [1, 1]} : vector<16x256xf32> to vector<16x128xf32>
    %201 = arith.mulf %187, %199 : vector<16x128xf32>
    %202 = arith.addf %200, %201 : vector<16x128xf32>
    %203 = arith.index_cast %c1_i32_74 : i32 to index
    %c0_107 = arith.constant 0 : index
    %c0_108 = arith.constant 0 : index
    %204 = vector.load %arg5[%203, %c0_107, %c0_108] : memref<8x16x128xf32, #tpu.memory_space<vmem>>, vector<1x16x128xf32>
    %205 = vector.shape_cast %204 : vector<1x16x128xf32> to vector<16x128xf32>
    %206 = vector.shape_cast %202 : vector<16x128xf32> to vector<1x16x128xf32>
    tpu.vector_store %arg5[%203, %c0_107, %c0_108], %206 {strides = array<i32>} : memref<8x16x128xf32, #tpu.memory_space<vmem>>, vector<1x16x128xf32>,
    %c2_i32_109 = arith.constant 2 : i32
    %c1_i32_110 = arith.constant 1 : i32
    %207 = arith.subi %c2_i32_109, %c1_i32_110 : i32
    %c0_i32_111 = arith.constant 0 : i32
    %208 = arith.maxsi %207, %c0_i32_111 : i32
    %c1_i32_112 = arith.constant 1 : i32
    %209 = arith.addi %c2_i32_109, %c1_i32_112 : i32
    %c7_i32_113 = arith.constant 7 : i32
    %210 = arith.minsi %209, %c7_i32_113 : i32
    %c0_i32_114 = arith.constant 0 : i32
    %211 = arith.addi %208, %c0_i32_114 : i32
    %c7_i32_115 = arith.constant 7 : i32
    %212 = arith.minsi %211, %c7_i32_115 : i32
    %213 = arith.cmpi sle, %211, %210 : i32
    %214 = arith.index_cast %212 : i32 to index
    %c0_116 = arith.constant 0 : index
    %c0_117 = arith.constant 0 : index
    %215 = vector.load %arg1[%214, %c0_116, %c0_117] : memref<8x16x128xf32, #tpu.memory_space<vmem>>, vector<1x16x128xf32>
    %216 = vector.shape_cast %215 : vector<1x16x128xf32> to vector<16x128xf32>
    %cst_118 = arith.constant 0.000000e+00 : f32
    %217 = vector.broadcast %cst_118 : f32 to vector<16x128xf32>
    %218 = arith.select %213, %216, %217 : vector<16x128xf32>
    %c1_i32_119 = arith.constant 1 : i32
    %219 = arith.addi %208, %c1_i32_119 : i32
    %c7_i32_120 = arith.constant 7 : i32
    %220 = arith.minsi %219, %c7_i32_120 : i32
    %221 = arith.cmpi sle, %219, %210 : i32
    %222 = arith.index_cast %220 : i32 to index
    %c0_121 = arith.constant 0 : index
    %c0_122 = arith.constant 0 : index
    %223 = vector.load %arg1[%222, %c0_121, %c0_122] : memref<8x16x128xf32, #tpu.memory_space<vmem>>, vector<1x16x128xf32>
    %224 = vector.shape_cast %223 : vector<1x16x128xf32> to vector<16x128xf32>
    %cst_123 = arith.constant 0.000000e+00 : f32
    %225 = vector.broadcast %cst_123 : f32 to vector<16x128xf32>
    %226 = arith.select %221, %224, %225 : vector<16x128xf32>
    %c2_i32_124 = arith.constant 2 : i32
    %227 = arith.addi %208, %c2_i32_124 : i32
    %c7_i32_125 = arith.constant 7 : i32
    %228 = arith.minsi %227, %c7_i32_125 : i32
    %229 = arith.cmpi sle, %227, %210 : i32
    %230 = arith.index_cast %228 : i32 to index
    %c0_126 = arith.constant 0 : index
    %c0_127 = arith.constant 0 : index
    %231 = vector.load %arg1[%230, %c0_126, %c0_127] : memref<8x16x128xf32, #tpu.memory_space<vmem>>, vector<1x16x128xf32>
    %232 = vector.shape_cast %231 : vector<1x16x128xf32> to vector<16x128xf32>
    %cst_128 = arith.constant 0.000000e+00 : f32
    %233 = vector.broadcast %cst_128 : f32 to vector<16x128xf32>
    %234 = arith.select %229, %232, %233 : vector<16x128xf32>
    %235 = arith.mulf %218, %202 : vector<16x128xf32>
    %cst_129 = arith.constant dense<0.000000e+00> : vector<16xf32>
    %236 = vector.multi_reduction <add>, %235, %cst_129 [1] : vector<16x128xf32> to vector<16xf32>
    %237 = vector.shape_cast %236 : vector<16xf32> to vector<16x1xf32>
    %cst_130 = arith.constant 0.176776692 : f32
    %238 = vector.broadcast %cst_130 : f32 to vector<16x1xf32>
    %239 = arith.mulf %237, %238 : vector<16x1xf32>
    %240 = arith.mulf %226, %202 : vector<16x128xf32>
    %cst_131 = arith.constant dense<0.000000e+00> : vector<16xf32>
    %241 = vector.multi_reduction <add>, %240, %cst_131 [1] : vector<16x128xf32> to vector<16xf32>
    %242 = vector.shape_cast %241 : vector<16xf32> to vector<16x1xf32>
    %cst_132 = arith.constant 0.176776692 : f32
    %243 = vector.broadcast %cst_132 : f32 to vector<16x1xf32>
    %244 = arith.mulf %242, %243 : vector<16x1xf32>
    %245 = arith.mulf %234, %202 : vector<16x128xf32>
    %cst_133 = arith.constant dense<0.000000e+00> : vector<16xf32>
    %246 = vector.multi_reduction <add>, %245, %cst_133 [1] : vector<16x128xf32> to vector<16xf32>
    %247 = vector.shape_cast %246 : vector<16xf32> to vector<16x1xf32>
    %cst_134 = arith.constant 0.176776692 : f32
    %248 = vector.broadcast %cst_134 : f32 to vector<16x1xf32>
    %249 = arith.mulf %247, %248 : vector<16x1xf32>
    %250 = arith.maximumf %239, %244 : vector<16x1xf32>
    %251 = arith.maximumf %250, %249 : vector<16x1xf32>
    %252 = arith.subf %239, %251 : vector<16x1xf32>
    %253 = math.exp %252 : vector<16x1xf32>
    %254 = arith.subf %244, %251 : vector<16x1xf32>
    %255 = math.exp %254 : vector<16x1xf32>
    %256 = arith.subf %249, %251 : vector<16x1xf32>
    %257 = math.exp %256 : vector<16x1xf32>
    %258 = arith.addf %253, %255 : vector<16x1xf32>
    %259 = arith.addf %258, %257 : vector<16x1xf32>
    %cst_135 = arith.constant 1.000000e+00 : f32
    %260 = vector.broadcast %cst_135 : f32 to vector<16x1xf32>
    %261 = arith.divf %260, %259 : vector<16x1xf32>
    %262 = arith.mulf %253, %261 : vector<16x1xf32>
    %263 = vector.broadcast %262 : vector<16x1xf32> to vector<16x128xf32>
    %264 = arith.mulf %263, %218 : vector<16x128xf32>
    %265 = arith.mulf %255, %261 : vector<16x1xf32>
    %266 = vector.broadcast %265 : vector<16x1xf32> to vector<16x128xf32>
    %267 = arith.mulf %266, %226 : vector<16x128xf32>
    %268 = arith.addf %264, %267 : vector<16x128xf32>
    %269 = arith.mulf %257, %261 : vector<16x1xf32>
    %270 = vector.broadcast %269 : vector<16x1xf32> to vector<16x128xf32>
    %271 = arith.mulf %270, %234 : vector<16x128xf32>
    %272 = arith.addf %268, %271 : vector<16x128xf32>
    %273 = arith.index_cast %c2_i32_109 : i32 to index
    %c0_136 = arith.constant 0 : index
    %c0_137 = arith.constant 0 : index
    %274 = vector.load %arg7[%273, %c0_136, %c0_137] : memref<8x16x256xf32, #tpu.memory_space<vmem>>, vector<1x16x256xf32>
    %275 = vector.shape_cast %274 : vector<1x16x256xf32> to vector<16x256xf32>
    %276 = vector.extract_strided_slice %275 {offsets = [0, 128], sizes = [16, 128], strides = [1, 1]} : vector<16x256xf32> to vector<16x128xf32>
    %c0_138 = arith.constant 0 : index
    %c0_139 = arith.constant 0 : index
    %277 = vector.load %arg3[%c0_138, %c0_139] : memref<128x128xf32, #tpu.memory_space<vmem>>, vector<128x128xf32>
    %cst_140 = arith.constant dense<0.000000e+00> : vector<16x128xf32>
    %278 = tpu.matmul %272, %277, %cst_140 {dimension_numbers = #tpu.dot_dimension_numbers<[1], [0], [0], [1], [0, 0, 1, 1], [], []>} : vector<16x128xf32>, vector<128x128xf32>, vector<16x128xf32> -> vector<16x128xf32>
    %279 = arith.addf %276, %278 : vector<16x128xf32>
    %280 = arith.negf %279 : vector<16x128xf32>
    %281 = math.exp %280 : vector<16x128xf32>
    %cst_141 = arith.constant 1.000000e+00 : f32
    %282 = vector.broadcast %cst_141 : f32 to vector<16x128xf32>
    %283 = arith.addf %282, %281 : vector<16x128xf32>
    %284 = arith.divf %282, %283 : vector<16x128xf32>
    %285 = vector.extract_strided_slice %275 {offsets = [0, 0], sizes = [16, 128], strides = [1, 1]} : vector<16x256xf32> to vector<16x128xf32>
    %286 = arith.mulf %272, %284 : vector<16x128xf32>
    %287 = arith.addf %285, %286 : vector<16x128xf32>
    %288 = arith.index_cast %c2_i32_109 : i32 to index
    %c0_142 = arith.constant 0 : index
    %c0_143 = arith.constant 0 : index
    %289 = vector.load %arg5[%288, %c0_142, %c0_143] : memref<8x16x128xf32, #tpu.memory_space<vmem>>, vector<1x16x128xf32>
    %290 = vector.shape_cast %289 : vector<1x16x128xf32> to vector<16x128xf32>
    %291 = vector.shape_cast %287 : vector<16x128xf32> to vector<1x16x128xf32>
    tpu.vector_store %arg5[%288, %c0_142, %c0_143], %291 {strides = array<i32>} : memref<8x16x128xf32, #tpu.memory_space<vmem>>, vector<1x16x128xf32>,
    %c3_i32 = arith.constant 3 : i32
    %c1_i32_144 = arith.constant 1 : i32
    %292 = arith.subi %c3_i32, %c1_i32_144 : i32
    %c0_i32_145 = arith.constant 0 : i32
    %293 = arith.maxsi %292, %c0_i32_145 : i32
    %c1_i32_146 = arith.constant 1 : i32
    %294 = arith.addi %c3_i32, %c1_i32_146 : i32
    %c7_i32_147 = arith.constant 7 : i32
    %295 = arith.minsi %294, %c7_i32_147 : i32
    %c0_i32_148 = arith.constant 0 : i32
    %296 = arith.addi %293, %c0_i32_148 : i32
    %c7_i32_149 = arith.constant 7 : i32
    %297 = arith.minsi %296, %c7_i32_149 : i32
    %298 = arith.cmpi sle, %296, %295 : i32
    %299 = arith.index_cast %297 : i32 to index
    %c0_150 = arith.constant 0 : index
    %c0_151 = arith.constant 0 : index
    %300 = vector.load %arg1[%299, %c0_150, %c0_151] : memref<8x16x128xf32, #tpu.memory_space<vmem>>, vector<1x16x128xf32>
    %301 = vector.shape_cast %300 : vector<1x16x128xf32> to vector<16x128xf32>
    %cst_152 = arith.constant 0.000000e+00 : f32
    %302 = vector.broadcast %cst_152 : f32 to vector<16x128xf32>
    %303 = arith.select %298, %301, %302 : vector<16x128xf32>
    %c1_i32_153 = arith.constant 1 : i32
    %304 = arith.addi %293, %c1_i32_153 : i32
    %c7_i32_154 = arith.constant 7 : i32
    %305 = arith.minsi %304, %c7_i32_154 : i32
    %306 = arith.cmpi sle, %304, %295 : i32
    %307 = arith.index_cast %305 : i32 to index
    %c0_155 = arith.constant 0 : index
    %c0_156 = arith.constant 0 : index
    %308 = vector.load %arg1[%307, %c0_155, %c0_156] : memref<8x16x128xf32, #tpu.memory_space<vmem>>, vector<1x16x128xf32>
    %309 = vector.shape_cast %308 : vector<1x16x128xf32> to vector<16x128xf32>
    %cst_157 = arith.constant 0.000000e+00 : f32
    %310 = vector.broadcast %cst_157 : f32 to vector<16x128xf32>
    %311 = arith.select %306, %309, %310 : vector<16x128xf32>
    %c2_i32_158 = arith.constant 2 : i32
    %312 = arith.addi %293, %c2_i32_158 : i32
    %c7_i32_159 = arith.constant 7 : i32
    %313 = arith.minsi %312, %c7_i32_159 : i32
    %314 = arith.cmpi sle, %312, %295 : i32
    %315 = arith.index_cast %313 : i32 to index
    %c0_160 = arith.constant 0 : index
    %c0_161 = arith.constant 0 : index
    %316 = vector.load %arg1[%315, %c0_160, %c0_161] : memref<8x16x128xf32, #tpu.memory_space<vmem>>, vector<1x16x128xf32>
    %317 = vector.shape_cast %316 : vector<1x16x128xf32> to vector<16x128xf32>
    %cst_162 = arith.constant 0.000000e+00 : f32
    %318 = vector.broadcast %cst_162 : f32 to vector<16x128xf32>
    %319 = arith.select %314, %317, %318 : vector<16x128xf32>
    %320 = arith.mulf %303, %287 : vector<16x128xf32>
    %cst_163 = arith.constant dense<0.000000e+00> : vector<16xf32>
    %321 = vector.multi_reduction <add>, %320, %cst_163 [1] : vector<16x128xf32> to vector<16xf32>
    %322 = vector.shape_cast %321 : vector<16xf32> to vector<16x1xf32>
    %cst_164 = arith.constant 0.176776692 : f32
    %323 = vector.broadcast %cst_164 : f32 to vector<16x1xf32>
    %324 = arith.mulf %322, %323 : vector<16x1xf32>
    %325 = arith.mulf %311, %287 : vector<16x128xf32>
    %cst_165 = arith.constant dense<0.000000e+00> : vector<16xf32>
    %326 = vector.multi_reduction <add>, %325, %cst_165 [1] : vector<16x128xf32> to vector<16xf32>
    %327 = vector.shape_cast %326 : vector<16xf32> to vector<16x1xf32>
    %cst_166 = arith.constant 0.176776692 : f32
    %328 = vector.broadcast %cst_166 : f32 to vector<16x1xf32>
    %329 = arith.mulf %327, %328 : vector<16x1xf32>
    %330 = arith.mulf %319, %287 : vector<16x128xf32>
    %cst_167 = arith.constant dense<0.000000e+00> : vector<16xf32>
    %331 = vector.multi_reduction <add>, %330, %cst_167 [1] : vector<16x128xf32> to vector<16xf32>
    %332 = vector.shape_cast %331 : vector<16xf32> to vector<16x1xf32>
    %cst_168 = arith.constant 0.176776692 : f32
    %333 = vector.broadcast %cst_168 : f32 to vector<16x1xf32>
    %334 = arith.mulf %332, %333 : vector<16x1xf32>
    %335 = arith.maximumf %324, %329 : vector<16x1xf32>
    %336 = arith.maximumf %335, %334 : vector<16x1xf32>
    %337 = arith.subf %324, %336 : vector<16x1xf32>
    %338 = math.exp %337 : vector<16x1xf32>
    %339 = arith.subf %329, %336 : vector<16x1xf32>
    %340 = math.exp %339 : vector<16x1xf32>
    %341 = arith.subf %334, %336 : vector<16x1xf32>
    %342 = math.exp %341 : vector<16x1xf32>
    %343 = arith.addf %338, %340 : vector<16x1xf32>
    %344 = arith.addf %343, %342 : vector<16x1xf32>
    %cst_169 = arith.constant 1.000000e+00 : f32
    %345 = vector.broadcast %cst_169 : f32 to vector<16x1xf32>
    %346 = arith.divf %345, %344 : vector<16x1xf32>
    %347 = arith.mulf %338, %346 : vector<16x1xf32>
    %348 = vector.broadcast %347 : vector<16x1xf32> to vector<16x128xf32>
    %349 = arith.mulf %348, %303 : vector<16x128xf32>
    %350 = arith.mulf %340, %346 : vector<16x1xf32>
    %351 = vector.broadcast %350 : vector<16x1xf32> to vector<16x128xf32>
    %352 = arith.mulf %351, %311 : vector<16x128xf32>
    %353 = arith.addf %349, %352 : vector<16x128xf32>
    %354 = arith.mulf %342, %346 : vector<16x1xf32>
    %355 = vector.broadcast %354 : vector<16x1xf32> to vector<16x128xf32>
    %356 = arith.mulf %355, %319 : vector<16x128xf32>
    %357 = arith.addf %353, %356 : vector<16x128xf32>
    %358 = arith.index_cast %c3_i32 : i32 to index
    %c0_170 = arith.constant 0 : index
    %c0_171 = arith.constant 0 : index
    %359 = vector.load %arg7[%358, %c0_170, %c0_171] : memref<8x16x256xf32, #tpu.memory_space<vmem>>, vector<1x16x256xf32>
    %360 = vector.shape_cast %359 : vector<1x16x256xf32> to vector<16x256xf32>
    %361 = vector.extract_strided_slice %360 {offsets = [0, 128], sizes = [16, 128], strides = [1, 1]} : vector<16x256xf32> to vector<16x128xf32>
    %c0_172 = arith.constant 0 : index
    %c0_173 = arith.constant 0 : index
    %362 = vector.load %arg3[%c0_172, %c0_173] : memref<128x128xf32, #tpu.memory_space<vmem>>, vector<128x128xf32>
    %cst_174 = arith.constant dense<0.000000e+00> : vector<16x128xf32>
    %363 = tpu.matmul %357, %362, %cst_174 {dimension_numbers = #tpu.dot_dimension_numbers<[1], [0], [0], [1], [0, 0, 1, 1], [], []>} : vector<16x128xf32>, vector<128x128xf32>, vector<16x128xf32> -> vector<16x128xf32>
    %364 = arith.addf %361, %363 : vector<16x128xf32>
    %365 = arith.negf %364 : vector<16x128xf32>
    %366 = math.exp %365 : vector<16x128xf32>
    %cst_175 = arith.constant 1.000000e+00 : f32
    %367 = vector.broadcast %cst_175 : f32 to vector<16x128xf32>
    %368 = arith.addf %367, %366 : vector<16x128xf32>
    %369 = arith.divf %367, %368 : vector<16x128xf32>
    %370 = vector.extract_strided_slice %360 {offsets = [0, 0], sizes = [16, 128], strides = [1, 1]} : vector<16x256xf32> to vector<16x128xf32>
    %371 = arith.mulf %357, %369 : vector<16x128xf32>
    %372 = arith.addf %370, %371 : vector<16x128xf32>
    %373 = arith.index_cast %c3_i32 : i32 to index
    %c0_176 = arith.constant 0 : index
    %c0_177 = arith.constant 0 : index
    %374 = vector.load %arg5[%373, %c0_176, %c0_177] : memref<8x16x128xf32, #tpu.memory_space<vmem>>, vector<1x16x128xf32>
    %375 = vector.shape_cast %374 : vector<1x16x128xf32> to vector<16x128xf32>
    %376 = vector.shape_cast %372 : vector<16x128xf32> to vector<1x16x128xf32>
    tpu.vector_store %arg5[%373, %c0_176, %c0_177], %376 {strides = array<i32>} : memref<8x16x128xf32, #tpu.memory_space<vmem>>, vector<1x16x128xf32>,
    %c4_i32 = arith.constant 4 : i32
    %c1_i32_178 = arith.constant 1 : i32
    %377 = arith.subi %c4_i32, %c1_i32_178 : i32
    %c0_i32_179 = arith.constant 0 : i32
    %378 = arith.maxsi %377, %c0_i32_179 : i32
    %c1_i32_180 = arith.constant 1 : i32
    %379 = arith.addi %c4_i32, %c1_i32_180 : i32
    %c7_i32_181 = arith.constant 7 : i32
    %380 = arith.minsi %379, %c7_i32_181 : i32
    %c0_i32_182 = arith.constant 0 : i32
    %381 = arith.addi %378, %c0_i32_182 : i32
    %c7_i32_183 = arith.constant 7 : i32
    %382 = arith.minsi %381, %c7_i32_183 : i32
    %383 = arith.cmpi sle, %381, %380 : i32
    %384 = arith.index_cast %382 : i32 to index
    %c0_184 = arith.constant 0 : index
    %c0_185 = arith.constant 0 : index
    %385 = vector.load %arg1[%384, %c0_184, %c0_185] : memref<8x16x128xf32, #tpu.memory_space<vmem>>, vector<1x16x128xf32>
    %386 = vector.shape_cast %385 : vector<1x16x128xf32> to vector<16x128xf32>
    %cst_186 = arith.constant 0.000000e+00 : f32
    %387 = vector.broadcast %cst_186 : f32 to vector<16x128xf32>
    %388 = arith.select %383, %386, %387 : vector<16x128xf32>
    %c1_i32_187 = arith.constant 1 : i32
    %389 = arith.addi %378, %c1_i32_187 : i32
    %c7_i32_188 = arith.constant 7 : i32
    %390 = arith.minsi %389, %c7_i32_188 : i32
    %391 = arith.cmpi sle, %389, %380 : i32
    %392 = arith.index_cast %390 : i32 to index
    %c0_189 = arith.constant 0 : index
    %c0_190 = arith.constant 0 : index
    %393 = vector.load %arg1[%392, %c0_189, %c0_190] : memref<8x16x128xf32, #tpu.memory_space<vmem>>, vector<1x16x128xf32>
    %394 = vector.shape_cast %393 : vector<1x16x128xf32> to vector<16x128xf32>
    %cst_191 = arith.constant 0.000000e+00 : f32
    %395 = vector.broadcast %cst_191 : f32 to vector<16x128xf32>
    %396 = arith.select %391, %394, %395 : vector<16x128xf32>
    %c2_i32_192 = arith.constant 2 : i32
    %397 = arith.addi %378, %c2_i32_192 : i32
    %c7_i32_193 = arith.constant 7 : i32
    %398 = arith.minsi %397, %c7_i32_193 : i32
    %399 = arith.cmpi sle, %397, %380 : i32
    %400 = arith.index_cast %398 : i32 to index
    %c0_194 = arith.constant 0 : index
    %c0_195 = arith.constant 0 : index
    %401 = vector.load %arg1[%400, %c0_194, %c0_195] : memref<8x16x128xf32, #tpu.memory_space<vmem>>, vector<1x16x128xf32>
    %402 = vector.shape_cast %401 : vector<1x16x128xf32> to vector<16x128xf32>
    %cst_196 = arith.constant 0.000000e+00 : f32
    %403 = vector.broadcast %cst_196 : f32 to vector<16x128xf32>
    %404 = arith.select %399, %402, %403 : vector<16x128xf32>
    %405 = arith.mulf %388, %372 : vector<16x128xf32>
    %cst_197 = arith.constant dense<0.000000e+00> : vector<16xf32>
    %406 = vector.multi_reduction <add>, %405, %cst_197 [1] : vector<16x128xf32> to vector<16xf32>
    %407 = vector.shape_cast %406 : vector<16xf32> to vector<16x1xf32>
    %cst_198 = arith.constant 0.176776692 : f32
    %408 = vector.broadcast %cst_198 : f32 to vector<16x1xf32>
    %409 = arith.mulf %407, %408 : vector<16x1xf32>
    %410 = arith.mulf %396, %372 : vector<16x128xf32>
    %cst_199 = arith.constant dense<0.000000e+00> : vector<16xf32>
    %411 = vector.multi_reduction <add>, %410, %cst_199 [1] : vector<16x128xf32> to vector<16xf32>
    %412 = vector.shape_cast %411 : vector<16xf32> to vector<16x1xf32>
    %cst_200 = arith.constant 0.176776692 : f32
    %413 = vector.broadcast %cst_200 : f32 to vector<16x1xf32>
    %414 = arith.mulf %412, %413 : vector<16x1xf32>
    %415 = arith.mulf %404, %372 : vector<16x128xf32>
    %cst_201 = arith.constant dense<0.000000e+00> : vector<16xf32>
    %416 = vector.multi_reduction <add>, %415, %cst_201 [1] : vector<16x128xf32> to vector<16xf32>
    %417 = vector.shape_cast %416 : vector<16xf32> to vector<16x1xf32>
    %cst_202 = arith.constant 0.176776692 : f32
    %418 = vector.broadcast %cst_202 : f32 to vector<16x1xf32>
    %419 = arith.mulf %417, %418 : vector<16x1xf32>
    %420 = arith.maximumf %409, %414 : vector<16x1xf32>
    %421 = arith.maximumf %420, %419 : vector<16x1xf32>
    %422 = arith.subf %409, %421 : vector<16x1xf32>
    %423 = math.exp %422 : vector<16x1xf32>
    %424 = arith.subf %414, %421 : vector<16x1xf32>
    %425 = math.exp %424 : vector<16x1xf32>
    %426 = arith.subf %419, %421 : vector<16x1xf32>
    %427 = math.exp %426 : vector<16x1xf32>
    %428 = arith.addf %423, %425 : vector<16x1xf32>
    %429 = arith.addf %428, %427 : vector<16x1xf32>
    %cst_203 = arith.constant 1.000000e+00 : f32
    %430 = vector.broadcast %cst_203 : f32 to vector<16x1xf32>
    %431 = arith.divf %430, %429 : vector<16x1xf32>
    %432 = arith.mulf %423, %431 : vector<16x1xf32>
    %433 = vector.broadcast %432 : vector<16x1xf32> to vector<16x128xf32>
    %434 = arith.mulf %433, %388 : vector<16x128xf32>
    %435 = arith.mulf %425, %431 : vector<16x1xf32>
    %436 = vector.broadcast %435 : vector<16x1xf32> to vector<16x128xf32>
    %437 = arith.mulf %436, %396 : vector<16x128xf32>
    %438 = arith.addf %434, %437 : vector<16x128xf32>
    %439 = arith.mulf %427, %431 : vector<16x1xf32>
    %440 = vector.broadcast %439 : vector<16x1xf32> to vector<16x128xf32>
    %441 = arith.mulf %440, %404 : vector<16x128xf32>
    %442 = arith.addf %438, %441 : vector<16x128xf32>
    %443 = arith.index_cast %c4_i32 : i32 to index
    %c0_204 = arith.constant 0 : index
    %c0_205 = arith.constant 0 : index
    %444 = vector.load %arg7[%443, %c0_204, %c0_205] : memref<8x16x256xf32, #tpu.memory_space<vmem>>, vector<1x16x256xf32>
    %445 = vector.shape_cast %444 : vector<1x16x256xf32> to vector<16x256xf32>
    %446 = vector.extract_strided_slice %445 {offsets = [0, 128], sizes = [16, 128], strides = [1, 1]} : vector<16x256xf32> to vector<16x128xf32>
    %c0_206 = arith.constant 0 : index
    %c0_207 = arith.constant 0 : index
    %447 = vector.load %arg3[%c0_206, %c0_207] : memref<128x128xf32, #tpu.memory_space<vmem>>, vector<128x128xf32>
    %cst_208 = arith.constant dense<0.000000e+00> : vector<16x128xf32>
    %448 = tpu.matmul %442, %447, %cst_208 {dimension_numbers = #tpu.dot_dimension_numbers<[1], [0], [0], [1], [0, 0, 1, 1], [], []>} : vector<16x128xf32>, vector<128x128xf32>, vector<16x128xf32> -> vector<16x128xf32>
    %449 = arith.addf %446, %448 : vector<16x128xf32>
    %450 = arith.negf %449 : vector<16x128xf32>
    %451 = math.exp %450 : vector<16x128xf32>
    %cst_209 = arith.constant 1.000000e+00 : f32
    %452 = vector.broadcast %cst_209 : f32 to vector<16x128xf32>
    %453 = arith.addf %452, %451 : vector<16x128xf32>
    %454 = arith.divf %452, %453 : vector<16x128xf32>
    %455 = vector.extract_strided_slice %445 {offsets = [0, 0], sizes = [16, 128], strides = [1, 1]} : vector<16x256xf32> to vector<16x128xf32>
    %456 = arith.mulf %442, %454 : vector<16x128xf32>
    %457 = arith.addf %455, %456 : vector<16x128xf32>
    %458 = arith.index_cast %c4_i32 : i32 to index
    %c0_210 = arith.constant 0 : index
    %c0_211 = arith.constant 0 : index
    %459 = vector.load %arg5[%458, %c0_210, %c0_211] : memref<8x16x128xf32, #tpu.memory_space<vmem>>, vector<1x16x128xf32>
    %460 = vector.shape_cast %459 : vector<1x16x128xf32> to vector<16x128xf32>
    %461 = vector.shape_cast %457 : vector<16x128xf32> to vector<1x16x128xf32>
    tpu.vector_store %arg5[%458, %c0_210, %c0_211], %461 {strides = array<i32>} : memref<8x16x128xf32, #tpu.memory_space<vmem>>, vector<1x16x128xf32>,
    %c5_i32 = arith.constant 5 : i32
    %c1_i32_212 = arith.constant 1 : i32
    %462 = arith.subi %c5_i32, %c1_i32_212 : i32
    %c0_i32_213 = arith.constant 0 : i32
    %463 = arith.maxsi %462, %c0_i32_213 : i32
    %c1_i32_214 = arith.constant 1 : i32
    %464 = arith.addi %c5_i32, %c1_i32_214 : i32
    %c7_i32_215 = arith.constant 7 : i32
    %465 = arith.minsi %464, %c7_i32_215 : i32
    %c0_i32_216 = arith.constant 0 : i32
    %466 = arith.addi %463, %c0_i32_216 : i32
    %c7_i32_217 = arith.constant 7 : i32
    %467 = arith.minsi %466, %c7_i32_217 : i32
    %468 = arith.cmpi sle, %466, %465 : i32
    %469 = arith.index_cast %467 : i32 to index
    %c0_218 = arith.constant 0 : index
    %c0_219 = arith.constant 0 : index
    %470 = vector.load %arg1[%469, %c0_218, %c0_219] : memref<8x16x128xf32, #tpu.memory_space<vmem>>, vector<1x16x128xf32>
    %471 = vector.shape_cast %470 : vector<1x16x128xf32> to vector<16x128xf32>
    %cst_220 = arith.constant 0.000000e+00 : f32
    %472 = vector.broadcast %cst_220 : f32 to vector<16x128xf32>
    %473 = arith.select %468, %471, %472 : vector<16x128xf32>
    %c1_i32_221 = arith.constant 1 : i32
    %474 = arith.addi %463, %c1_i32_221 : i32
    %c7_i32_222 = arith.constant 7 : i32
    %475 = arith.minsi %474, %c7_i32_222 : i32
    %476 = arith.cmpi sle, %474, %465 : i32
    %477 = arith.index_cast %475 : i32 to index
    %c0_223 = arith.constant 0 : index
    %c0_224 = arith.constant 0 : index
    %478 = vector.load %arg1[%477, %c0_223, %c0_224] : memref<8x16x128xf32, #tpu.memory_space<vmem>>, vector<1x16x128xf32>
    %479 = vector.shape_cast %478 : vector<1x16x128xf32> to vector<16x128xf32>
    %cst_225 = arith.constant 0.000000e+00 : f32
    %480 = vector.broadcast %cst_225 : f32 to vector<16x128xf32>
    %481 = arith.select %476, %479, %480 : vector<16x128xf32>
    %c2_i32_226 = arith.constant 2 : i32
    %482 = arith.addi %463, %c2_i32_226 : i32
    %c7_i32_227 = arith.constant 7 : i32
    %483 = arith.minsi %482, %c7_i32_227 : i32
    %484 = arith.cmpi sle, %482, %465 : i32
    %485 = arith.index_cast %483 : i32 to index
    %c0_228 = arith.constant 0 : index
    %c0_229 = arith.constant 0 : index
    %486 = vector.load %arg1[%485, %c0_228, %c0_229] : memref<8x16x128xf32, #tpu.memory_space<vmem>>, vector<1x16x128xf32>
    %487 = vector.shape_cast %486 : vector<1x16x128xf32> to vector<16x128xf32>
    %cst_230 = arith.constant 0.000000e+00 : f32
    %488 = vector.broadcast %cst_230 : f32 to vector<16x128xf32>
    %489 = arith.select %484, %487, %488 : vector<16x128xf32>
    %490 = arith.mulf %473, %457 : vector<16x128xf32>
    %cst_231 = arith.constant dense<0.000000e+00> : vector<16xf32>
    %491 = vector.multi_reduction <add>, %490, %cst_231 [1] : vector<16x128xf32> to vector<16xf32>
    %492 = vector.shape_cast %491 : vector<16xf32> to vector<16x1xf32>
    %cst_232 = arith.constant 0.176776692 : f32
    %493 = vector.broadcast %cst_232 : f32 to vector<16x1xf32>
    %494 = arith.mulf %492, %493 : vector<16x1xf32>
    %495 = arith.mulf %481, %457 : vector<16x128xf32>
    %cst_233 = arith.constant dense<0.000000e+00> : vector<16xf32>
    %496 = vector.multi_reduction <add>, %495, %cst_233 [1] : vector<16x128xf32> to vector<16xf32>
    %497 = vector.shape_cast %496 : vector<16xf32> to vector<16x1xf32>
    %cst_234 = arith.constant 0.176776692 : f32
    %498 = vector.broadcast %cst_234 : f32 to vector<16x1xf32>
    %499 = arith.mulf %497, %498 : vector<16x1xf32>
    %500 = arith.mulf %489, %457 : vector<16x128xf32>
    %cst_235 = arith.constant dense<0.000000e+00> : vector<16xf32>
    %501 = vector.multi_reduction <add>, %500, %cst_235 [1] : vector<16x128xf32> to vector<16xf32>
    %502 = vector.shape_cast %501 : vector<16xf32> to vector<16x1xf32>
    %cst_236 = arith.constant 0.176776692 : f32
    %503 = vector.broadcast %cst_236 : f32 to vector<16x1xf32>
    %504 = arith.mulf %502, %503 : vector<16x1xf32>
    %505 = arith.maximumf %494, %499 : vector<16x1xf32>
    %506 = arith.maximumf %505, %504 : vector<16x1xf32>
    %507 = arith.subf %494, %506 : vector<16x1xf32>
    %508 = math.exp %507 : vector<16x1xf32>
    %509 = arith.subf %499, %506 : vector<16x1xf32>
    %510 = math.exp %509 : vector<16x1xf32>
    %511 = arith.subf %504, %506 : vector<16x1xf32>
    %512 = math.exp %511 : vector<16x1xf32>
    %513 = arith.addf %508, %510 : vector<16x1xf32>
    %514 = arith.addf %513, %512 : vector<16x1xf32>
    %cst_237 = arith.constant 1.000000e+00 : f32
    %515 = vector.broadcast %cst_237 : f32 to vector<16x1xf32>
    %516 = arith.divf %515, %514 : vector<16x1xf32>
    %517 = arith.mulf %508, %516 : vector<16x1xf32>
    %518 = vector.broadcast %517 : vector<16x1xf32> to vector<16x128xf32>
    %519 = arith.mulf %518, %473 : vector<16x128xf32>
    %520 = arith.mulf %510, %516 : vector<16x1xf32>
    %521 = vector.broadcast %520 : vector<16x1xf32> to vector<16x128xf32>
    %522 = arith.mulf %521, %481 : vector<16x128xf32>
    %523 = arith.addf %519, %522 : vector<16x128xf32>
    %524 = arith.mulf %512, %516 : vector<16x1xf32>
    %525 = vector.broadcast %524 : vector<16x1xf32> to vector<16x128xf32>
    %526 = arith.mulf %525, %489 : vector<16x128xf32>
    %527 = arith.addf %523, %526 : vector<16x128xf32>
    %528 = arith.index_cast %c5_i32 : i32 to index
    %c0_238 = arith.constant 0 : index
    %c0_239 = arith.constant 0 : index
    %529 = vector.load %arg7[%528, %c0_238, %c0_239] : memref<8x16x256xf32, #tpu.memory_space<vmem>>, vector<1x16x256xf32>
    %530 = vector.shape_cast %529 : vector<1x16x256xf32> to vector<16x256xf32>
    %531 = vector.extract_strided_slice %530 {offsets = [0, 128], sizes = [16, 128], strides = [1, 1]} : vector<16x256xf32> to vector<16x128xf32>
    %c0_240 = arith.constant 0 : index
    %c0_241 = arith.constant 0 : index
    %532 = vector.load %arg3[%c0_240, %c0_241] : memref<128x128xf32, #tpu.memory_space<vmem>>, vector<128x128xf32>
    %cst_242 = arith.constant dense<0.000000e+00> : vector<16x128xf32>
    %533 = tpu.matmul %527, %532, %cst_242 {dimension_numbers = #tpu.dot_dimension_numbers<[1], [0], [0], [1], [0, 0, 1, 1], [], []>} : vector<16x128xf32>, vector<128x128xf32>, vector<16x128xf32> -> vector<16x128xf32>
    %534 = arith.addf %531, %533 : vector<16x128xf32>
    %535 = arith.negf %534 : vector<16x128xf32>
    %536 = math.exp %535 : vector<16x128xf32>
    %cst_243 = arith.constant 1.000000e+00 : f32
    %537 = vector.broadcast %cst_243 : f32 to vector<16x128xf32>
    %538 = arith.addf %537, %536 : vector<16x128xf32>
    %539 = arith.divf %537, %538 : vector<16x128xf32>
    %540 = vector.extract_strided_slice %530 {offsets = [0, 0], sizes = [16, 128], strides = [1, 1]} : vector<16x256xf32> to vector<16x128xf32>
    %541 = arith.mulf %527, %539 : vector<16x128xf32>
    %542 = arith.addf %540, %541 : vector<16x128xf32>
    %543 = arith.index_cast %c5_i32 : i32 to index
    %c0_244 = arith.constant 0 : index
    %c0_245 = arith.constant 0 : index
    %544 = vector.load %arg5[%543, %c0_244, %c0_245] : memref<8x16x128xf32, #tpu.memory_space<vmem>>, vector<1x16x128xf32>
    %545 = vector.shape_cast %544 : vector<1x16x128xf32> to vector<16x128xf32>
    %546 = vector.shape_cast %542 : vector<16x128xf32> to vector<1x16x128xf32>
    tpu.vector_store %arg5[%543, %c0_244, %c0_245], %546 {strides = array<i32>} : memref<8x16x128xf32, #tpu.memory_space<vmem>>, vector<1x16x128xf32>,
    %c6_i32 = arith.constant 6 : i32
    %c1_i32_246 = arith.constant 1 : i32
    %547 = arith.subi %c6_i32, %c1_i32_246 : i32
    %c0_i32_247 = arith.constant 0 : i32
    %548 = arith.maxsi %547, %c0_i32_247 : i32
    %c1_i32_248 = arith.constant 1 : i32
    %549 = arith.addi %c6_i32, %c1_i32_248 : i32
    %c7_i32_249 = arith.constant 7 : i32
    %550 = arith.minsi %549, %c7_i32_249 : i32
    %c0_i32_250 = arith.constant 0 : i32
    %551 = arith.addi %548, %c0_i32_250 : i32
    %c7_i32_251 = arith.constant 7 : i32
    %552 = arith.minsi %551, %c7_i32_251 : i32
    %553 = arith.cmpi sle, %551, %550 : i32
    %554 = arith.index_cast %552 : i32 to index
    %c0_252 = arith.constant 0 : index
    %c0_253 = arith.constant 0 : index
    %555 = vector.load %arg1[%554, %c0_252, %c0_253] : memref<8x16x128xf32, #tpu.memory_space<vmem>>, vector<1x16x128xf32>
    %556 = vector.shape_cast %555 : vector<1x16x128xf32> to vector<16x128xf32>
    %cst_254 = arith.constant 0.000000e+00 : f32
    %557 = vector.broadcast %cst_254 : f32 to vector<16x128xf32>
    %558 = arith.select %553, %556, %557 : vector<16x128xf32>
    %c1_i32_255 = arith.constant 1 : i32
    %559 = arith.addi %548, %c1_i32_255 : i32
    %c7_i32_256 = arith.constant 7 : i32
    %560 = arith.minsi %559, %c7_i32_256 : i32
    %561 = arith.cmpi sle, %559, %550 : i32
    %562 = arith.index_cast %560 : i32 to index
    %c0_257 = arith.constant 0 : index
    %c0_258 = arith.constant 0 : index
    %563 = vector.load %arg1[%562, %c0_257, %c0_258] : memref<8x16x128xf32, #tpu.memory_space<vmem>>, vector<1x16x128xf32>
    %564 = vector.shape_cast %563 : vector<1x16x128xf32> to vector<16x128xf32>
    %cst_259 = arith.constant 0.000000e+00 : f32
    %565 = vector.broadcast %cst_259 : f32 to vector<16x128xf32>
    %566 = arith.select %561, %564, %565 : vector<16x128xf32>
    %c2_i32_260 = arith.constant 2 : i32
    %567 = arith.addi %548, %c2_i32_260 : i32
    %c7_i32_261 = arith.constant 7 : i32
    %568 = arith.minsi %567, %c7_i32_261 : i32
    %569 = arith.cmpi sle, %567, %550 : i32
    %570 = arith.index_cast %568 : i32 to index
    %c0_262 = arith.constant 0 : index
    %c0_263 = arith.constant 0 : index
    %571 = vector.load %arg1[%570, %c0_262, %c0_263] : memref<8x16x128xf32, #tpu.memory_space<vmem>>, vector<1x16x128xf32>
    %572 = vector.shape_cast %571 : vector<1x16x128xf32> to vector<16x128xf32>
    %cst_264 = arith.constant 0.000000e+00 : f32
    %573 = vector.broadcast %cst_264 : f32 to vector<16x128xf32>
    %574 = arith.select %569, %572, %573 : vector<16x128xf32>
    %575 = arith.mulf %558, %542 : vector<16x128xf32>
    %cst_265 = arith.constant dense<0.000000e+00> : vector<16xf32>
    %576 = vector.multi_reduction <add>, %575, %cst_265 [1] : vector<16x128xf32> to vector<16xf32>
    %577 = vector.shape_cast %576 : vector<16xf32> to vector<16x1xf32>
    %cst_266 = arith.constant 0.176776692 : f32
    %578 = vector.broadcast %cst_266 : f32 to vector<16x1xf32>
    %579 = arith.mulf %577, %578 : vector<16x1xf32>
    %580 = arith.mulf %566, %542 : vector<16x128xf32>
    %cst_267 = arith.constant dense<0.000000e+00> : vector<16xf32>
    %581 = vector.multi_reduction <add>, %580, %cst_267 [1] : vector<16x128xf32> to vector<16xf32>
    %582 = vector.shape_cast %581 : vector<16xf32> to vector<16x1xf32>
    %cst_268 = arith.constant 0.176776692 : f32
    %583 = vector.broadcast %cst_268 : f32 to vector<16x1xf32>
    %584 = arith.mulf %582, %583 : vector<16x1xf32>
    %585 = arith.mulf %574, %542 : vector<16x128xf32>
    %cst_269 = arith.constant dense<0.000000e+00> : vector<16xf32>
    %586 = vector.multi_reduction <add>, %585, %cst_269 [1] : vector<16x128xf32> to vector<16xf32>
    %587 = vector.shape_cast %586 : vector<16xf32> to vector<16x1xf32>
    %cst_270 = arith.constant 0.176776692 : f32
    %588 = vector.broadcast %cst_270 : f32 to vector<16x1xf32>
    %589 = arith.mulf %587, %588 : vector<16x1xf32>
    %590 = arith.maximumf %579, %584 : vector<16x1xf32>
    %591 = arith.maximumf %590, %589 : vector<16x1xf32>
    %592 = arith.subf %579, %591 : vector<16x1xf32>
    %593 = math.exp %592 : vector<16x1xf32>
    %594 = arith.subf %584, %591 : vector<16x1xf32>
    %595 = math.exp %594 : vector<16x1xf32>
    %596 = arith.subf %589, %591 : vector<16x1xf32>
    %597 = math.exp %596 : vector<16x1xf32>
    %598 = arith.addf %593, %595 : vector<16x1xf32>
    %599 = arith.addf %598, %597 : vector<16x1xf32>
    %cst_271 = arith.constant 1.000000e+00 : f32
    %600 = vector.broadcast %cst_271 : f32 to vector<16x1xf32>
    %601 = arith.divf %600, %599 : vector<16x1xf32>
    %602 = arith.mulf %593, %601 : vector<16x1xf32>
    %603 = vector.broadcast %602 : vector<16x1xf32> to vector<16x128xf32>
    %604 = arith.mulf %603, %558 : vector<16x128xf32>
    %605 = arith.mulf %595, %601 : vector<16x1xf32>
    %606 = vector.broadcast %605 : vector<16x1xf32> to vector<16x128xf32>
    %607 = arith.mulf %606, %566 : vector<16x128xf32>
    %608 = arith.addf %604, %607 : vector<16x128xf32>
    %609 = arith.mulf %597, %601 : vector<16x1xf32>
    %610 = vector.broadcast %609 : vector<16x1xf32> to vector<16x128xf32>
    %611 = arith.mulf %610, %574 : vector<16x128xf32>
    %612 = arith.addf %608, %611 : vector<16x128xf32>
    %613 = arith.index_cast %c6_i32 : i32 to index
    %c0_272 = arith.constant 0 : index
    %c0_273 = arith.constant 0 : index
    %614 = vector.load %arg7[%613, %c0_272, %c0_273] : memref<8x16x256xf32, #tpu.memory_space<vmem>>, vector<1x16x256xf32>
    %615 = vector.shape_cast %614 : vector<1x16x256xf32> to vector<16x256xf32>
    %616 = vector.extract_strided_slice %615 {offsets = [0, 128], sizes = [16, 128], strides = [1, 1]} : vector<16x256xf32> to vector<16x128xf32>
    %c0_274 = arith.constant 0 : index
    %c0_275 = arith.constant 0 : index
    %617 = vector.load %arg3[%c0_274, %c0_275] : memref<128x128xf32, #tpu.memory_space<vmem>>, vector<128x128xf32>
    %cst_276 = arith.constant dense<0.000000e+00> : vector<16x128xf32>
    %618 = tpu.matmul %612, %617, %cst_276 {dimension_numbers = #tpu.dot_dimension_numbers<[1], [0], [0], [1], [0, 0, 1, 1], [], []>} : vector<16x128xf32>, vector<128x128xf32>, vector<16x128xf32> -> vector<16x128xf32>
    %619 = arith.addf %616, %618 : vector<16x128xf32>
    %620 = arith.negf %619 : vector<16x128xf32>
    %621 = math.exp %620 : vector<16x128xf32>
    %cst_277 = arith.constant 1.000000e+00 : f32
    %622 = vector.broadcast %cst_277 : f32 to vector<16x128xf32>
    %623 = arith.addf %622, %621 : vector<16x128xf32>
    %624 = arith.divf %622, %623 : vector<16x128xf32>
    %625 = vector.extract_strided_slice %615 {offsets = [0, 0], sizes = [16, 128], strides = [1, 1]} : vector<16x256xf32> to vector<16x128xf32>
    %626 = arith.mulf %612, %624 : vector<16x128xf32>
    %627 = arith.addf %625, %626 : vector<16x128xf32>
    %628 = arith.index_cast %c6_i32 : i32 to index
    %c0_278 = arith.constant 0 : index
    %c0_279 = arith.constant 0 : index
    %629 = vector.load %arg5[%628, %c0_278, %c0_279] : memref<8x16x128xf32, #tpu.memory_space<vmem>>, vector<1x16x128xf32>
    %630 = vector.shape_cast %629 : vector<1x16x128xf32> to vector<16x128xf32>
    %631 = vector.shape_cast %627 : vector<16x128xf32> to vector<1x16x128xf32>
    tpu.vector_store %arg5[%628, %c0_278, %c0_279], %631 {strides = array<i32>} : memref<8x16x128xf32, #tpu.memory_space<vmem>>, vector<1x16x128xf32>,
    %c7_i32_280 = arith.constant 7 : i32
    %c1_i32_281 = arith.constant 1 : i32
    %632 = arith.subi %c7_i32_280, %c1_i32_281 : i32
    %c0_i32_282 = arith.constant 0 : i32
    %633 = arith.maxsi %632, %c0_i32_282 : i32
    %c1_i32_283 = arith.constant 1 : i32
    %634 = arith.addi %c7_i32_280, %c1_i32_283 : i32
    %c7_i32_284 = arith.constant 7 : i32
    %635 = arith.minsi %634, %c7_i32_284 : i32
    %c0_i32_285 = arith.constant 0 : i32
    %636 = arith.addi %633, %c0_i32_285 : i32
    %c7_i32_286 = arith.constant 7 : i32
    %637 = arith.minsi %636, %c7_i32_286 : i32
    %638 = arith.cmpi sle, %636, %635 : i32
    %639 = arith.index_cast %637 : i32 to index
    %c0_287 = arith.constant 0 : index
    %c0_288 = arith.constant 0 : index
    %640 = vector.load %arg1[%639, %c0_287, %c0_288] : memref<8x16x128xf32, #tpu.memory_space<vmem>>, vector<1x16x128xf32>
    %641 = vector.shape_cast %640 : vector<1x16x128xf32> to vector<16x128xf32>
    %cst_289 = arith.constant 0.000000e+00 : f32
    %642 = vector.broadcast %cst_289 : f32 to vector<16x128xf32>
    %643 = arith.select %638, %641, %642 : vector<16x128xf32>
    %c1_i32_290 = arith.constant 1 : i32
    %644 = arith.addi %633, %c1_i32_290 : i32
    %c7_i32_291 = arith.constant 7 : i32
    %645 = arith.minsi %644, %c7_i32_291 : i32
    %646 = arith.cmpi sle, %644, %635 : i32
    %647 = arith.index_cast %645 : i32 to index
    %c0_292 = arith.constant 0 : index
    %c0_293 = arith.constant 0 : index
    %648 = vector.load %arg1[%647, %c0_292, %c0_293] : memref<8x16x128xf32, #tpu.memory_space<vmem>>, vector<1x16x128xf32>
    %649 = vector.shape_cast %648 : vector<1x16x128xf32> to vector<16x128xf32>
    %cst_294 = arith.constant 0.000000e+00 : f32
    %650 = vector.broadcast %cst_294 : f32 to vector<16x128xf32>
    %651 = arith.select %646, %649, %650 : vector<16x128xf32>
    %c2_i32_295 = arith.constant 2 : i32
    %652 = arith.addi %633, %c2_i32_295 : i32
    %c7_i32_296 = arith.constant 7 : i32
    %653 = arith.minsi %652, %c7_i32_296 : i32
    %654 = arith.cmpi sle, %652, %635 : i32
    %655 = arith.index_cast %653 : i32 to index
    %c0_297 = arith.constant 0 : index
    %c0_298 = arith.constant 0 : index
    %656 = vector.load %arg1[%655, %c0_297, %c0_298] : memref<8x16x128xf32, #tpu.memory_space<vmem>>, vector<1x16x128xf32>
    %657 = vector.shape_cast %656 : vector<1x16x128xf32> to vector<16x128xf32>
    %cst_299 = arith.constant 0.000000e+00 : f32
    %658 = vector.broadcast %cst_299 : f32 to vector<16x128xf32>
    %659 = arith.select %654, %657, %658 : vector<16x128xf32>
    %660 = arith.mulf %643, %627 : vector<16x128xf32>
    %cst_300 = arith.constant dense<0.000000e+00> : vector<16xf32>
    %661 = vector.multi_reduction <add>, %660, %cst_300 [1] : vector<16x128xf32> to vector<16xf32>
    %662 = vector.shape_cast %661 : vector<16xf32> to vector<16x1xf32>
    %cst_301 = arith.constant 0.176776692 : f32
    %663 = vector.broadcast %cst_301 : f32 to vector<16x1xf32>
    %664 = arith.mulf %662, %663 : vector<16x1xf32>
    %665 = arith.mulf %651, %627 : vector<16x128xf32>
    %cst_302 = arith.constant dense<0.000000e+00> : vector<16xf32>
    %666 = vector.multi_reduction <add>, %665, %cst_302 [1] : vector<16x128xf32> to vector<16xf32>
    %667 = vector.shape_cast %666 : vector<16xf32> to vector<16x1xf32>
    %cst_303 = arith.constant 0.176776692 : f32
    %668 = vector.broadcast %cst_303 : f32 to vector<16x1xf32>
    %669 = arith.mulf %667, %668 : vector<16x1xf32>
    %670 = arith.mulf %659, %627 : vector<16x128xf32>
    %cst_304 = arith.constant dense<0.000000e+00> : vector<16xf32>
    %671 = vector.multi_reduction <add>, %670, %cst_304 [1] : vector<16x128xf32> to vector<16xf32>
    %672 = vector.shape_cast %671 : vector<16xf32> to vector<16x1xf32>
    %cst_305 = arith.constant 0.176776692 : f32
    %673 = vector.broadcast %cst_305 : f32 to vector<16x1xf32>
    %674 = arith.mulf %672, %673 : vector<16x1xf32>
    %675 = arith.maximumf %664, %669 : vector<16x1xf32>
    %676 = arith.maximumf %675, %674 : vector<16x1xf32>
    %677 = arith.subf %664, %676 : vector<16x1xf32>
    %678 = math.exp %677 : vector<16x1xf32>
    %679 = arith.subf %669, %676 : vector<16x1xf32>
    %680 = math.exp %679 : vector<16x1xf32>
    %681 = arith.subf %674, %676 : vector<16x1xf32>
    %682 = math.exp %681 : vector<16x1xf32>
    %683 = arith.addf %678, %680 : vector<16x1xf32>
    %684 = arith.addf %683, %682 : vector<16x1xf32>
    %cst_306 = arith.constant 1.000000e+00 : f32
    %685 = vector.broadcast %cst_306 : f32 to vector<16x1xf32>
    %686 = arith.divf %685, %684 : vector<16x1xf32>
    %687 = arith.mulf %678, %686 : vector<16x1xf32>
    %688 = vector.broadcast %687 : vector<16x1xf32> to vector<16x128xf32>
    %689 = arith.mulf %688, %643 : vector<16x128xf32>
    %690 = arith.mulf %680, %686 : vector<16x1xf32>
    %691 = vector.broadcast %690 : vector<16x1xf32> to vector<16x128xf32>
    %692 = arith.mulf %691, %651 : vector<16x128xf32>
    %693 = arith.addf %689, %692 : vector<16x128xf32>
    %694 = arith.mulf %682, %686 : vector<16x1xf32>
    %695 = vector.broadcast %694 : vector<16x1xf32> to vector<16x128xf32>
    %696 = arith.mulf %695, %659 : vector<16x128xf32>
    %697 = arith.addf %693, %696 : vector<16x128xf32>
    %698 = arith.index_cast %c7_i32_280 : i32 to index
    %c0_307 = arith.constant 0 : index
    %c0_308 = arith.constant 0 : index
    %699 = vector.load %arg7[%698, %c0_307, %c0_308] : memref<8x16x256xf32, #tpu.memory_space<vmem>>, vector<1x16x256xf32>
    %700 = vector.shape_cast %699 : vector<1x16x256xf32> to vector<16x256xf32>
    %701 = vector.extract_strided_slice %700 {offsets = [0, 128], sizes = [16, 128], strides = [1, 1]} : vector<16x256xf32> to vector<16x128xf32>
    %c0_309 = arith.constant 0 : index
    %c0_310 = arith.constant 0 : index
    %702 = vector.load %arg3[%c0_309, %c0_310] : memref<128x128xf32, #tpu.memory_space<vmem>>, vector<128x128xf32>
    %cst_311 = arith.constant dense<0.000000e+00> : vector<16x128xf32>
    %703 = tpu.matmul %697, %702, %cst_311 {dimension_numbers = #tpu.dot_dimension_numbers<[1], [0], [0], [1], [0, 0, 1, 1], [], []>} : vector<16x128xf32>, vector<128x128xf32>, vector<16x128xf32> -> vector<16x128xf32>
    %704 = arith.addf %701, %703 : vector<16x128xf32>
    %705 = arith.negf %704 : vector<16x128xf32>
    %706 = math.exp %705 : vector<16x128xf32>
    %cst_312 = arith.constant 1.000000e+00 : f32
    %707 = vector.broadcast %cst_312 : f32 to vector<16x128xf32>
    %708 = arith.addf %707, %706 : vector<16x128xf32>
    %709 = arith.divf %707, %708 : vector<16x128xf32>
    %710 = vector.extract_strided_slice %700 {offsets = [0, 0], sizes = [16, 128], strides = [1, 1]} : vector<16x256xf32> to vector<16x128xf32>
    %711 = arith.mulf %697, %709 : vector<16x128xf32>
    %712 = arith.addf %710, %711 : vector<16x128xf32>
    %713 = arith.index_cast %c7_i32_280 : i32 to index
    %c0_313 = arith.constant 0 : index
    %c0_314 = arith.constant 0 : index
    %714 = vector.load %arg5[%713, %c0_313, %c0_314] : memref<8x16x128xf32, #tpu.memory_space<vmem>>, vector<1x16x128xf32>
    %715 = vector.shape_cast %714 : vector<1x16x128xf32> to vector<16x128xf32>
    %716 = vector.shape_cast %712 : vector<16x128xf32> to vector<1x16x128xf32>
    tpu.vector_store %arg5[%713, %c0_313, %c0_314], %716 {strides = array<i32>} : memref<8x16x128xf32, #tpu.memory_space<vmem>>, vector<1x16x128xf32>,
    %c8_i32 = arith.constant 8 : i32
    return
  }
  func.func @transform_0(%arg0: i32) -> (i32, i32, i32) {
    %c0_i32 = arith.constant 0 : i32
    %c0_i32_0 = arith.constant 0 : i32
    %c0_i32_1 = arith.constant 0 : i32
    %c0_i32_2 = arith.constant 0 : i32
    return %c0_i32, %c0_i32_0, %c0_i32_1 : i32, i32, i32
  }
  func.func @transform_1(%arg0: i32) -> (i32, i32) {
    %c0_i32 = arith.constant 0 : i32
    %c0_i32_0 = arith.constant 0 : i32
    %c0_i32_1 = arith.constant 0 : i32
    return %c0_i32, %c0_i32_0 : i32, i32
  }
  func.func @transform_2(%arg0: i32) -> (i32, i32) {
    %c0_i32 = arith.constant 0 : i32
    %c0_i32_0 = arith.constant 0 : i32
    %c0_i32_1 = arith.constant 0 : i32
    return %c0_i32, %c0_i32_0 : i32, i32
  }
  func.func @transform_3(%arg0: i32) -> (i32, i32) {
    %c0_i32 = arith.constant 0 : i32
    %c0_i32_0 = arith.constant 0 : i32
    %c0_i32_1 = arith.constant 0 : i32
    return %c0_i32, %c0_i32_0 : i32, i32
  }
  func.func @transform_4(%arg0: i32) -> (i32, i32, i32) {
    %c0_i32 = arith.constant 0 : i32
    %c0_i32_0 = arith.constant 0 : i32
    %c0_i32_1 = arith.constant 0 : i32
    %c0_i32_2 = arith.constant 0 : i32
    return %c0_i32, %c0_i32_0, %c0_i32_1 : i32, i32, i32
  }
}

</mosaic_0001>

<llo_original>
// kernel: bimru_forward.1
$region0: #{bimru_forward.1}
  #allocation0 [shape = 'u32[]', space=smem, size = 0x4, offset = 0x4, fixed_abs, tag = 'smem constant byte address 0x4 - core index']
  #allocation1 [shape = 'u32[144,128]{1,0:T(1,128)}', space=vmem, size = 0x12000, scoped, tag = 'internal scratch']
  #allocation2 [shape = 'bf16[8,16,384]{2,1,0:T(16,128)(2,1)}', space=vmem, size = 0x18000, scoped, tag = 'scratch operand']
  #allocation3 [shape = 'f32[8,16,256]{2,1,0:T(8,128)}', space=vmem, size = 0x20000, scoped, tag = 'scratch operand']
  %s0 = inlined_call_operand.vmem [shape: f32[8,16,128], index: 0, kind: input, shape index: {}]
  %s1 = inlined_call_operand.vmem [shape: bf16[384,256], index: 1, kind: input, shape index: {}]
  %s2 = inlined_call_operand.vmem [shape: f32[128,128], index: 2, kind: input, shape index: {}]
  %s3 = inlined_call_operand.vmem [shape: f32[1,256], index: 3, kind: input, shape index: {}]
  %s4 = inlined_call_operand.vmem [shape: f32[8,16,128], index: 4, kind: output, shape index: {}]
  %s5 = sld [smem:[#allocation0]]
  $region26: #{bimru_forward.1} parent=0
    _
  %s7 = ssub.s32 1, %s5
  %s8 = scalar_select 0, %s7, %s5
  // Predicated region
  $region2: #{bimru_forward.1} parent=0 // pred_check
    _
  $region3: #{bimru_forward.1} parent=0 // pred_check_branch
    %10 = sbr.rel (0) target = $region5
  $region4: #{bimru_forward.1} parent=0 // pred_region
    _
  $region5: #{bimru_forward.1} parent=0 // pred_fallthru
    _
  // Predicated region
  $region6: #{bimru_forward.1} parent=0 // pred_check
    _
  $region7: #{bimru_forward.1} parent=0 // pred_check_branch
    %12 = sbr.rel (0) target = $region9
  $region8: #{bimru_forward.1} parent=0 // pred_region
    _
  $region9: #{bimru_forward.1} parent=0 // pred_fallthru
    _
  // Predicated region
  $region10: #{bimru_forward.1} parent=0 // pred_check
    _
  $region11: #{bimru_forward.1} parent=0 // pred_check_branch
    %14 = sbr.rel (0) target = $region13
  $region12: #{bimru_forward.1} parent=0 // pred_region
    _
  $region13: #{bimru_forward.1} parent=0 // pred_fallthru
    _
  // Predicated region
  $region14: #{bimru_forward.1} parent=0 // pred_check
    _
  $region15: #{bimru_forward.1} parent=0 // pred_check_branch
    %16 = sbr.rel (0) target = $region17
  $region16: #{bimru_forward.1} parent=0 // pred_region
    _
  $region17: #{bimru_forward.1} parent=0 // pred_fallthru
    _
  %v18 = vld [vmem:[%s0] sm:$0xff]
  %v19 = vld [vmem:[%s0 + $0x8] sm:$0xff]
  %v20 = vld [vmem:[%s0 + $0x10] sm:$0xff]
  %v21 = vld [vmem:[%s0 + $0x18] sm:$0xff]
  %v22 = vld [vmem:[%s0 + $0x20] sm:$0xff]
  %v23 = vld [vmem:[%s0 + $0x28] sm:$0xff]
  %v24 = vld [vmem:[%s0 + $0x30] sm:$0xff]
  %v25 = vld [vmem:[%s0 + $0x38] sm:$0xff]
  %v26 = vld [vmem:[%s0 + $0x40] sm:$0xff]
  %v27 = vld [vmem:[%s0 + $0x48] sm:$0xff]
  %v28 = vld [vmem:[%s0 + $0x50] sm:$0xff]
  %v29 = vld [vmem:[%s0 + $0x58] sm:$0xff]
  %v30 = vld [vmem:[%s0 + $0x60] sm:$0xff]
  %v31 = vld [vmem:[%s0 + $0x68] sm:$0xff]
  %v32 = vpack.c.bf16 %v19, %v18
  %v33 = vpack.c.bf16 %v21, %v20
  %v34 = vpack.c.bf16 %v23, %v22
  %v35 = vpack.c.bf16 %v25, %v24
  %v36 = vpack.c.bf16 %v27, %v26
  %v37 = vpack.c.bf16 %v29, %v28
  %v38 = vpack.c.bf16 %v31, %v30
  %s39 = scalar_lea.vmem [#allocation2], 24
  %40 = vst [vmem:[%s39] sm:$0xff] %v32
  %41 = vst [vmem:[%s39 + $0x18] sm:$0xff] %v33
  %42 = vst [vmem:[%s39 + $0x30] sm:$0xff] %v34
  %43 = vst [vmem:[%s39 + $0x48] sm:$0xff] %v35
  %44 = vst [vmem:[%s39 + $0x60] sm:$0xff] %v36
  %45 = vst [vmem:[%s39 + $0x78] sm:$0xff] %v37
  %46 = vst [vmem:[%s39 + $0x90] sm:$0xff] %v38
  %v47 = vld [vmem:[%s0] sm:$0xff]
  %v48 = vld [vmem:[%s0 + $0x8] sm:$0xff]
  %v49 = vpack.c.bf16 %v48, %v47
  %50 = vst [vmem:[#allocation2] sm:$0xff] %v49
  %s51 = scalar_lea.vmem %s0, 16
  %v52 = vld [vmem:[%s51] sm:$0xff]
  %v53 = vld [vmem:[%s51 + $0x8] sm:$0xff]
  %v54 = vld [vmem:[%s51 + $0x10] sm:$0xff]
  %v55 = vld [vmem:[%s51 + $0x18] sm:$0xff]
  %v56 = vld [vmem:[%s51 + $0x20] sm:$0xff]
  %v57 = vld [vmem:[%s51 + $0x28] sm:$0xff]
  %v58 = vld [vmem:[%s51 + $0x30] sm:$0xff]
  %v59 = vld [vmem:[%s51 + $0x38] sm:$0xff]
  %v60 = vld [vmem:[%s51 + $0x40] sm:$0xff]
  %v61 = vld [vmem:[%s51 + $0x48] sm:$0xff]
  %v62 = vld [vmem:[%s51 + $0x50] sm:$0xff]
  %v63 = vld [vmem:[%s51 + $0x58] sm:$0xff]
  %v64 = vld [vmem:[%s51 + $0x60] sm:$0xff]
  %v65 = vld [vmem:[%s51 + $0x68] sm:$0xff]
  %v66 = vpack.c.bf16 %v53, %v52
  %v67 = vpack.c.bf16 %v55, %v54
  %v68 = vpack.c.bf16 %v57, %v56
  %v69 = vpack.c.bf16 %v59, %v58
  %v70 = vpack.c.bf16 %v61, %v60
  %v71 = vpack.c.bf16 %v63, %v62
  %v72 = vpack.c.bf16 %v65, %v64
  %73 = vst [vmem:[%s39 + $0x8] sm:$0xff] %v66
  %74 = vst [vmem:[%s39 + $0x20] sm:$0xff] %v67
  %75 = vst [vmem:[%s39 + $0x38] sm:$0xff] %v68
  %76 = vst [vmem:[%s39 + $0x50] sm:$0xff] %v69
  %77 = vst [vmem:[%s39 + $0x68] sm:$0xff] %v70
  %78 = vst [vmem:[%s39 + $0x80] sm:$0xff] %v71
  %79 = vst [vmem:[%s39 + $0x98] sm:$0xff] %v72
  %v80 = vld [vmem:[%s51] sm:$0xff]
  %v81 = vld [vmem:[%s51 + $0x8] sm:$0xff]
  %v82 = vpack.c.bf16 %v81, %v80
  %83 = vst [vmem:[#allocation2 + $0x8] sm:$0xff] %v82
  %s84 = scalar_lea.vmem %s0, 32
  %v85 = vld [vmem:[%s84] sm:$0xff]
  %v86 = vld [vmem:[%s84 + $0x8] sm:$0xff]
  %v87 = vld [vmem:[%s84 + $0x10] sm:$0xff]
  %v88 = vld [vmem:[%s84 + $0x18] sm:$0xff]
  %v89 = vld [vmem:[%s84 + $0x20] sm:$0xff]
  %v90 = vld [vmem:[%s84 + $0x28] sm:$0xff]
  %v91 = vld [vmem:[%s84 + $0x30] sm:$0xff]
  %v92 = vld [vmem:[%s84 + $0x38] sm:$0xff]
  %v93 = vld [vmem:[%s84 + $0x40] sm:$0xff]
  %v94 = vld [vmem:[%s84 + $0x48] sm:$0xff]
  %v95 = vld [vmem:[%s84 + $0x50] sm:$0xff]
  %v96 = vld [vmem:[%s84 + $0x58] sm:$0xff]
  %v97 = vpack.c.bf16 %v86, %v85
  %v98 = vpack.c.bf16 %v88, %v87
  %v99 = vpack.c.bf16 %v90, %v89
  %v100 = vpack.c.bf16 %v92, %v91
  %v101 = vpack.c.bf16 %v94, %v93
  %v102 = vpack.c.bf16 %v96, %v95
  %103 = vst [vmem:[%s39 + $0x10] sm:$0xff] %v97
  %104 = vst [vmem:[%s39 + $0x28] sm:$0xff] %v98
  %105 = vst [vmem:[%s39 + $0x40] sm:$0xff] %v99
  %106 = vst [vmem:[%s39 + $0x58] sm:$0xff] %v100
  %107 = vst [vmem:[%s39 + $0x70] sm:$0xff] %v101
  %108 = vst [vmem:[%s39 + $0x88] sm:$0xff] %v102
  %s109 = scalar_lea.vmem [#allocation2], 168
  %110 = vst [vmem:[%s109 + $0x10] sm:$0xff] 0
  %111 = vst [vmem:[#allocation2 + $0x10] sm:$0xff] 0
  %v112 = vld [vmem:[%s3] sm:$0x3]
  %v113 = vld [vmem:[#allocation2] sm:$0xff]
  %v114 = vld [vmem:[#allocation2 + $0x8] sm:$0xff]
  %v115 = vld [vmem:[#allocation2 + $0x10] sm:$0xff]
  %v116 = vld [vmem:[#allocation2 + $0x18] sm:$0xff]
  %v117 = vld [vmem:[#allocation2 + $0x20] sm:$0xff]
  %v118 = vld [vmem:[#allocation2 + $0x28] sm:$0xff]
  %v119 = vld [vmem:[#allocation2 + $0x30] sm:$0xff]
  %v120 = vld [vmem:[#allocation2 + $0x38] sm:$0xff]
  %v121 = vld [vmem:[#allocation2 + $0x40] sm:$0xff]
  %v122 = vld [vmem:[#allocation2 + $0x48] sm:$0xff]
  %v123 = vld [vmem:[#allocation2 + $0x50] sm:$0xff]
  %v124 = vld [vmem:[#allocation2 + $0x58] sm:$0xff]
  %v125 = vld [vmem:[#allocation2 + $0x60] sm:$0xff]
  %v126 = vld [vmem:[#allocation2 + $0x68] sm:$0xff]
  %v127 = vld [vmem:[#allocation2 + $0x70] sm:$0xff]
  %v128 = vld [vmem:[#allocation2 + $0x78] sm:$0xff]
  %v129 = vld [vmem:[#allocation2 + $0x80] sm:$0xff]
  %v130 = vld [vmem:[#allocation2 + $0x88] sm:$0xff]
  %v131 = vld [vmem:[#allocation2 + $0x90] sm:$0xff]
  %v132 = vld [vmem:[#allocation2 + $0x98] sm:$0xff]
  %v133 = vld [vmem:[#allocation2 + $0xa0] sm:$0xff]
  %v134 = vld [vmem:[#allocation2 + $0xa8] sm:$0xff]
  %v135 = vld [vmem:[#allocation2 + $0xb0] sm:$0xff]
  %v136 = vld [vmem:[#allocation2 + $0xb8] sm:$0xff]
  %v137 = vld [vmem:[%s1] sm:$0xff]
  %v138 = vld [vmem:[%s1 + $0x8] sm:$0xff]
  %v139 = vld [vmem:[%s1 + $0x10] sm:$0xff]
  %v140 = vld [vmem:[%s1 + $0x18] sm:$0xff]
  %v141 = vld [vmem:[%s1 + $0x20] sm:$0xff]
  %v142 = vld [vmem:[%s1 + $0x28] sm:$0xff]
  %v143 = vld [vmem:[%s1 + $0x30] sm:$0xff]
  %v144 = vld [vmem:[%s1 + $0x38] sm:$0xff]
  %v145 = vld [vmem:[%s1 + $0x40] sm:$0xff]
  %v146 = vld [vmem:[%s1 + $0x48] sm:$0xff]
  %v147 = vld [vmem:[%s1 + $0x50] sm:$0xff]
  %v148 = vld [vmem:[%s1 + $0x58] sm:$0xff]
  %v149 = vld [vmem:[%s1 + $0x60] sm:$0xff]
  %v150 = vld [vmem:[%s1 + $0x68] sm:$0xff]
  %v151 = vld [vmem:[%s1 + $0x70] sm:$0xff]
  %v152 = vld [vmem:[%s1 + $0x78] sm:$0xff]
  %v153 = vld [vmem:[%s1 + $0x80] sm:$0xff]
  %v154 = vld [vmem:[%s1 + $0x88] sm:$0xff]
  %v155 = vld [vmem:[%s1 + $0x90] sm:$0xff]
  %v156 = vld [vmem:[%s1 + $0x98] sm:$0xff]
  %v157 = vld [vmem:[%s1 + $0xa0] sm:$0xff]
  %v158 = vld [vmem:[%s1 + $0xa8] sm:$0xff]
  %v159 = vld [vmem:[%s1 + $0xb0] sm:$0xff]
  %v160 = vld [vmem:[%s1 + $0xb8] sm:$0xff]
  %v161 = vld [vmem:[%s1 + $0xc0] sm:$0xff]
  %v162 = vld [vmem:[%s1 + $0xc8] sm:$0xff]
  %v163 = vld [vmem:[%s1 + $0xd0] sm:$0xff]
  %v164 = vld [vmem:[%s1 + $0xd8] sm:$0xff]
  %v165 = vld [vmem:[%s1 + $0xe0] sm:$0xff]
  %v166 = vld [vmem:[%s1 + $0xe8] sm:$0xff]
  %v167 = vld [vmem:[%s1 + $0xf0] sm:$0xff]
  %v168 = vld [vmem:[%s1 + $0xf8] sm:$0xff]
  %v169 = vld [vmem:[%s1 + $0x100] sm:$0xff]
  %v170 = vld [vmem:[%s1 + $0x108] sm:$0xff]
  %v171 = vld [vmem:[%s1 + $0x110] sm:$0xff]
  %v172 = vld [vmem:[%s1 + $0x118] sm:$0xff]
  %v173 = vld [vmem:[%s1 + $0x120] sm:$0xff]
  %v174 = vld [vmem:[%s1 + $0x128] sm:$0xff]
  %v175 = vld [vmem:[%s1 + $0x130] sm:$0xff]
  %v176 = vld [vmem:[%s1 + $0x138] sm:$0xff]
  %v177 = vld [vmem:[%s1 + $0x140] sm:$0xff]
  %v178 = vld [vmem:[%s1 + $0x148] sm:$0xff]
  %v179 = vld [vmem:[%s1 + $0x150] sm:$0xff]
  %v180 = vld [vmem:[%s1 + $0x158] sm:$0xff]
  %v181 = vld [vmem:[%s1 + $0x160] sm:$0xff]
  %v182 = vld [vmem:[%s1 + $0x168] sm:$0xff]
  %v183 = vld [vmem:[%s1 + $0x170] sm:$0xff]
  %v184 = vld [vmem:[%s1 + $0x178] sm:$0xff]
  %v186 = vlaneseq
  %v187 = vshrl.u32 %v186, 7
  %v188 = vsub.s32 0, %v187
  %v189 = vrot.slane %v112, %v188
  %v190 = vlaneseq
  %v191 = vshrl.u32 %v190, 7
  %v192 = vsub.s32 1, %v191
  %v193 = vrot.slane %v112, %v192
  %v244 = vunpack.c.l.b16 %v137
  %v245 = vunpack.c.h.b16 %v137
  %v246 = vunpack.c.l.b16 %v138
  %v247 = vunpack.c.h.b16 %v138
  %v248 = vunpack.c.l.b16 %v139
  %v249 = vunpack.c.h.b16 %v139
  %v250 = vunpack.c.l.b16 %v140
  %v251 = vunpack.c.h.b16 %v140
  %v252 = vunpack.c.l.b16 %v141
  %v253 = vunpack.c.h.b16 %v141
  %v254 = vunpack.c.l.b16 %v142
  %v255 = vunpack.c.h.b16 %v142
  %v256 = vunpack.c.l.b16 %v143
  %v257 = vunpack.c.h.b16 %v143
  %v258 = vunpack.c.l.b16 %v144
  %v259 = vunpack.c.h.b16 %v144
  %v260 = vunpack.c.l.b16 %v145
  %v261 = vunpack.c.h.b16 %v145
  %v262 = vunpack.c.l.b16 %v146
  %v263 = vunpack.c.h.b16 %v146
  %v264 = vunpack.c.l.b16 %v147
  %v265 = vunpack.c.h.b16 %v147
  %v266 = vunpack.c.l.b16 %v148
  %v267 = vunpack.c.h.b16 %v148
  %v268 = vunpack.c.l.b16 %v149
  %v269 = vunpack.c.h.b16 %v149
  %v270 = vunpack.c.l.b16 %v150
  %v271 = vunpack.c.h.b16 %v150
  %v272 = vunpack.c.l.b16 %v151
  %v273 = vunpack.c.h.b16 %v151
  %v274 = vunpack.c.l.b16 %v152
  %v275 = vunpack.c.h.b16 %v152
  %v276 = vunpack.c.l.b16 %v153
  %v277 = vunpack.c.h.b16 %v153
  %v278 = vunpack.c.l.b16 %v154
  %v279 = vunpack.c.h.b16 %v154
  %v280 = vunpack.c.l.b16 %v155
  %v281 = vunpack.c.h.b16 %v155
  %v282 = vunpack.c.l.b16 %v156
  %v283 = vunpack.c.h.b16 %v156
  %v284 = vunpack.c.l.b16 %v157
  %v285 = vunpack.c.h.b16 %v157
  %v286 = vunpack.c.l.b16 %v158
  %v287 = vunpack.c.h.b16 %v158
  %v288 = vunpack.c.l.b16 %v159
  %v289 = vunpack.c.h.b16 %v159
  %v290 = vunpack.c.l.b16 %v160
  %v291 = vunpack.c.h.b16 %v160
  %v292 = vunpack.c.l.b16 %v161
  %v293 = vunpack.c.h.b16 %v161
  %v294 = vunpack.c.l.b16 %v162
  %v295 = vunpack.c.h.b16 %v162
  %v296 = vunpack.c.l.b16 %v163
  %v297 = vunpack.c.h.b16 %v163
  %v298 = vunpack.c.l.b16 %v164
  %v299 = vunpack.c.h.b16 %v164
  %v300 = vunpack.c.l.b16 %v165
  %v301 = vunpack.c.h.b16 %v165
  %v302 = vunpack.c.l.b16 %v166
  %v303 = vunpack.c.h.b16 %v166
  %v304 = vunpack.c.l.b16 %v167
  %v305 = vunpack.c.h.b16 %v167
  %v306 = vunpack.c.l.b16 %v168
  %v307 = vunpack.c.h.b16 %v168
  %v308 = vunpack.c.l.b16 %v169
  %v309 = vunpack.c.h.b16 %v169
  %v310 = vunpack.c.l.b16 %v170
  %v311 = vunpack.c.h.b16 %v170
  %v312 = vunpack.c.l.b16 %v171
  %v313 = vunpack.c.h.b16 %v171
  %v314 = vunpack.c.l.b16 %v172
  %v315 = vunpack.c.h.b16 %v172
  %v316 = vunpack.c.l.b16 %v173
  %v317 = vunpack.c.h.b16 %v173
  %v318 = vunpack.c.l.b16 %v174
  %v319 = vunpack.c.h.b16 %v174
  %v320 = vunpack.c.l.b16 %v175
  %v321 = vunpack.c.h.b16 %v175
  %v322 = vunpack.c.l.b16 %v176
  %v323 = vunpack.c.h.b16 %v176
  %v324 = vunpack.c.l.b16 %v177
  %v325 = vunpack.c.h.b16 %v177
  %v326 = vunpack.c.l.b16 %v178
  %v327 = vunpack.c.h.b16 %v178
  %v328 = vunpack.c.l.b16 %v179
  %v329 = vunpack.c.h.b16 %v179
  %v330 = vunpack.c.l.b16 %v180
  %v331 = vunpack.c.h.b16 %v180
  %v332 = vunpack.c.l.b16 %v181
  %v333 = vunpack.c.h.b16 %v181
  %v334 = vunpack.c.l.b16 %v182
  %v335 = vunpack.c.h.b16 %v182
  %v336 = vunpack.c.l.b16 %v183
  %v337 = vunpack.c.h.b16 %v183
  %v338 = vunpack.c.l.b16 %v184
  %v339 = vunpack.c.h.b16 %v184
  %v340 = vpack.c.b16 %v246, %v244
  %v341 = vpack.c.b16 %v247, %v245
  %v342 = vpack.c.b16 %v250, %v248
  %v343 = vpack.c.b16 %v251, %v249
  %v344 = vpack.c.b16 %v254, %v252
  %v345 = vpack.c.b16 %v255, %v253
  %v346 = vpack.c.b16 %v258, %v256
  %v347 = vpack.c.b16 %v259, %v257
  %v348 = vpack.c.b16 %v262, %v260
  %v349 = vpack.c.b16 %v263, %v261
  %v350 = vpack.c.b16 %v266, %v264
  %v351 = vpack.c.b16 %v267, %v265
  %v352 = vpack.c.b16 %v270, %v268
  %v353 = vpack.c.b16 %v271, %v269
  %v354 = vpack.c.b16 %v274, %v272
  %v355 = vpack.c.b16 %v275, %v273
  %v356 = vpack.c.b16 %v278, %v276
  %v357 = vpack.c.b16 %v279, %v277
  %v358 = vpack.c.b16 %v282, %v280
  %v359 = vpack.c.b16 %v283, %v281
  %v360 = vpack.c.b16 %v286, %v284
  %v361 = vpack.c.b16 %v287, %v285
  %v362 = vpack.c.b16 %v290, %v288
  %v363 = vpack.c.b16 %v291, %v289
  %v364 = vpack.c.b16 %v294, %v292
  %v365 = vpack.c.b16 %v295, %v293
  %v366 = vpack.c.b16 %v298, %v296
  %v367 = vpack.c.b16 %v299, %v297
  %v368 = vpack.c.b16 %v302, %v300
  %v369 = vpack.c.b16 %v303, %v301
  %v370 = vpack.c.b16 %v306, %v304
  %v371 = vpack.c.b16 %v307, %v305
  %v372 = vpack.c.b16 %v310, %v308
  %v373 = vpack.c.b16 %v311, %v309
  %v374 = vpack.c.b16 %v314, %v312
  %v375 = vpack.c.b16 %v315, %v313
  %v376 = vpack.c.b16 %v318, %v316
  %v377 = vpack.c.b16 %v319, %v317
  %v378 = vpack.c.b16 %v322, %v320
  %v379 = vpack.c.b16 %v323, %v321
  %v380 = vpack.c.b16 %v326, %v324
  %v381 = vpack.c.b16 %v327, %v325
  %v382 = vpack.c.b16 %v330, %v328
  %v383 = vpack.c.b16 %v331, %v329
  %v384 = vpack.c.b16 %v334, %v332
  %v385 = vpack.c.b16 %v335, %v333
  %v386 = vpack.c.b16 %v338, %v336
  %v387 = vpack.c.b16 %v339, %v337
  %436 = vmatprep.subr.bf16.mxu0 %v341
  %437 = vmatpush1.bf16.msra.mxu0 %v340
  %438 = vmatprep.subr.bf16.mxu0 %v343
  %439 = vmatpush1.bf16.msra.mxu0 %v342
  %440 = vmatprep.subr.bf16.mxu0 %v345
  %441 = vmatpush1.bf16.msra.mxu0 %v344
  %442 = vmatprep.subr.bf16.mxu0 %v347
  %443 = vmatpush1.bf16.msra.mxu0 %v346
  %444 = vmatprep.subr.bf16.mxu0 %v349
  %445 = vmatpush1.bf16.msra.mxu0 %v348
  %446 = vmatprep.subr.bf16.mxu0 %v351
  %447 = vmatpush1.bf16.msra.mxu0 %v350
  %448 = vmatprep.subr.bf16.mxu0 %v353
  %449 = vmatpush1.bf16.msra.mxu0 %v352
  %450 = vmatprep.subr.bf16.mxu0 %v355
  %451 = vmatpush1.bf16.msra.mxu0 %v354
  %452 = vmatprep.subr.bf16.mxu0 %v357
  %453 = vmatpush1.bf16.msra.mxu0 %v356
  %454 = vmatprep.subr.bf16.mxu0 %v359
  %455 = vmatpush1.bf16.msra.mxu0 %v358
  %456 = vmatprep.subr.bf16.mxu0 %v361
  %457 = vmatpush1.bf16.msra.mxu0 %v360
  %458 = vmatprep.subr.bf16.mxu0 %v363
  %459 = vmatpush1.bf16.msra.mxu0 %v362
  %460 = vmatprep.subr.bf16.mxu0 %v365
  %461 = vmatpush1.bf16.msra.mxu0 %v364
  %462 = vmatprep.subr.bf16.mxu0 %v367
  %463 = vmatpush1.bf16.msra.mxu0 %v366
  %464 = vmatprep.subr.bf16.mxu0 %v369
  %465 = vmatpush1.bf16.msra.mxu0 %v368
  %466 = vmatprep.subr.bf16.mxu0 %v371
  %467 = vmatpush1.bf16.msra.mxu0 %v370
  %468 = vmatprep.mubr.bf16.mxu0 %v114
  %469 = vmatmul.mubr.bf16.gmra.mrb[0].mxu0 %v113
  %v470 = vpop.f32.mrb[0].mxu0
  %v471 = vadd.f32 %v189, %v470
  %v472 = vpop.f32.mrb[0].mxu0
  %v473 = vadd.f32 %v193, %v472
  %v474 = vpop.f32.mrb[0].mxu0
  %v475 = vadd.f32 %v189, %v474
  %v476 = vpop.f32.mrb[0].mxu0
  %v477 = vadd.f32 %v193, %v476
  %478 = vmatprep.mubr.bf16.mxu0 %v117
  %479 = vmatmul.mubr.bf16.gmra.mrb[0].mxu0 %v116
  %v480 = vpop.f32.mrb[0].mxu0
  %v481 = vadd.f32 %v189, %v480
  %v482 = vpop.f32.mrb[0].mxu0
  %v483 = vadd.f32 %v193, %v482
  %v484 = vpop.f32.mrb[0].mxu0
  %v485 = vadd.f32 %v189, %v484
  %v486 = vpop.f32.mrb[0].mxu0
  %v487 = vadd.f32 %v193, %v486
  %488 = vmatprep.mubr.bf16.mxu0 %v120
  %489 = vmatmul.mubr.bf16.gmra.mrb[0].mxu0 %v119
  %v490 = vpop.f32.mrb[0].mxu0
  %v491 = vadd.f32 %v189, %v490
  %v492 = vpop.f32.mrb[0].mxu0
  %v493 = vadd.f32 %v193, %v492
  %v494 = vpop.f32.mrb[0].mxu0
  %v495 = vadd.f32 %v189, %v494
  %v496 = vpop.f32.mrb[0].mxu0
  %v497 = vadd.f32 %v193, %v496
  %498 = vmatprep.mubr.bf16.mxu0 %v123
  %499 = vmatmul.mubr.bf16.gmra.mrb[0].mxu0 %v122
  %v500 = vpop.f32.mrb[0].mxu0
  %v501 = vadd.f32 %v189, %v500
  %v502 = vpop.f32.mrb[0].mxu0
  %v503 = vadd.f32 %v193, %v502
  %v504 = vpop.f32.mrb[0].mxu0
  %v505 = vadd.f32 %v189, %v504
  %v506 = vpop.f32.mrb[0].mxu0
  %v507 = vadd.f32 %v193, %v506
  %508 = vmatprep.mubr.bf16.mxu0 %v126
  %509 = vmatmul.mubr.bf16.gmra.mrb[0].mxu0 %v125
  %v510 = vpop.f32.mrb[0].mxu0
  %v511 = vadd.f32 %v189, %v510
  %v512 = vpop.f32.mrb[0].mxu0
  %v513 = vadd.f32 %v193, %v512
  %v514 = vpop.f32.mrb[0].mxu0
  %v515 = vadd.f32 %v189, %v514
  %v516 = vpop.f32.mrb[0].mxu0
  %v517 = vadd.f32 %v193, %v516
  %518 = vmatprep.mubr.bf16.mxu0 %v129
  %519 = vmatmul.mubr.bf16.gmra.mrb[0].mxu0 %v128
  %v520 = vpop.f32.mrb[0].mxu0
  %v521 = vadd.f32 %v189, %v520
  %v522 = vpop.f32.mrb[0].mxu0
  %v523 = vadd.f32 %v193, %v522
  %v524 = vpop.f32.mrb[0].mxu0
  %v525 = vadd.f32 %v189, %v524
  %v526 = vpop.f32.mrb[0].mxu0
  %v527 = vadd.f32 %v193, %v526
  %528 = vmatprep.mubr.bf16.mxu0 %v132
  %529 = vmatmul.mubr.bf16.gmra.mrb[0].mxu0 %v131
  %v530 = vpop.f32.mrb[0].mxu0
  %v531 = vadd.f32 %v189, %v530
  %v532 = vpop.f32.mrb[0].mxu0
  %v533 = vadd.f32 %v193, %v532
  %v534 = vpop.f32.mrb[0].mxu0
  %v535 = vadd.f32 %v189, %v534
  %v536 = vpop.f32.mrb[0].mxu0
  %v537 = vadd.f32 %v193, %v536
  %538 = vmatprep.mubr.bf16.mxu0 %v135
  %539 = vmatmul.mubr.bf16.gmra.mrb[0].mxu0 %v134
  %v540 = vpop.f32.mrb[0].mxu0
  %v541 = vadd.f32 %v189, %v540
  %v542 = vpop.f32.mrb[0].mxu0
  %v543 = vadd.f32 %v193, %v542
  %v544 = vpop.f32.mrb[0].mxu0
  %v545 = vadd.f32 %v189, %v544
  %v546 = vpop.f32.mrb[0].mxu0
  %v547 = vadd.f32 %v193, %v546
  %548 = vdwg.mxu0
  %549 = vmatprep.subr.bf16.mxu0 %v373
  %550 = vmatpush1.bf16.msra.mxu0 %v372
  %551 = vmatprep.subr.bf16.mxu0 %v375
  %552 = vmatpush1.bf16.msra.mxu0 %v374
  %553 = vmatprep.subr.bf16.mxu0 %v377
  %554 = vmatpush1.bf16.msra.mxu0 %v376
  %555 = vmatprep.subr.bf16.mxu0 %v379
  %556 = vmatpush1.bf16.msra.mxu0 %v378
  %557 = vmatprep.subr.bf16.mxu0 %v381
  %558 = vmatpush1.bf16.msra.mxu0 %v380
  %559 = vmatprep.subr.bf16.mxu0 %v383
  %560 = vmatpush1.bf16.msra.mxu0 %v382
  %561 = vmatprep.subr.bf16.mxu0 %v385
  %562 = vmatpush1.bf16.msra.mxu0 %v384
  %563 = vmatprep.subr.bf16.mxu0 %v387
  %564 = vmatpush1.bf16.msra.mxu0 %v386
  %565 = vmatprep.subr.bf16.mxu0 0
  %566 = vmatpush1.bf16.msra.mxu0 0
  %567 = vmatprep.subr.bf16.mxu0 0
  %568 = vmatpush1.bf16.msra.mxu0 0
  %569 = vmatprep.subr.bf16.mxu0 0
  %570 = vmatpush1.bf16.msra.mxu0 0
  %571 = vmatprep.subr.bf16.mxu0 0
  %572 = vmatpush1.bf16.msra.mxu0 0
  %573 = vmatprep.subr.bf16.mxu0 0
  %574 = vmatpush1.bf16.msra.mxu0 0
  %575 = vmatprep.subr.bf16.mxu0 0
  %576 = vmatpush1.bf16.msra.mxu0 0
  %577 = vmatprep.subr.bf16.mxu0 0
  %578 = vmatpush1.bf16.msra.mxu0 0
  %579 = vmatprep.subr.bf16.mxu0 0
  %580 = vmatpush1.bf16.msra.mxu0 0
  %581 = vmatprep.mubr.bf16.mxu0 0
  %582 = vmatmul.mubr.bf16.gmra.mrb[0].mxu0 %v115
  %v583 = vpop.f32.mrb[0].mxu0
  %v584 = vadd.f32 %v471, %v583
  %v585 = vpop.f32.mrb[0].mxu0
  %v586 = vadd.f32 %v473, %v585
  %v587 = vpop.f32.mrb[0].mxu0
  %v588 = vadd.f32 %v475, %v587
  %v589 = vpop.f32.mrb[0].mxu0
  %v590 = vadd.f32 %v477, %v589
  %591 = vmatprep.mubr.bf16.mxu0 0
  %592 = vmatmul.mubr.bf16.gmra.mrb[0].mxu0 %v118
  %v593 = vpop.f32.mrb[0].mxu0
  %v594 = vadd.f32 %v481, %v593
  %v595 = vpop.f32.mrb[0].mxu0
  %v596 = vadd.f32 %v483, %v595
  %v597 = vpop.f32.mrb[0].mxu0
  %v598 = vadd.f32 %v485, %v597
  %v599 = vpop.f32.mrb[0].mxu0
  %v600 = vadd.f32 %v487, %v599
  %601 = vmatprep.mubr.bf16.mxu0 0
  %602 = vmatmul.mubr.bf16.gmra.mrb[0].mxu0 %v121
  %v603 = vpop.f32.mrb[0].mxu0
  %v604 = vadd.f32 %v491, %v603
  %v605 = vpop.f32.mrb[0].mxu0
  %v606 = vadd.f32 %v493, %v605
  %v607 = vpop.f32.mrb[0].mxu0
  %v608 = vadd.f32 %v495, %v607
  %v609 = vpop.f32.mrb[0].mxu0
  %v610 = vadd.f32 %v497, %v609
  %611 = vmatprep.mubr.bf16.mxu0 0
  %612 = vmatmul.mubr.bf16.gmra.mrb[0].mxu0 %v124
  %v613 = vpop.f32.mrb[0].mxu0
  %v614 = vadd.f32 %v501, %v613
  %v615 = vpop.f32.mrb[0].mxu0
  %v616 = vadd.f32 %v503, %v615
  %v617 = vpop.f32.mrb[0].mxu0
  %v618 = vadd.f32 %v505, %v617
  %v619 = vpop.f32.mrb[0].mxu0
  %v620 = vadd.f32 %v507, %v619
  %621 = vmatprep.mubr.bf16.mxu0 0
  %622 = vmatmul.mubr.bf16.gmra.mrb[0].mxu0 %v127
  %v623 = vpop.f32.mrb[0].mxu0
  %v624 = vadd.f32 %v511, %v623
  %v625 = vpop.f32.mrb[0].mxu0
  %v626 = vadd.f32 %v513, %v625
  %v627 = vpop.f32.mrb[0].mxu0
  %v628 = vadd.f32 %v515, %v627
  %v629 = vpop.f32.mrb[0].mxu0
  %v630 = vadd.f32 %v517, %v629
  %631 = vmatprep.mubr.bf16.mxu0 0
  %632 = vmatmul.mubr.bf16.gmra.mrb[0].mxu0 %v130
  %v633 = vpop.f32.mrb[0].mxu0
  %v634 = vadd.f32 %v521, %v633
  %v635 = vpop.f32.mrb[0].mxu0
  %v636 = vadd.f32 %v523, %v635
  %v637 = vpop.f32.mrb[0].mxu0
  %v638 = vadd.f32 %v525, %v637
  %v639 = vpop.f32.mrb[0].mxu0
  %v640 = vadd.f32 %v527, %v639
  %641 = vmatprep.mubr.bf16.mxu0 0
  %642 = vmatmul.mubr.bf16.gmra.mrb[0].mxu0 %v133
  %v643 = vpop.f32.mrb[0].mxu0
  %v644 = vadd.f32 %v531, %v643
  %v645 = vpop.f32.mrb[0].mxu0
  %v646 = vadd.f32 %v533, %v645
  %v647 = vpop.f32.mrb[0].mxu0
  %v648 = vadd.f32 %v535, %v647
  %v649 = vpop.f32.mrb[0].mxu0
  %v650 = vadd.f32 %v537, %v649
  %651 = vmatprep.mubr.bf16.mxu0 0
  %652 = vmatmul.mubr.bf16.gmra.mrb[0].mxu0 %v136
  %v653 = vpop.f32.mrb[0].mxu0
  %v654 = vadd.f32 %v541, %v653
  %v655 = vpop.f32.mrb[0].mxu0
  %v656 = vadd.f32 %v543, %v655
  %v657 = vpop.f32.mrb[0].mxu0
  %v658 = vadd.f32 %v545, %v657
  %v659 = vpop.f32.mrb[0].mxu0
  %v660 = vadd.f32 %v547, %v659
  %661 = vdwg.mxu0
  %662 = vst [vmem:[#allocation3] sm:$0xff] %v584
  %663 = vst [vmem:[#allocation3 + $0x8] sm:$0xff] %v586
  %664 = vst [vmem:[#allocation3 + $0x10] sm:$0xff] %v588
  %665 = vst [vmem:[#allocation3 + $0x18] sm:$0xff] %v590
  %666 = vst [vmem:[#allocation3 + $0x20] sm:$0xff] %v594
  %667 = vst [vmem:[#allocation3 + $0x28] sm:$0xff] %v596
  %668 = vst [vmem:[#allocation3 + $0x30] sm:$0xff] %v598
  %669 = vst [vmem:[#allocation3 + $0x38] sm:$0xff] %v600
  %670 = vst [vmem:[#allocation3 + $0x40] sm:$0xff] %v604
  %671 = vst [vmem:[#allocation3 + $0x48] sm:$0xff] %v606
  %672 = vst [vmem:[#allocation3 + $0x50] sm:$0xff] %v608
  %673 = vst [vmem:[#allocation3 + $0x58] sm:$0xff] %v610
  %674 = vst [vmem:[#allocation3 + $0x60] sm:$0xff] %v614
  %675 = vst [vmem:[#allocation3 + $0x68] sm:$0xff] %v616
  %676 = vst [vmem:[#allocation3 + $0x70] sm:$0xff] %v618
  %677 = vst [vmem:[#allocation3 + $0x78] sm:$0xff] %v620
  %678 = vst [vmem:[#allocation3 + $0x80] sm:$0xff] %v624
  %679 = vst [vmem:[#allocation3 + $0x88] sm:$0xff] %v626
  %680 = vst [vmem:[#allocation3 + $0x90] sm:$0xff] %v628
  %681 = vst [vmem:[#allocation3 + $0x98] sm:$0xff] %v630
  %682 = vst [vmem:[#allocation3 + $0xa0] sm:$0xff] %v634
  %683 = vst [vmem:[#allocation3 + $0xa8] sm:$0xff] %v636
  %684 = vst [vmem:[#allocation3 + $0xb0] sm:$0xff] %v638
  %685 = vst [vmem:[#allocation3 + $0xb8] sm:$0xff] %v640
  %686 = vst [vmem:[#allocation3 + $0xc0] sm:$0xff] %v644
  %687 = vst [vmem:[#allocation3 + $0xc8] sm:$0xff] %v646
  %688 = vst [vmem:[#allocation3 + $0xd0] sm:$0xff] %v648
  %689 = vst [vmem:[#allocation3 + $0xd8] sm:$0xff] %v650
  %690 = vst [vmem:[#allocation3 + $0xe0] sm:$0xff] %v654
  %691 = vst [vmem:[#allocation3 + $0xe8] sm:$0xff] %v656
  %692 = vst [vmem:[#allocation3 + $0xf0] sm:$0xff] %v658
  %693 = vst [vmem:[#allocation3 + $0xf8] sm:$0xff] %v660
  %v694 = vld [vmem:[%s0] sm:$0xff]
  %v695 = vld [vmem:[%s0 + $0x8] sm:$0xff]
  %v696 = vld [vmem:[%s51] sm:$0xff]
  %v697 = vld [vmem:[%s51 + $0x8] sm:$0xff]
  %v698 = vmul.f32 %v694, 0.0
  %v699 = vmul.f32 %v695, 0.0
  %700 = vadd.xlane.f32.xlu0 %v698
  %v701 = vpop.xlane.xlu0 %700
  %702 = vadd.xlane.f32.xlu0 %v699
  %v703 = vpop.xlane.xlu0 %702
  %v704 = vmul.f32 %v701, 0.17677669
  %v705 = vmul.f32 %v703, 0.17677669
  %v706 = vmul.f32 %v696, 0.0
  %v707 = vmul.f32 %v697, 0.0
  %708 = vadd.xlane.f32.xlu0 %v706
  %v709 = vpop.xlane.xlu0 %708
  %710 = vadd.xlane.f32.xlu0 %v707
  %v711 = vpop.xlane.xlu0 %710
  %v712 = vmul.f32 %v709, 0.17677669
  %v713 = vmul.f32 %v711, 0.17677669
  %714 = vadd.xlane.f32.xlu0 0.0
  %v715 = vpop.xlane.xlu0 %714
  %v716 = vmul.f32 %v715, 0.17677669
  %v717 = vmax.f32 %v704, %v712
  %v718 = vmax.f32 %v705, %v713
  %v719 = vmax.f32 %v717, %v716
  %v720 = vmax.f32 %v718, %v716
  %v721 = vsub.f32 %v704, %v719
  %v722 = vsub.f32 %v705, %v720
  %v723 = vmul.f32 %v721, 1.442695
  %v724 = vpow.pop %v723
  %v725 = vmul.f32 %v722, 1.442695
  %v726 = vpow.pop %v725
  %v727 = vsub.f32 %v712, %v719
  %v728 = vsub.f32 %v713, %v720
  %v729 = vmul.f32 %v727, 1.442695
  %v730 = vpow.pop %v729
  %v731 = vmul.f32 %v728, 1.442695
  %v732 = vpow.pop %v731
  %v733 = vsub.f32 %v716, %v719
  %v734 = vsub.f32 %v716, %v720
  %v735 = vmul.f32 %v733, 1.442695
  %v736 = vpow.pop %v735
  %v737 = vmul.f32 %v734, 1.442695
  %v738 = vpow.pop %v737
  %v739 = vadd.f32 %v724, %v730
  %v740 = vadd.f32 %v726, %v732
  %v741 = vadd.f32 %v739, %v736
  %v742 = vadd.f32 %v740, %v738
  %v743 = vrcp.pop %v741
  %v744 = vmul.f32 1.0, %v743
  %v745 = vrcp.pop %v742
  %v746 = vmul.f32 1.0, %v745
  %v747 = vmul.f32 %v724, %v744
  %v748 = vmul.f32 %v726, %v746
  %v749 = vmul.f32 %v747, %v694
  %v750 = vmul.f32 %v748, %v695
  %v751 = vmul.f32 %v730, %v744
  %v752 = vmul.f32 %v732, %v746
  %v753 = vmul.f32 %v751, %v696
  %v754 = vmul.f32 %v752, %v697
  %v755 = vadd.f32 %v749, %v753
  %v756 = vadd.f32 %v750, %v754
  %v757 = vmul.f32 %v736, %v744
  %v758 = vmul.f32 %v738, %v746
  %v759 = vmul.f32 %v757, 0.0
  %v760 = vmul.f32 %v758, 0.0
  %v761 = vadd.f32 %v755, %v759
  %v762 = vadd.f32 %v756, %v760
  %v763 = vld [vmem:[#allocation3] sm:$0xff]
  %v764 = vld [vmem:[#allocation3 + $0x8] sm:$0xff]
  %v765 = vld [vmem:[#allocation3 + $0x10] sm:$0xff]
  %v766 = vld [vmem:[#allocation3 + $0x18] sm:$0xff]
  %v767 = vld [vmem:[%s2] sm:$0xff]
  %v768 = vld [vmem:[%s2 + $0x8] sm:$0xff]
  %v769 = vld [vmem:[%s2 + $0x10] sm:$0xff]
  %v770 = vld [vmem:[%s2 + $0x18] sm:$0xff]
  %v771 = vld [vmem:[%s2 + $0x20] sm:$0xff]
  %v772 = vld [vmem:[%s2 + $0x28] sm:$0xff]
  %v773 = vld [vmem:[%s2 + $0x30] sm:$0xff]
  %v774 = vld [vmem:[%s2 + $0x38] sm:$0xff]
  %v775 = vld [vmem:[%s2 + $0x40] sm:$0xff]
  %v776 = vld [vmem:[%s2 + $0x48] sm:$0xff]
  %v777 = vld [vmem:[%s2 + $0x50] sm:$0xff]
  %v778 = vld [vmem:[%s2 + $0x58] sm:$0xff]
  %v779 = vld [vmem:[%s2 + $0x60] sm:$0xff]
  %v780 = vld [vmem:[%s2 + $0x68] sm:$0xff]
  %v781 = vld [vmem:[%s2 + $0x70] sm:$0xff]
  %v782 = vld [vmem:[%s2 + $0x78] sm:$0xff]
  %783 = vmatprep.subr.mxu0 0.0
  %784 = vmatpush1.msra.mxu0 %v767
  %785 = vmatprep.subr.mxu0 0.0
  %786 = vmatpush1.msra.mxu0 %v768
  %787 = vmatprep.subr.mxu0 0.0
  %788 = vmatpush1.msra.mxu0 %v769
  %789 = vmatprep.subr.mxu0 0.0
  %790 = vmatpush1.msra.mxu0 %v770
  %791 = vmatprep.subr.mxu0 0.0
  %792 = vmatpush1.msra.mxu0 %v771
  %793 = vmatprep.subr.mxu0 0.0
  %794 = vmatpush1.msra.mxu0 %v772
  %795 = vmatprep.subr.mxu0 0.0
  %796 = vmatpush1.msra.mxu0 %v773
  %797 = vmatprep.subr.mxu0 0.0
  %798 = vmatpush1.msra.mxu0 %v774
  %799 = vmatprep.subr.mxu0 0.0
  %800 = vmatpush1.msra.mxu0 %v775
  %801 = vmatprep.subr.mxu0 0.0
  %802 = vmatpush1.msra.mxu0 %v776
  %803 = vmatprep.subr.mxu0 0.0
  %804 = vmatpush1.msra.mxu0 %v777
  %805 = vmatprep.subr.mxu0 0.0
  %806 = vmatpush1.msra.mxu0 %v778
  %807 = vmatprep.subr.mxu0 0.0
  %808 = vmatpush1.msra.mxu0 %v779
  %809 = vmatprep.subr.mxu0 0.0
  %810 = vmatpush1.msra.mxu0 %v780
  %811 = vmatprep.subr.mxu0 0.0
  %812 = vmatpush1.msra.mxu0 %v781
  %813 = vmatprep.subr.mxu0 0.0
  %814 = vmatpush1.msra.mxu0 %v782
  %815 = vmatprep.subr.mxu0 0.0
  %816 = vmatpush1.msra.mxu0 0.0
  %817 = vmatprep.subr.mxu0 0.0
  %818 = vmatpush1.msra.mxu0 0.0
  %819 = vmatprep.subr.mxu0 0.0
  %820 = vmatpush1.msra.mxu0 0.0
  %821 = vmatprep.subr.mxu0 0.0
  %822 = vmatpush1.msra.mxu0 0.0
  %823 = vmatprep.subr.mxu0 0.0
  %824 = vmatpush1.msra.mxu0 0.0
  %825 = vmatprep.subr.mxu0 0.0
  %826 = vmatpush1.msra.mxu0 0.0
  %827 = vmatprep.subr.mxu0 0.0
  %828 = vmatpush1.msra.mxu0 0.0
  %829 = vmatprep.subr.mxu0 0.0
  %830 = vmatpush1.msra.mxu0 0.0
  %831 = vmatprep.subr.mxu0 0.0
  %832 = vmatpush1.msra.mxu0 0.0
  %833 = vmatprep.subr.mxu0 0.0
  %834 = vmatpush1.msra.mxu0 0.0
  %835 = vmatprep.subr.mxu0 0.0
  %836 = vmatpush1.msra.mxu0 0.0
  %837 = vmatprep.subr.mxu0 0.0
  %838 = vmatpush1.msra.mxu0 0.0
  %839 = vmatprep.subr.mxu0 0.0
  %840 = vmatpush1.msra.mxu0 0.0
  %841 = vmatprep.subr.mxu0 0.0
  %842 = vmatpush1.msra.mxu0 0.0
  %843 = vmatprep.subr.mxu0 0.0
  %844 = vmatpush1.msra.mxu0 0.0
  %845 = vmatprep.subr.mxu0 0.0
  %846 = vmatpush1.msra.mxu0 0.0
  %847 = vmatprep.mubr.f32.mxu0 0.0
  %848 = vmatmul.mubr.f32.gmra.mrb[0].mxu0 %v761
  %v849 = vpop.f32.mrb[0].mxu0
  %v850 = vadd.f32 0.0, %v849
  %v851 = vpop.f32.mrb[0].mxu0
  %852 = vmatprep.mubr.f32.mxu0 0.0
  %853 = vmatmul.mubr.f32.gmra.mrb[0].mxu0 %v762
  %v854 = vpop.f32.mrb[0].mxu0
  %v855 = vadd.f32 0.0, %v854
  %v856 = vpop.f32.mrb[0].mxu0
  %857 = vdwg.mxu0
  %v858 = vadd.f32 %v764, %v850
  %v859 = vadd.f32 %v766, %v855
  %v860 = vxor.u32 %v858, 2147483648
  %v861 = vxor.u32 %v859, 2147483648
  %v862 = vmul.f32 %v860, 1.442695
  %v863 = vpow.pop %v862
  %v864 = vmul.f32 %v861, 1.442695
  %v865 = vpow.pop %v864
  %v866 = vadd.f32 %v863, 1.0
  %v867 = vadd.f32 %v865, 1.0
  %v868 = vrcp.pop %v866
  %v869 = vmul.f32 1.0, %v868
  %v870 = vrcp.pop %v867
  %v871 = vmul.f32 1.0, %v870
  %v872 = vmul.f32 %v761, %v869
  %v873 = vmul.f32 %v762, %v871
  %v874 = vadd.f32 %v763, %v872
  %v875 = vadd.f32 %v765, %v873
  %876 = vst [vmem:[%s4] sm:$0xff] %v874
  %877 = vst [vmem:[%s4 + $0x8] sm:$0xff] %v875
  %v878 = vld [vmem:[%s0] sm:$0xff]
  %v879 = vld [vmem:[%s0 + $0x8] sm:$0xff]
  %v880 = vld [vmem:[%s51] sm:$0xff]
  %v881 = vld [vmem:[%s51 + $0x8] sm:$0xff]
  %v882 = vld [vmem:[%s84] sm:$0xff]
  %v883 = vld [vmem:[%s84 + $0x8] sm:$0xff]
  %v884 = vmul.f32 %v878, %v874
  %v885 = vmul.f32 %v879, %v875
  %886 = vadd.xlane.f32.xlu0 %v884
  %v887 = vpop.xlane.xlu0 %886
  %888 = vadd.xlane.f32.xlu0 %v885
  %v889 = vpop.xlane.xlu0 %888
  %v890 = vmul.f32 %v887, 0.17677669
  %v891 = vmul.f32 %v889, 0.17677669
  %v892 = vmul.f32 %v880, %v874
  %v893 = vmul.f32 %v881, %v875
  %894 = vadd.xlane.f32.xlu0 %v892
  %v895 = vpop.xlane.xlu0 %894
  %896 = vadd.xlane.f32.xlu0 %v893
  %v897 = vpop.xlane.xlu0 %896
  %v898 = vmul.f32 %v895, 0.17677669
  %v899 = vmul.f32 %v897, 0.17677669
  %v900 = vmul.f32 %v882, %v874
  %v901 = vmul.f32 %v883, %v875
  %902 = vadd.xlane.f32.xlu0 %v900
  %v903 = vpop.xlane.xlu0 %902
  %904 = vadd.xlane.f32.xlu0 %v901
  %v905 = vpop.xlane.xlu0 %904
  %v906 = vmul.f32 %v903, 0.17677669
  %v907 = vmul.f32 %v905, 0.17677669
  %v908 = vmax.f32 %v890, %v898
  %v909 = vmax.f32 %v891, %v899
  %v910 = vmax.f32 %v908, %v906
  %v911 = vmax.f32 %v909, %v907
  %v912 = vsub.f32 %v890, %v910
  %v913 = vsub.f32 %v891, %v911
  %v914 = vmul.f32 %v912, 1.442695
  %v915 = vpow.pop %v914
  %v916 = vmul.f32 %v913, 1.442695
  %v917 = vpow.pop %v916
  %v918 = vsub.f32 %v898, %v910
  %v919 = vsub.f32 %v899, %v911
  %v920 = vmul.f32 %v918, 1.442695
  %v921 = vpow.pop %v920
  %v922 = vmul.f32 %v919, 1.442695
  %v923 = vpow.pop %v922
  %v924 = vsub.f32 %v906, %v910
  %v925 = vsub.f32 %v907, %v911
  %v926 = vmul.f32 %v924, 1.442695
  %v927 = vpow.pop %v926
  %v928 = vmul.f32 %v925, 1.442695
  %v929 = vpow.pop %v928
  %v930 = vadd.f32 %v915, %v921
  %v931 = vadd.f32 %v917, %v923
  %v932 = vadd.f32 %v930, %v927
  %v933 = vadd.f32 %v931, %v929
  %v934 = vrcp.pop %v932
  %v935 = vmul.f32 1.0, %v934
  %v936 = vrcp.pop %v933
  %v937 = vmul.f32 1.0, %v936
  %v938 = vmul.f32 %v915, %v935
  %v939 = vmul.f32 %v917, %v937
  %v940 = vmul.f32 %v938, %v878
  %v941 = vmul.f32 %v939, %v879
  %v942 = vmul.f32 %v921, %v935
  %v943 = vmul.f32 %v923, %v937
  %v944 = vmul.f32 %v942, %v880
  %v945 = vmul.f32 %v943, %v881
  %v946 = vadd.f32 %v940, %v944
  %v947 = vadd.f32 %v941, %v945
  %v948 = vmul.f32 %v927, %v935
  %v949 = vmul.f32 %v929, %v937
  %v950 = vmul.f32 %v948, %v882
  %v951 = vmul.f32 %v949, %v883
  %v952 = vadd.f32 %v946, %v950
  %v953 = vadd.f32 %v947, %v951
  %s954 = scalar_lea.vmem [#allocation3], 32
  %v955 = vld [vmem:[%s954] sm:$0xff]
  %v956 = vld [vmem:[%s954 + $0x8] sm:$0xff]
  %v957 = vld [vmem:[%s954 + $0x10] sm:$0xff]
  %v958 = vld [vmem:[%s954 + $0x18] sm:$0xff]
  %v959 = vld [vmem:[%s2] sm:$0xff]
  %v960 = vld [vmem:[%s2 + $0x8] sm:$0xff]
  %v961 = vld [vmem:[%s2 + $0x10] sm:$0xff]
  %v962 = vld [vmem:[%s2 + $0x18] sm:$0xff]
  %v963 = vld [vmem:[%s2 + $0x20] sm:$0xff]
  %v964 = vld [vmem:[%s2 + $0x28] sm:$0xff]
  %v965 = vld [vmem:[%s2 + $0x30] sm:$0xff]
  %v966 = vld [vmem:[%s2 + $0x38] sm:$0xff]
  %v967 = vld [vmem:[%s2 + $0x40] sm:$0xff]
  %v968 = vld [vmem:[%s2 + $0x48] sm:$0xff]
  %v969 = vld [vmem:[%s2 + $0x50] sm:$0xff]
  %v970 = vld [vmem:[%s2 + $0x58] sm:$0xff]
  %v971 = vld [vmem:[%s2 + $0x60] sm:$0xff]
  %v972 = vld [vmem:[%s2 + $0x68] sm:$0xff]
  %v973 = vld [vmem:[%s2 + $0x70] sm:$0xff]
  %v974 = vld [vmem:[%s2 + $0x78] sm:$0xff]
  %975 = vmatprep.subr.mxu0 0.0
  %976 = vmatpush1.msra.mxu0 %v959
  %977 = vmatprep.subr.mxu0 0.0
  %978 = vmatpush1.msra.mxu0 %v960
  %979 = vmatprep.subr.mxu0 0.0
  %980 = vmatpush1.msra.mxu0 %v961
  %981 = vmatprep.subr.mxu0 0.0
  %982 = vmatpush1.msra.mxu0 %v962
  %983 = vmatprep.subr.mxu0 0.0
  %984 = vmatpush1.msra.mxu0 %v963
  %985 = vmatprep.subr.mxu0 0.0
  %986 = vmatpush1.msra.mxu0 %v964
  %987 = vmatprep.subr.mxu0 0.0
  %988 = vmatpush1.msra.mxu0 %v965
  %989 = vmatprep.subr.mxu0 0.0
  %990 = vmatpush1.msra.mxu0 %v966
  %991 = vmatprep.subr.mxu0 0.0
  %992 = vmatpush1.msra.mxu0 %v967
  %993 = vmatprep.subr.mxu0 0.0
  %994 = vmatpush1.msra.mxu0 %v968
  %995 = vmatprep.subr.mxu0 0.0
  %996 = vmatpush1.msra.mxu0 %v969
  %997 = vmatprep.subr.mxu0 0.0
  %998 = vmatpush1.msra.mxu0 %v970
  %999 = vmatprep.subr.mxu0 0.0
  %1000 = vmatpush1.msra.mxu0 %v971
  %1001 = vmatprep.subr.mxu0 0.0
  %1002 = vmatpush1.msra.mxu0 %v972
  %1003 = vmatprep.subr.mxu0 0.0
  %1004 = vmatpush1.msra.mxu0 %v973
  %1005 = vmatprep.subr.mxu0 0.0
  %1006 = vmatpush1.msra.mxu0 %v974
  %1007 = vmatprep.subr.mxu0 0.0
  %1008 = vmatpush1.msra.mxu0 0.0
  %1009 = vmatprep.subr.mxu0 0.0
  %1010 = vmatpush1.msra.mxu0 0.0
  %1011 = vmatprep.subr.mxu0 0.0
  %1012 = vmatpush1.msra.mxu0 0.0
  %1013 = vmatprep.subr.mxu0 0.0
  %1014 = vmatpush1.msra.mxu0 0.0
  %1015 = vmatprep.subr.mxu0 0.0
  %1016 = vmatpush1.msra.mxu0 0.0
  %1017 = vmatprep.subr.mxu0 0.0
  %1018 = vmatpush1.msra.mxu0 0.0
  %1019 = vmatprep.subr.mxu0 0.0
  %1020 = vmatpush1.msra.mxu0 0.0
  %1021 = vmatprep.subr.mxu0 0.0
  %1022 = vmatpush1.msra.mxu0 0.0
  %1023 = vmatprep.subr.mxu0 0.0
  %1024 = vmatpush1.msra.mxu0 0.0
  %1025 = vmatprep.subr.mxu0 0.0
  %1026 = vmatpush1.msra.mxu0 0.0
  %1027 = vmatprep.subr.mxu0 0.0
  %1028 = vmatpush1.msra.mxu0 0.0
  %1029 = vmatprep.subr.mxu0 0.0
  %1030 = vmatpush1.msra.mxu0 0.0
  %1031 = vmatprep.subr.mxu0 0.0
  %1032 = vmatpush1.msra.mxu0 0.0
  %1033 = vmatprep.subr.mxu0 0.0
  %1034 = vmatpush1.msra.mxu0 0.0
  %1035 = vmatprep.subr.mxu0 0.0
  %1036 = vmatpush1.msra.mxu0 0.0
  %1037 = vmatprep.subr.mxu0 0.0
  %1038 = vmatpush1.msra.mxu0 0.0
  %1039 = vmatprep.mubr.f32.mxu0 0.0
  %1040 = vmatmul.mubr.f32.gmra.mrb[0].mxu0 %v952
  %v1041 = vpop.f32.mrb[0].mxu0
  %v1042 = vadd.f32 0.0, %v1041
  %v1043 = vpop.f32.mrb[0].mxu0
  %1044 = vmatprep.mubr.f32.mxu0 0.0
  %1045 = vmatmul.mubr.f32.gmra.mrb[0].mxu0 %v953
  %v1046 = vpop.f32.mrb[0].mxu0
  %v1047 = vadd.f32 0.0, %v1046
  %v1048 = vpop.f32.mrb[0].mxu0
  %1049 = vdwg.mxu0
  %v1050 = vadd.f32 %v956, %v1042
  %v1051 = vadd.f32 %v958, %v1047
  %v1052 = vxor.u32 %v1050, 2147483648
  %v1053 = vxor.u32 %v1051, 2147483648
  %v1054 = vmul.f32 %v1052, 1.442695
  %v1055 = vpow.pop %v1054
  %v1056 = vmul.f32 %v1053, 1.442695
  %v1057 = vpow.pop %v1056
  %v1058 = vadd.f32 %v1055, 1.0
  %v1059 = vadd.f32 %v1057, 1.0
  %v1060 = vrcp.pop %v1058
  %v1061 = vmul.f32 1.0, %v1060
  %v1062 = vrcp.pop %v1059
  %v1063 = vmul.f32 1.0, %v1062
  %v1064 = vmul.f32 %v952, %v1061
  %v1065 = vmul.f32 %v953, %v1063
  %v1066 = vadd.f32 %v955, %v1064
  %v1067 = vadd.f32 %v957, %v1065
  %s1068 = scalar_lea.vmem %s4, 16
  %1069 = vst [vmem:[%s1068] sm:$0xff] %v1066
  %1070 = vst [vmem:[%s1068 + $0x8] sm:$0xff] %v1067
  %v1071 = vld [vmem:[%s51] sm:$0xff]
  %v1072 = vld [vmem:[%s51 + $0x8] sm:$0xff]
  %v1073 = vld [vmem:[%s84] sm:$0xff]
  %v1074 = vld [vmem:[%s84 + $0x8] sm:$0xff]
  %s1075 = scalar_lea.vmem %s0, 48
  %v1076 = vld [vmem:[%s1075] sm:$0xff]
  %v1077 = vld [vmem:[%s1075 + $0x8] sm:$0xff]
  %v1078 = vmul.f32 %v1071, %v1066
  %v1079 = vmul.f32 %v1072, %v1067
  %1080 = vadd.xlane.f32.xlu0 %v1078
  %v1081 = vpop.xlane.xlu0 %1080
  %1082 = vadd.xlane.f32.xlu0 %v1079
  %v1083 = vpop.xlane.xlu0 %1082
  %v1084 = vmul.f32 %v1081, 0.17677669
  %v1085 = vmul.f32 %v1083, 0.17677669
  %v1086 = vmul.f32 %v1073, %v1066
  %v1087 = vmul.f32 %v1074, %v1067
  %1088 = vadd.xlane.f32.xlu0 %v1086
  %v1089 = vpop.xlane.xlu0 %1088
  %1090 = vadd.xlane.f32.xlu0 %v1087
  %v1091 = vpop.xlane.xlu0 %1090
  %v1092 = vmul.f32 %v1089, 0.17677669
  %v1093 = vmul.f32 %v1091, 0.17677669
  %v1094 = vmul.f32 %v1076, %v1066
  %v1095 = vmul.f32 %v1077, %v1067
  %1096 = vadd.xlane.f32.xlu0 %v1094
  %v1097 = vpop.xlane.xlu0 %1096
  %1098 = vadd.xlane.f32.xlu0 %v1095
  %v1099 = vpop.xlane.xlu0 %1098
  %v1100 = vmul.f32 %v1097, 0.17677669
  %v1101 = vmul.f32 %v1099, 0.17677669
  %v1102 = vmax.f32 %v1084, %v1092
  %v1103 = vmax.f32 %v1085, %v1093
  %v1104 = vmax.f32 %v1102, %v1100
  %v1105 = vmax.f32 %v1103, %v1101
  %v1106 = vsub.f32 %v1084, %v1104
  %v1107 = vsub.f32 %v1085, %v1105
  %v1108 = vmul.f32 %v1106, 1.442695
  %v1109 = vpow.pop %v1108
  %v1110 = vmul.f32 %v1107, 1.442695
  %v1111 = vpow.pop %v1110
  %v1112 = vsub.f32 %v1092, %v1104
  %v1113 = vsub.f32 %v1093, %v1105
  %v1114 = vmul.f32 %v1112, 1.442695
  %v1115 = vpow.pop %v1114
  %v1116 = vmul.f32 %v1113, 1.442695
  %v1117 = vpow.pop %v1116
  %v1118 = vsub.f32 %v1100, %v1104
  %v1119 = vsub.f32 %v1101, %v1105
  %v1120 = vmul.f32 %v1118, 1.442695
  %v1121 = vpow.pop %v1120
  %v1122 = vmul.f32 %v1119, 1.442695
  %v1123 = vpow.pop %v1122
  %v1124 = vadd.f32 %v1109, %v1115
  %v1125 = vadd.f32 %v1111, %v1117
  %v1126 = vadd.f32 %v1124, %v1121
  %v1127 = vadd.f32 %v1125, %v1123
  %v1128 = vrcp.pop %v1126
  %v1129 = vmul.f32 1.0, %v1128
  %v1130 = vrcp.pop %v1127
  %v1131 = vmul.f32 1.0, %v1130
  %v1132 = vmul.f32 %v1109, %v1129
  %v1133 = vmul.f32 %v1111, %v1131
  %v1134 = vmul.f32 %v1132, %v1071
  %v1135 = vmul.f32 %v1133, %v1072
  %v1136 = vmul.f32 %v1115, %v1129
  %v1137 = vmul.f32 %v1117, %v1131
  %v1138 = vmul.f32 %v1136, %v1073
  %v1139 = vmul.f32 %v1137, %v1074
  %v1140 = vadd.f32 %v1134, %v1138
  %v1141 = vadd.f32 %v1135, %v1139
  %v1142 = vmul.f32 %v1121, %v1129
  %v1143 = vmul.f32 %v1123, %v1131
  %v1144 = vmul.f32 %v1142, %v1076
  %v1145 = vmul.f32 %v1143, %v1077
  %v1146 = vadd.f32 %v1140, %v1144
  %v1147 = vadd.f32 %v1141, %v1145
  %s1148 = scalar_lea.vmem [#allocation3], 64
  %v1149 = vld [vmem:[%s1148] sm:$0xff]
  %v1150 = vld [vmem:[%s1148 + $0x8] sm:$0xff]
  %v1151 = vld [vmem:[%s1148 + $0x10] sm:$0xff]
  %v1152 = vld [vmem:[%s1148 + $0x18] sm:$0xff]
  %v1153 = vld [vmem:[%s2] sm:$0xff]
  %v1154 = vld [vmem:[%s2 + $0x8] sm:$0xff]
  %v1155 = vld [vmem:[%s2 + $0x10] sm:$0xff]
  %v1156 = vld [vmem:[%s2 + $0x18] sm:$0xff]
  %v1157 = vld [vmem:[%s2 + $0x20] sm:$0xff]
  %v1158 = vld [vmem:[%s2 + $0x28] sm:$0xff]
  %v1159 = vld [vmem:[%s2 + $0x30] sm:$0xff]
  %v1160 = vld [vmem:[%s2 + $0x38] sm:$0xff]
  %v1161 = vld [vmem:[%s2 + $0x40] sm:$0xff]
  %v1162 = vld [vmem:[%s2 + $0x48] sm:$0xff]
  %v1163 = vld [vmem:[%s2 + $0x50] sm:$0xff]
  %v1164 = vld [vmem:[%s2 + $0x58] sm:$0xff]
  %v1165 = vld [vmem:[%s2 + $0x60] sm:$0xff]
  %v1166 = vld [vmem:[%s2 + $0x68] sm:$0xff]
  %v1167 = vld [vmem:[%s2 + $0x70] sm:$0xff]
  %v1168 = vld [vmem:[%s2 + $0x78] sm:$0xff]
  %1169 = vmatprep.subr.mxu0 0.0
  %1170 = vmatpush1.msra.mxu0 %v1153
  %1171 = vmatprep.subr.mxu0 0.0
  %1172 = vmatpush1.msra.mxu0 %v1154
  %1173 = vmatprep.subr.mxu0 0.0
  %1174 = vmatpush1.msra.mxu0 %v1155
  %1175 = vmatprep.subr.mxu0 0.0
  %1176 = vmatpush1.msra.mxu0 %v1156
  %1177 = vmatprep.subr.mxu0 0.0
  %1178 = vmatpush1.msra.mxu0 %v1157
  %1179 = vmatprep.subr.mxu0 0.0
  %1180 = vmatpush1.msra.mxu0 %v1158
  %1181 = vmatprep.subr.mxu0 0.0
  %1182 = vmatpush1.msra.mxu0 %v1159
  %1183 = vmatprep.subr.mxu0 0.0
  %1184 = vmatpush1.msra.mxu0 %v1160
  %1185 = vmatprep.subr.mxu0 0.0
  %1186 = vmatpush1.msra.mxu0 %v1161
  %1187 = vmatprep.subr.mxu0 0.0
  %1188 = vmatpush1.msra.mxu0 %v1162
  %1189 = vmatprep.subr.mxu0 0.0
  %1190 = vmatpush1.msra.mxu0 %v1163
  %1191 = vmatprep.subr.mxu0 0.0
  %1192 = vmatpush1.msra.mxu0 %v1164
  %1193 = vmatprep.subr.mxu0 0.0
  %1194 = vmatpush1.msra.mxu0 %v1165
  %1195 = vmatprep.subr.mxu0 0.0
  %1196 = vmatpush1.msra.mxu0 %v1166
  %1197 = vmatprep.subr.mxu0 0.0
  %1198 = vmatpush1.msra.mxu0 %v1167
  %1199 = vmatprep.subr.mxu0 0.0
  %1200 = vmatpush1.msra.mxu0 %v1168
  %1201 = vmatprep.subr.mxu0 0.0
  %1202 = vmatpush1.msra.mxu0 0.0
  %1203 = vmatprep.subr.mxu0 0.0
  %1204 = vmatpush1.msra.mxu0 0.0
  %1205 = vmatprep.subr.mxu0 0.0
  %1206 = vmatpush1.msra.mxu0 0.0
  %1207 = vmatprep.subr.mxu0 0.0
  %1208 = vmatpush1.msra.mxu0 0.0
  %1209 = vmatprep.subr.mxu0 0.0
  %1210 = vmatpush1.msra.mxu0 0.0
  %1211 = vmatprep.subr.mxu0 0.0
  %1212 = vmatpush1.msra.mxu0 0.0
  %1213 = vmatprep.subr.mxu0 0.0
  %1214 = vmatpush1.msra.mxu0 0.0
  %1215 = vmatprep.subr.mxu0 0.0
  %1216 = vmatpush1.msra.mxu0 0.0
  %1217 = vmatprep.subr.mxu0 0.0
  %1218 = vmatpush1.msra.mxu0 0.0
  %1219 = vmatprep.subr.mxu0 0.0
  %1220 = vmatpush1.msra.mxu0 0.0
  %1221 = vmatprep.subr.mxu0 0.0
  %1222 = vmatpush1.msra.mxu0 0.0
  %1223 = vmatprep.subr.mxu0 0.0
  %1224 = vmatpush1.msra.mxu0 0.0
  %1225 = vmatprep.subr.mxu0 0.0
  %1226 = vmatpush1.msra.mxu0 0.0
  %1227 = vmatprep.subr.mxu0 0.0
  %1228 = vmatpush1.msra.mxu0 0.0
  %1229 = vmatprep.subr.mxu0 0.0
  %1230 = vmatpush1.msra.mxu0 0.0
  %1231 = vmatprep.subr.mxu0 0.0
  %1232 = vmatpush1.msra.mxu0 0.0
  %1233 = vmatprep.mubr.f32.mxu0 0.0
  %1234 = vmatmul.mubr.f32.gmra.mrb[0].mxu0 %v1146
  %v1235 = vpop.f32.mrb[0].mxu0
  %v1236 = vadd.f32 0.0, %v1235
  %v1237 = vpop.f32.mrb[0].mxu0
  %1238 = vmatprep.mubr.f32.mxu0 0.0
  %1239 = vmatmul.mubr.f32.gmra.mrb[0].mxu0 %v1147
  %v1240 = vpop.f32.mrb[0].mxu0
  %v1241 = vadd.f32 0.0, %v1240
  %v1242 = vpop.f32.mrb[0].mxu0
  %1243 = vdwg.mxu0
  %v1244 = vadd.f32 %v1150, %v1236
  %v1245 = vadd.f32 %v1152, %v1241
  %v1246 = vxor.u32 %v1244, 2147483648
  %v1247 = vxor.u32 %v1245, 2147483648
  %v1248 = vmul.f32 %v1246, 1.442695
  %v1249 = vpow.pop %v1248
  %v1250 = vmul.f32 %v1247, 1.442695
  %v1251 = vpow.pop %v1250
  %v1252 = vadd.f32 %v1249, 1.0
  %v1253 = vadd.f32 %v1251, 1.0
  %v1254 = vrcp.pop %v1252
  %v1255 = vmul.f32 1.0, %v1254
  %v1256 = vrcp.pop %v1253
  %v1257 = vmul.f32 1.0, %v1256
  %v1258 = vmul.f32 %v1146, %v1255
  %v1259 = vmul.f32 %v1147, %v1257
  %v1260 = vadd.f32 %v1149, %v1258
  %v1261 = vadd.f32 %v1151, %v1259
  %s1262 = scalar_lea.vmem %s4, 32
  %1263 = vst [vmem:[%s1262] sm:$0xff] %v1260
  %1264 = vst [vmem:[%s1262 + $0x8] sm:$0xff] %v1261
  %v1265 = vld [vmem:[%s84] sm:$0xff]
  %v1266 = vld [vmem:[%s84 + $0x8] sm:$0xff]
  %v1267 = vld [vmem:[%s1075] sm:$0xff]
  %v1268 = vld [vmem:[%s1075 + $0x8] sm:$0xff]
  %s1269 = scalar_lea.vmem %s0, 64
  %v1270 = vld [vmem:[%s1269] sm:$0xff]
  %v1271 = vld [vmem:[%s1269 + $0x8] sm:$0xff]
  %v1272 = vmul.f32 %v1265, %v1260
  %v1273 = vmul.f32 %v1266, %v1261
  %1274 = vadd.xlane.f32.xlu0 %v1272
  %v1275 = vpop.xlane.xlu0 %1274
  %1276 = vadd.xlane.f32.xlu0 %v1273
  %v1277 = vpop.xlane.xlu0 %1276
  %v1278 = vmul.f32 %v1275, 0.17677669
  %v1279 = vmul.f32 %v1277, 0.17677669
  %v1280 = vmul.f32 %v1267, %v1260
  %v1281 = vmul.f32 %v1268, %v1261
  %1282 = vadd.xlane.f32.xlu0 %v1280
  %v1283 = vpop.xlane.xlu0 %1282
  %1284 = vadd.xlane.f32.xlu0 %v1281
  %v1285 = vpop.xlane.xlu0 %1284
  %v1286 = vmul.f32 %v1283, 0.17677669
  %v1287 = vmul.f32 %v1285, 0.17677669
  %v1288 = vmul.f32 %v1270, %v1260
  %v1289 = vmul.f32 %v1271, %v1261
  %1290 = vadd.xlane.f32.xlu0 %v1288
  %v1291 = vpop.xlane.xlu0 %1290
  %1292 = vadd.xlane.f32.xlu0 %v1289
  %v1293 = vpop.xlane.xlu0 %1292
  %v1294 = vmul.f32 %v1291, 0.17677669
  %v1295 = vmul.f32 %v1293, 0.17677669
  %v1296 = vmax.f32 %v1278, %v1286
  %v1297 = vmax.f32 %v1279, %v1287
  %v1298 = vmax.f32 %v1296, %v1294
  %v1299 = vmax.f32 %v1297, %v1295
  %v1300 = vsub.f32 %v1278, %v1298
  %v1301 = vsub.f32 %v1279, %v1299
  %v1302 = vmul.f32 %v1300, 1.442695
  %v1303 = vpow.pop %v1302
  %v1304 = vmul.f32 %v1301, 1.442695
  %v1305 = vpow.pop %v1304
  %v1306 = vsub.f32 %v1286, %v1298
  %v1307 = vsub.f32 %v1287, %v1299
  %v1308 = vmul.f32 %v1306, 1.442695
  %v1309 = vpow.pop %v1308
  %v1310 = vmul.f32 %v1307, 1.442695
  %v1311 = vpow.pop %v1310
  %v1312 = vsub.f32 %v1294, %v1298
  %v1313 = vsub.f32 %v1295, %v1299
  %v1314 = vmul.f32 %v1312, 1.442695
  %v1315 = vpow.pop %v1314
  %v1316 = vmul.f32 %v1313, 1.442695
  %v1317 = vpow.pop %v1316
  %v1318 = vadd.f32 %v1303, %v1309
  %v1319 = vadd.f32 %v1305, %v1311
  %v1320 = vadd.f32 %v1318, %v1315
  %v1321 = vadd.f32 %v1319, %v1317
  %v1322 = vrcp.pop %v1320
  %v1323 = vmul.f32 1.0, %v1322
  %v1324 = vrcp.pop %v1321
  %v1325 = vmul.f32 1.0, %v1324
  %v1326 = vmul.f32 %v1303, %v1323
  %v1327 = vmul.f32 %v1305, %v1325
  %v1328 = vmul.f32 %v1326, %v1265
  %v1329 = vmul.f32 %v1327, %v1266
  %v1330 = vmul.f32 %v1309, %v1323
  %v1331 = vmul.f32 %v1311, %v1325
  %v1332 = vmul.f32 %v1330, %v1267
  %v1333 = vmul.f32 %v1331, %v1268
  %v1334 = vadd.f32 %v1328, %v1332
  %v1335 = vadd.f32 %v1329, %v1333
  %v1336 = vmul.f32 %v1315, %v1323
  %v1337 = vmul.f32 %v1317, %v1325
  %v1338 = vmul.f32 %v1336, %v1270
  %v1339 = vmul.f32 %v1337, %v1271
  %v1340 = vadd.f32 %v1334, %v1338
  %v1341 = vadd.f32 %v1335, %v1339
  %s1342 = scalar_lea.vmem [#allocation3], 96
  %v1343 = vld [vmem:[%s1342] sm:$0xff]
  %v1344 = vld [vmem:[%s1342 + $0x8] sm:$0xff]
  %v1345 = vld [vmem:[%s1342 + $0x10] sm:$0xff]
  %v1346 = vld [vmem:[%s1342 + $0x18] sm:$0xff]
  %v1347 = vld [vmem:[%s2] sm:$0xff]
  %v1348 = vld [vmem:[%s2 + $0x8] sm:$0xff]
  %v1349 = vld [vmem:[%s2 + $0x10] sm:$0xff]
  %v1350 = vld [vmem:[%s2 + $0x18] sm:$0xff]
  %v1351 = vld [vmem:[%s2 + $0x20] sm:$0xff]
  %v1352 = vld [vmem:[%s2 + $0x28] sm:$0xff]
  %v1353 = vld [vmem:[%s2 + $0x30] sm:$0xff]
  %v1354 = vld [vmem:[%s2 + $0x38] sm:$0xff]
  %v1355 = vld [vmem:[%s2 + $0x40] sm:$0xff]
  %v1356 = vld [vmem:[%s2 + $0x48] sm:$0xff]
  %v1357 = vld [vmem:[%s2 + $0x50] sm:$0xff]
  %v1358 = vld [vmem:[%s2 + $0x58] sm:$0xff]
  %v1359 = vld [vmem:[%s2 + $0x60] sm:$0xff]
  %v1360 = vld [vmem:[%s2 + $0x68] sm:$0xff]
  %v1361 = vld [vmem:[%s2 + $0x70] sm:$0xff]
  %v1362 = vld [vmem:[%s2 + $0x78] sm:$0xff]
  %1363 = vmatprep.subr.mxu0 0.0
  %1364 = vmatpush1.msra.mxu0 %v1347
  %1365 = vmatprep.subr.mxu0 0.0
  %1366 = vmatpush1.msra.mxu0 %v1348
  %1367 = vmatprep.subr.mxu0 0.0
  %1368 = vmatpush1.msra.mxu0 %v1349
  %1369 = vmatprep.subr.mxu0 0.0
  %1370 = vmatpush1.msra.mxu0 %v1350
  %1371 = vmatprep.subr.mxu0 0.0
  %1372 = vmatpush1.msra.mxu0 %v1351
  %1373 = vmatprep.subr.mxu0 0.0
  %1374 = vmatpush1.msra.mxu0 %v1352
  %1375 = vmatprep.subr.mxu0 0.0
  %1376 = vmatpush1.msra.mxu0 %v1353
  %1377 = vmatprep.subr.mxu0 0.0
  %1378 = vmatpush1.msra.mxu0 %v1354
  %1379 = vmatprep.subr.mxu0 0.0
  %1380 = vmatpush1.msra.mxu0 %v1355
  %1381 = vmatprep.subr.mxu0 0.0
  %1382 = vmatpush1.msra.mxu0 %v1356
  %1383 = vmatprep.subr.mxu0 0.0
  %1384 = vmatpush1.msra.mxu0 %v1357
  %1385 = vmatprep.subr.mxu0 0.0
  %1386 = vmatpush1.msra.mxu0 %v1358
  %1387 = vmatprep.subr.mxu0 0.0
  %1388 = vmatpush1.msra.mxu0 %v1359
  %1389 = vmatprep.subr.mxu0 0.0
  %1390 = vmatpush1.msra.mxu0 %v1360
  %1391 = vmatprep.subr.mxu0 0.0
  %1392 = vmatpush1.msra.mxu0 %v1361
  %1393 = vmatprep.subr.mxu0 0.0
  %1394 = vmatpush1.msra.mxu0 %v1362
  %1395 = vmatprep.subr.mxu0 0.0
  %1396 = vmatpush1.msra.mxu0 0.0
  %1397 = vmatprep.subr.mxu0 0.0
  %1398 = vmatpush1.msra.mxu0 0.0
  %1399 = vmatprep.subr.mxu0 0.0
  %1400 = vmatpush1.msra.mxu0 0.0
  %1401 = vmatprep.subr.mxu0 0.0
  %1402 = vmatpush1.msra.mxu0 0.0
  %1403 = vmatprep.subr.mxu0 0.0
  %1404 = vmatpush1.msra.mxu0 0.0
  %1405 = vmatprep.subr.mxu0 0.0
  %1406 = vmatpush1.msra.mxu0 0.0
  %1407 = vmatprep.subr.mxu0 0.0
  %1408 = vmatpush1.msra.mxu0 0.0
  %1409 = vmatprep.subr.mxu0 0.0
  %1410 = vmatpush1.msra.mxu0 0.0
  %1411 = vmatprep.subr.mxu0 0.0
  %1412 = vmatpush1.msra.mxu0 0.0
  %1413 = vmatprep.subr.mxu0 0.0
  %1414 = vmatpush1.msra.mxu0 0.0
  %1415 = vmatprep.subr.mxu0 0.0
  %1416 = vmatpush1.msra.mxu0 0.0
  %1417 = vmatprep.subr.mxu0 0.0
  %1418 = vmatpush1.msra.mxu0 0.0
  %1419 = vmatprep.subr.mxu0 0.0
  %1420 = vmatpush1.msra.mxu0 0.0
  %1421 = vmatprep.subr.mxu0 0.0
  %1422 = vmatpush1.msra.mxu0 0.0
  %1423 = vmatprep.subr.mxu0 0.0
  %1424 = vmatpush1.msra.mxu0 0.0
  %1425 = vmatprep.subr.mxu0 0.0
  %1426 = vmatpush1.msra.mxu0 0.0
  %1427 = vmatprep.mubr.f32.mxu0 0.0
  %1428 = vmatmul.mubr.f32.gmra.mrb[0].mxu0 %v1340
  %v1429 = vpop.f32.mrb[0].mxu0
  %v1430 = vadd.f32 0.0, %v1429
  %v1431 = vpop.f32.mrb[0].mxu0
  %1432 = vmatprep.mubr.f32.mxu0 0.0
  %1433 = vmatmul.mubr.f32.gmra.mrb[0].mxu0 %v1341
  %v1434 = vpop.f32.mrb[0].mxu0
  %v1435 = vadd.f32 0.0, %v1434
  %v1436 = vpop.f32.mrb[0].mxu0
  %1437 = vdwg.mxu0
  %v1438 = vadd.f32 %v1344, %v1430
  %v1439 = vadd.f32 %v1346, %v1435
  %v1440 = vxor.u32 %v1438, 2147483648
  %v1441 = vxor.u32 %v1439, 2147483648
  %v1442 = vmul.f32 %v1440, 1.442695
  %v1443 = vpow.pop %v1442
  %v1444 = vmul.f32 %v1441, 1.442695
  %v1445 = vpow.pop %v1444
  %v1446 = vadd.f32 %v1443, 1.0
  %v1447 = vadd.f32 %v1445, 1.0
  %v1448 = vrcp.pop %v1446
  %v1449 = vmul.f32 1.0, %v1448
  %v1450 = vrcp.pop %v1447
  %v1451 = vmul.f32 1.0, %v1450
  %v1452 = vmul.f32 %v1340, %v1449
  %v1453 = vmul.f32 %v1341, %v1451
  %v1454 = vadd.f32 %v1343, %v1452
  %v1455 = vadd.f32 %v1345, %v1453
  %s1456 = scalar_lea.vmem %s4, 48
  %1457 = vst [vmem:[%s1456] sm:$0xff] %v1454
  %1458 = vst [vmem:[%s1456 + $0x8] sm:$0xff] %v1455
  %v1459 = vld [vmem:[%s1075] sm:$0xff]
  %v1460 = vld [vmem:[%s1075 + $0x8] sm:$0xff]
  %v1461 = vld [vmem:[%s1269] sm:$0xff]
  %v1462 = vld [vmem:[%s1269 + $0x8] sm:$0xff]
  %s1463 = scalar_lea.vmem %s0, 80
  %v1464 = vld [vmem:[%s1463] sm:$0xff]
  %v1465 = vld [vmem:[%s1463 + $0x8] sm:$0xff]
  %v1466 = vmul.f32 %v1459, %v1454
  %v1467 = vmul.f32 %v1460, %v1455
  %1468 = vadd.xlane.f32.xlu0 %v1466
  %v1469 = vpop.xlane.xlu0 %1468
  %1470 = vadd.xlane.f32.xlu0 %v1467
  %v1471 = vpop.xlane.xlu0 %1470
  %v1472 = vmul.f32 %v1469, 0.17677669
  %v1473 = vmul.f32 %v1471, 0.17677669
  %v1474 = vmul.f32 %v1461, %v1454
  %v1475 = vmul.f32 %v1462, %v1455
  %1476 = vadd.xlane.f32.xlu0 %v1474
  %v1477 = vpop.xlane.xlu0 %1476
  %1478 = vadd.xlane.f32.xlu0 %v1475
  %v1479 = vpop.xlane.xlu0 %1478
  %v1480 = vmul.f32 %v1477, 0.17677669
  %v1481 = vmul.f32 %v1479, 0.17677669
  %v1482 = vmul.f32 %v1464, %v1454
  %v1483 = vmul.f32 %v1465, %v1455
  %1484 = vadd.xlane.f32.xlu0 %v1482
  %v1485 = vpop.xlane.xlu0 %1484
  %1486 = vadd.xlane.f32.xlu0 %v1483
  %v1487 = vpop.xlane.xlu0 %1486
  %v1488 = vmul.f32 %v1485, 0.17677669
  %v1489 = vmul.f32 %v1487, 0.17677669
  %v1490 = vmax.f32 %v1472, %v1480
  %v1491 = vmax.f32 %v1473, %v1481
  %v1492 = vmax.f32 %v1490, %v1488
  %v1493 = vmax.f32 %v1491, %v1489
  %v1494 = vsub.f32 %v1472, %v1492
  %v1495 = vsub.f32 %v1473, %v1493
  %v1496 = vmul.f32 %v1494, 1.442695
  %v1497 = vpow.pop %v1496
  %v1498 = vmul.f32 %v1495, 1.442695
  %v1499 = vpow.pop %v1498
  %v1500 = vsub.f32 %v1480, %v1492
  %v1501 = vsub.f32 %v1481, %v1493
  %v1502 = vmul.f32 %v1500, 1.442695
  %v1503 = vpow.pop %v1502
  %v1504 = vmul.f32 %v1501, 1.442695
  %v1505 = vpow.pop %v1504
  %v1506 = vsub.f32 %v1488, %v1492
  %v1507 = vsub.f32 %v1489, %v1493
  %v1508 = vmul.f32 %v1506, 1.442695
  %v1509 = vpow.pop %v1508
  %v1510 = vmul.f32 %v1507, 1.442695
  %v1511 = vpow.pop %v1510
  %v1512 = vadd.f32 %v1497, %v1503
  %v1513 = vadd.f32 %v1499, %v1505
  %v1514 = vadd.f32 %v1512, %v1509
  %v1515 = vadd.f32 %v1513, %v1511
  %v1516 = vrcp.pop %v1514
  %v1517 = vmul.f32 1.0, %v1516
  %v1518 = vrcp.pop %v1515
  %v1519 = vmul.f32 1.0, %v1518
  %v1520 = vmul.f32 %v1497, %v1517
  %v1521 = vmul.f32 %v1499, %v1519
  %v1522 = vmul.f32 %v1520, %v1459
  %v1523 = vmul.f32 %v1521, %v1460
  %v1524 = vmul.f32 %v1503, %v1517
  %v1525 = vmul.f32 %v1505, %v1519
  %v1526 = vmul.f32 %v1524, %v1461
  %v1527 = vmul.f32 %v1525, %v1462
  %v1528 = vadd.f32 %v1522, %v1526
  %v1529 = vadd.f32 %v1523, %v1527
  %v1530 = vmul.f32 %v1509, %v1517
  %v1531 = vmul.f32 %v1511, %v1519
  %v1532 = vmul.f32 %v1530, %v1464
  %v1533 = vmul.f32 %v1531, %v1465
  %v1534 = vadd.f32 %v1528, %v1532
  %v1535 = vadd.f32 %v1529, %v1533
  %s1536 = scalar_lea.vmem [#allocation3], 128
  %v1537 = vld [vmem:[%s1536] sm:$0xff]
  %v1538 = vld [vmem:[%s1536 + $0x8] sm:$0xff]
  %v1539 = vld [vmem:[%s1536 + $0x10] sm:$0xff]
  %v1540 = vld [vmem:[%s1536 + $0x18] sm:$0xff]
  %v1541 = vld [vmem:[%s2] sm:$0xff]
  %v1542 = vld [vmem:[%s2 + $0x8] sm:$0xff]
  %v1543 = vld [vmem:[%s2 + $0x10] sm:$0xff]
  %v1544 = vld [vmem:[%s2 + $0x18] sm:$0xff]
  %v1545 = vld [vmem:[%s2 + $0x20] sm:$0xff]
  %v1546 = vld [vmem:[%s2 + $0x28] sm:$0xff]
  %v1547 = vld [vmem:[%s2 + $0x30] sm:$0xff]
  %v1548 = vld [vmem:[%s2 + $0x38] sm:$0xff]
  %v1549 = vld [vmem:[%s2 + $0x40] sm:$0xff]
  %v1550 = vld [vmem:[%s2 + $0x48] sm:$0xff]
  %v1551 = vld [vmem:[%s2 + $0x50] sm:$0xff]
  %v1552 = vld [vmem:[%s2 + $0x58] sm:$0xff]
  %v1553 = vld [vmem:[%s2 + $0x60] sm:$0xff]
  %v1554 = vld [vmem:[%s2 + $0x68] sm:$0xff]
  %v1555 = vld [vmem:[%s2 + $0x70] sm:$0xff]
  %v1556 = vld [vmem:[%s2 + $0x78] sm:$0xff]
  %1557 = vmatprep.subr.mxu0 0.0
  %1558 = vmatpush1.msra.mxu0 %v1541
  %1559 = vmatprep.subr.mxu0 0.0
  %1560 = vmatpush1.msra.mxu0 %v1542
  %1561 = vmatprep.subr.mxu0 0.0
  %1562 = vmatpush1.msra.mxu0 %v1543
  %1563 = vmatprep.subr.mxu0 0.0
  %1564 = vmatpush1.msra.mxu0 %v1544
  %1565 = vmatprep.subr.mxu0 0.0
  %1566 = vmatpush1.msra.mxu0 %v1545
  %1567 = vmatprep.subr.mxu0 0.0
  %1568 = vmatpush1.msra.mxu0 %v1546
  %1569 = vmatprep.subr.mxu0 0.0
  %1570 = vmatpush1.msra.mxu0 %v1547
  %1571 = vmatprep.subr.mxu0 0.0
  %1572 = vmatpush1.msra.mxu0 %v1548
  %1573 = vmatprep.subr.mxu0 0.0
  %1574 = vmatpush1.msra.mxu0 %v1549
  %1575 = vmatprep.subr.mxu0 0.0
  %1576 = vmatpush1.msra.mxu0 %v1550
  %1577 = vmatprep.subr.mxu0 0.0
  %1578 = vmatpush1.msra.mxu0 %v1551
  %1579 = vmatprep.subr.mxu0 0.0
  %1580 = vmatpush1.msra.mxu0 %v1552
  %1581 = vmatprep.subr.mxu0 0.0
  %1582 = vmatpush1.msra.mxu0 %v1553
  %1583 = vmatprep.subr.mxu0 0.0
  %1584 = vmatpush1.msra.mxu0 %v1554
  %1585 = vmatprep.subr.mxu0 0.0
  %1586 = vmatpush1.msra.mxu0 %v1555
  %1587 = vmatprep.subr.mxu0 0.0
  %1588 = vmatpush1.msra.mxu0 %v1556
  %1589 = vmatprep.subr.mxu0 0.0
  %1590 = vmatpush1.msra.mxu0 0.0
  %1591 = vmatprep.subr.mxu0 0.0
  %1592 = vmatpush1.msra.mxu0 0.0
  %1593 = vmatprep.subr.mxu0 0.0
  %1594 = vmatpush1.msra.mxu0 0.0
  %1595 = vmatprep.subr.mxu0 0.0
  %1596 = vmatpush1.msra.mxu0 0.0
  %1597 = vmatprep.subr.mxu0 0.0
  %1598 = vmatpush1.msra.mxu0 0.0
  %1599 = vmatprep.subr.mxu0 0.0
  %1600 = vmatpush1.msra.mxu0 0.0
  %1601 = vmatprep.subr.mxu0 0.0
  %1602 = vmatpush1.msra.mxu0 0.0
  %1603 = vmatprep.subr.mxu0 0.0
  %1604 = vmatpush1.msra.mxu0 0.0
  %1605 = vmatprep.subr.mxu0 0.0
  %1606 = vmatpush1.msra.mxu0 0.0
  %1607 = vmatprep.subr.mxu0 0.0
  %1608 = vmatpush1.msra.mxu0 0.0
  %1609 = vmatprep.subr.mxu0 0.0
  %1610 = vmatpush1.msra.mxu0 0.0
  %1611 = vmatprep.subr.mxu0 0.0
  %1612 = vmatpush1.msra.mxu0 0.0
  %1613 = vmatprep.subr.mxu0 0.0
  %1614 = vmatpush1.msra.mxu0 0.0
  %1615 = vmatprep.subr.mxu0 0.0
  %1616 = vmatpush1.msra.mxu0 0.0
  %1617 = vmatprep.subr.mxu0 0.0
  %1618 = vmatpush1.msra.mxu0 0.0
  %1619 = vmatprep.subr.mxu0 0.0
  %1620 = vmatpush1.msra.mxu0 0.0
  %1621 = vmatprep.mubr.f32.mxu0 0.0
  %1622 = vmatmul.mubr.f32.gmra.mrb[0].mxu0 %v1534
  %v1623 = vpop.f32.mrb[0].mxu0
  %v1624 = vadd.f32 0.0, %v1623
  %v1625 = vpop.f32.mrb[0].mxu0
  %1626 = vmatprep.mubr.f32.mxu0 0.0
  %1627 = vmatmul.mubr.f32.gmra.mrb[0].mxu0 %v1535
  %v1628 = vpop.f32.mrb[0].mxu0
  %v1629 = vadd.f32 0.0, %v1628
  %v1630 = vpop.f32.mrb[0].mxu0
  %1631 = vdwg.mxu0
  %v1632 = vadd.f32 %v1538, %v1624
  %v1633 = vadd.f32 %v1540, %v1629
  %v1634 = vxor.u32 %v1632, 2147483648
  %v1635 = vxor.u32 %v1633, 2147483648
  %v1636 = vmul.f32 %v1634, 1.442695
  %v1637 = vpow.pop %v1636
  %v1638 = vmul.f32 %v1635, 1.442695
  %v1639 = vpow.pop %v1638
  %v1640 = vadd.f32 %v1637, 1.0
  %v1641 = vadd.f32 %v1639, 1.0
  %v1642 = vrcp.pop %v1640
  %v1643 = vmul.f32 1.0, %v1642
  %v1644 = vrcp.pop %v1641
  %v1645 = vmul.f32 1.0, %v1644
  %v1646 = vmul.f32 %v1534, %v1643
  %v1647 = vmul.f32 %v1535, %v1645
  %v1648 = vadd.f32 %v1537, %v1646
  %v1649 = vadd.f32 %v1539, %v1647
  %s1650 = scalar_lea.vmem %s4, 64
  %1651 = vst [vmem:[%s1650] sm:$0xff] %v1648
  %1652 = vst [vmem:[%s1650 + $0x8] sm:$0xff] %v1649
  %v1653 = vld [vmem:[%s1269] sm:$0xff]
  %v1654 = vld [vmem:[%s1269 + $0x8] sm:$0xff]
  %v1655 = vld [vmem:[%s1463] sm:$0xff]
  %v1656 = vld [vmem:[%s1463 + $0x8] sm:$0xff]
  %s1657 = scalar_lea.vmem %s0, 96
  %v1658 = vld [vmem:[%s1657] sm:$0xff]
  %v1659 = vld [vmem:[%s1657 + $0x8] sm:$0xff]
  %v1660 = vmul.f32 %v1653, %v1648
  %v1661 = vmul.f32 %v1654, %v1649
  %1662 = vadd.xlane.f32.xlu0 %v1660
  %v1663 = vpop.xlane.xlu0 %1662
  %1664 = vadd.xlane.f32.xlu0 %v1661
  %v1665 = vpop.xlane.xlu0 %1664
  %v1666 = vmul.f32 %v1663, 0.17677669
  %v1667 = vmul.f32 %v1665, 0.17677669
  %v1668 = vmul.f32 %v1655, %v1648
  %v1669 = vmul.f32 %v1656, %v1649
  %1670 = vadd.xlane.f32.xlu0 %v1668
  %v1671 = vpop.xlane.xlu0 %1670
  %1672 = vadd.xlane.f32.xlu0 %v1669
  %v1673 = vpop.xlane.xlu0 %1672
  %v1674 = vmul.f32 %v1671, 0.17677669
  %v1675 = vmul.f32 %v1673, 0.17677669
  %v1676 = vmul.f32 %v1658, %v1648
  %v1677 = vmul.f32 %v1659, %v1649
  %1678 = vadd.xlane.f32.xlu0 %v1676
  %v1679 = vpop.xlane.xlu0 %1678
  %1680 = vadd.xlane.f32.xlu0 %v1677
  %v1681 = vpop.xlane.xlu0 %1680
  %v1682 = vmul.f32 %v1679, 0.17677669
  %v1683 = vmul.f32 %v1681, 0.17677669
  %v1684 = vmax.f32 %v1666, %v1674
  %v1685 = vmax.f32 %v1667, %v1675
  %v1686 = vmax.f32 %v1684, %v1682
  %v1687 = vmax.f32 %v1685, %v1683
  %v1688 = vsub.f32 %v1666, %v1686
  %v1689 = vsub.f32 %v1667, %v1687
  %v1690 = vmul.f32 %v1688, 1.442695
  %v1691 = vpow.pop %v1690
  %v1692 = vmul.f32 %v1689, 1.442695
  %v1693 = vpow.pop %v1692
  %v1694 = vsub.f32 %v1674, %v1686
  %v1695 = vsub.f32 %v1675, %v1687
  %v1696 = vmul.f32 %v1694, 1.442695
  %v1697 = vpow.pop %v1696
  %v1698 = vmul.f32 %v1695, 1.442695
  %v1699 = vpow.pop %v1698
  %v1700 = vsub.f32 %v1682, %v1686
  %v1701 = vsub.f32 %v1683, %v1687
  %v1702 = vmul.f32 %v1700, 1.442695
  %v1703 = vpow.pop %v1702
  %v1704 = vmul.f32 %v1701, 1.442695
  %v1705 = vpow.pop %v1704
  %v1706 = vadd.f32 %v1691, %v1697
  %v1707 = vadd.f32 %v1693, %v1699
  %v1708 = vadd.f32 %v1706, %v1703
  %v1709 = vadd.f32 %v1707, %v1705
  %v1710 = vrcp.pop %v1708
  %v1711 = vmul.f32 1.0, %v1710
  %v1712 = vrcp.pop %v1709
  %v1713 = vmul.f32 1.0, %v1712
  %v1714 = vmul.f32 %v1691, %v1711
  %v1715 = vmul.f32 %v1693, %v1713
  %v1716 = vmul.f32 %v1714, %v1653
  %v1717 = vmul.f32 %v1715, %v1654
  %v1718 = vmul.f32 %v1697, %v1711
  %v1719 = vmul.f32 %v1699, %v1713
  %v1720 = vmul.f32 %v1718, %v1655
  %v1721 = vmul.f32 %v1719, %v1656
  %v1722 = vadd.f32 %v1716, %v1720
  %v1723 = vadd.f32 %v1717, %v1721
  %v1724 = vmul.f32 %v1703, %v1711
  %v1725 = vmul.f32 %v1705, %v1713
  %v1726 = vmul.f32 %v1724, %v1658
  %v1727 = vmul.f32 %v1725, %v1659
  %v1728 = vadd.f32 %v1722, %v1726
  %v1729 = vadd.f32 %v1723, %v1727
  %s1730 = scalar_lea.vmem [#allocation3], 160
  %v1731 = vld [vmem:[%s1730] sm:$0xff]
  %v1732 = vld [vmem:[%s1730 + $0x8] sm:$0xff]
  %v1733 = vld [vmem:[%s1730 + $0x10] sm:$0xff]
  %v1734 = vld [vmem:[%s1730 + $0x18] sm:$0xff]
  %v1735 = vld [vmem:[%s2] sm:$0xff]
  %v1736 = vld [vmem:[%s2 + $0x8] sm:$0xff]
  %v1737 = vld [vmem:[%s2 + $0x10] sm:$0xff]
  %v1738 = vld [vmem:[%s2 + $0x18] sm:$0xff]
  %v1739 = vld [vmem:[%s2 + $0x20] sm:$0xff]
  %v1740 = vld [vmem:[%s2 + $0x28] sm:$0xff]
  %v1741 = vld [vmem:[%s2 + $0x30] sm:$0xff]
  %v1742 = vld [vmem:[%s2 + $0x38] sm:$0xff]
  %v1743 = vld [vmem:[%s2 + $0x40] sm:$0xff]
  %v1744 = vld [vmem:[%s2 + $0x48] sm:$0xff]
  %v1745 = vld [vmem:[%s2 + $0x50] sm:$0xff]
  %v1746 = vld [vmem:[%s2 + $0x58] sm:$0xff]
  %v1747 = vld [vmem:[%s2 + $0x60] sm:$0xff]
  %v1748 = vld [vmem:[%s2 + $0x68] sm:$0xff]
  %v1749 = vld [vmem:[%s2 + $0x70] sm:$0xff]
  %v1750 = vld [vmem:[%s2 + $0x78] sm:$0xff]
  %1751 = vmatprep.subr.mxu0 0.0
  %1752 = vmatpush1.msra.mxu0 %v1735
  %1753 = vmatprep.subr.mxu0 0.0
  %1754 = vmatpush1.msra.mxu0 %v1736
  %1755 = vmatprep.subr.mxu0 0.0
  %1756 = vmatpush1.msra.mxu0 %v1737
  %1757 = vmatprep.subr.mxu0 0.0
  %1758 = vmatpush1.msra.mxu0 %v1738
  %1759 = vmatprep.subr.mxu0 0.0
  %1760 = vmatpush1.msra.mxu0 %v1739
  %1761 = vmatprep.subr.mxu0 0.0
  %1762 = vmatpush1.msra.mxu0 %v1740
  %1763 = vmatprep.subr.mxu0 0.0
  %1764 = vmatpush1.msra.mxu0 %v1741
  %1765 = vmatprep.subr.mxu0 0.0
  %1766 = vmatpush1.msra.mxu0 %v1742
  %1767 = vmatprep.subr.mxu0 0.0
  %1768 = vmatpush1.msra.mxu0 %v1743
  %1769 = vmatprep.subr.mxu0 0.0
  %1770 = vmatpush1.msra.mxu0 %v1744
  %1771 = vmatprep.subr.mxu0 0.0
  %1772 = vmatpush1.msra.mxu0 %v1745
  %1773 = vmatprep.subr.mxu0 0.0
  %1774 = vmatpush1.msra.mxu0 %v1746
  %1775 = vmatprep.subr.mxu0 0.0
  %1776 = vmatpush1.msra.mxu0 %v1747
  %1777 = vmatprep.subr.mxu0 0.0
  %1778 = vmatpush1.msra.mxu0 %v1748
  %1779 = vmatprep.subr.mxu0 0.0
  %1780 = vmatpush1.msra.mxu0 %v1749
  %1781 = vmatprep.subr.mxu0 0.0
  %1782 = vmatpush1.msra.mxu0 %v1750
  %1783 = vmatprep.subr.mxu0 0.0
  %1784 = vmatpush1.msra.mxu0 0.0
  %1785 = vmatprep.subr.mxu0 0.0
  %1786 = vmatpush1.msra.mxu0 0.0
  %1787 = vmatprep.subr.mxu0 0.0
  %1788 = vmatpush1.msra.mxu0 0.0
  %1789 = vmatprep.subr.mxu0 0.0
  %1790 = vmatpush1.msra.mxu0 0.0
  %1791 = vmatprep.subr.mxu0 0.0
  %1792 = vmatpush1.msra.mxu0 0.0
  %1793 = vmatprep.subr.mxu0 0.0
  %1794 = vmatpush1.msra.mxu0 0.0
  %1795 = vmatprep.subr.mxu0 0.0
  %1796 = vmatpush1.msra.mxu0 0.0
  %1797 = vmatprep.subr.mxu0 0.0
  %1798 = vmatpush1.msra.mxu0 0.0
  %1799 = vmatprep.subr.mxu0 0.0
  %1800 = vmatpush1.msra.mxu0 0.0
  %1801 = vmatprep.subr.mxu0 0.0
  %1802 = vmatpush1.msra.mxu0 0.0
  %1803 = vmatprep.subr.mxu0 0.0
  %1804 = vmatpush1.msra.mxu0 0.0
  %1805 = vmatprep.subr.mxu0 0.0
  %1806 = vmatpush1.msra.mxu0 0.0
  %1807 = vmatprep.subr.mxu0 0.0
  %1808 = vmatpush1.msra.mxu0 0.0
  %1809 = vmatprep.subr.mxu0 0.0
  %1810 = vmatpush1.msra.mxu0 0.0
  %1811 = vmatprep.subr.mxu0 0.0
  %1812 = vmatpush1.msra.mxu0 0.0
  %1813 = vmatprep.subr.mxu0 0.0
  %1814 = vmatpush1.msra.mxu0 0.0
  %1815 = vmatprep.mubr.f32.mxu0 0.0
  %1816 = vmatmul.mubr.f32.gmra.mrb[0].mxu0 %v1728
  %v1817 = vpop.f32.mrb[0].mxu0
  %v1818 = vadd.f32 0.0, %v1817
  %v1819 = vpop.f32.mrb[0].mxu0
  %1820 = vmatprep.mubr.f32.mxu0 0.0
  %1821 = vmatmul.mubr.f32.gmra.mrb[0].mxu0 %v1729
  %v1822 = vpop.f32.mrb[0].mxu0
  %v1823 = vadd.f32 0.0, %v1822
  %v1824 = vpop.f32.mrb[0].mxu0
  %1825 = vdwg.mxu0
  %v1826 = vadd.f32 %v1732, %v1818
  %v1827 = vadd.f32 %v1734, %v1823
  %v1828 = vxor.u32 %v1826, 2147483648
  %v1829 = vxor.u32 %v1827, 2147483648
  %v1830 = vmul.f32 %v1828, 1.442695
  %v1831 = vpow.pop %v1830
  %v1832 = vmul.f32 %v1829, 1.442695
  %v1833 = vpow.pop %v1832
  %v1834 = vadd.f32 %v1831, 1.0
  %v1835 = vadd.f32 %v1833, 1.0
  %v1836 = vrcp.pop %v1834
  %v1837 = vmul.f32 1.0, %v1836
  %v1838 = vrcp.pop %v1835
  %v1839 = vmul.f32 1.0, %v1838
  %v1840 = vmul.f32 %v1728, %v1837
  %v1841 = vmul.f32 %v1729, %v1839
  %v1842 = vadd.f32 %v1731, %v1840
  %v1843 = vadd.f32 %v1733, %v1841
  %s1844 = scalar_lea.vmem %s4, 80
  %1845 = vst [vmem:[%s1844] sm:$0xff] %v1842
  %1846 = vst [vmem:[%s1844 + $0x8] sm:$0xff] %v1843
  %v1847 = vld [vmem:[%s1463] sm:$0xff]
  %v1848 = vld [vmem:[%s1463 + $0x8] sm:$0xff]
  %v1849 = vld [vmem:[%s1657] sm:$0xff]
  %v1850 = vld [vmem:[%s1657 + $0x8] sm:$0xff]
  %s1851 = scalar_lea.vmem %s0, 112
  %v1852 = vld [vmem:[%s1851] sm:$0xff]
  %v1853 = vld [vmem:[%s1851 + $0x8] sm:$0xff]
  %v1854 = vmul.f32 %v1847, %v1842
  %v1855 = vmul.f32 %v1848, %v1843
  %1856 = vadd.xlane.f32.xlu0 %v1854
  %v1857 = vpop.xlane.xlu0 %1856
  %1858 = vadd.xlane.f32.xlu0 %v1855
  %v1859 = vpop.xlane.xlu0 %1858
  %v1860 = vmul.f32 %v1857, 0.17677669
  %v1861 = vmul.f32 %v1859, 0.17677669
  %v1862 = vmul.f32 %v1849, %v1842
  %v1863 = vmul.f32 %v1850, %v1843
  %1864 = vadd.xlane.f32.xlu0 %v1862
  %v1865 = vpop.xlane.xlu0 %1864
  %1866 = vadd.xlane.f32.xlu0 %v1863
  %v1867 = vpop.xlane.xlu0 %1866
  %v1868 = vmul.f32 %v1865, 0.17677669
  %v1869 = vmul.f32 %v1867, 0.17677669
  %v1870 = vmul.f32 %v1852, %v1842
  %v1871 = vmul.f32 %v1853, %v1843
  %1872 = vadd.xlane.f32.xlu0 %v1870
  %v1873 = vpop.xlane.xlu0 %1872
  %1874 = vadd.xlane.f32.xlu0 %v1871
  %v1875 = vpop.xlane.xlu0 %1874
  %v1876 = vmul.f32 %v1873, 0.17677669
  %v1877 = vmul.f32 %v1875, 0.17677669
  %v1878 = vmax.f32 %v1860, %v1868
  %v1879 = vmax.f32 %v1861, %v1869
  %v1880 = vmax.f32 %v1878, %v1876
  %v1881 = vmax.f32 %v1879, %v1877
  %v1882 = vsub.f32 %v1860, %v1880
  %v1883 = vsub.f32 %v1861, %v1881
  %v1884 = vmul.f32 %v1882, 1.442695
  %v1885 = vpow.pop %v1884
  %v1886 = vmul.f32 %v1883, 1.442695
  %v1887 = vpow.pop %v1886
  %v1888 = vsub.f32 %v1868, %v1880
  %v1889 = vsub.f32 %v1869, %v1881
  %v1890 = vmul.f32 %v1888, 1.442695
  %v1891 = vpow.pop %v1890
  %v1892 = vmul.f32 %v1889, 1.442695
  %v1893 = vpow.pop %v1892
  %v1894 = vsub.f32 %v1876, %v1880
  %v1895 = vsub.f32 %v1877, %v1881
  %v1896 = vmul.f32 %v1894, 1.442695
  %v1897 = vpow.pop %v1896
  %v1898 = vmul.f32 %v1895, 1.442695
  %v1899 = vpow.pop %v1898
  %v1900 = vadd.f32 %v1885, %v1891
  %v1901 = vadd.f32 %v1887, %v1893
  %v1902 = vadd.f32 %v1900, %v1897
  %v1903 = vadd.f32 %v1901, %v1899
  %v1904 = vrcp.pop %v1902
  %v1905 = vmul.f32 1.0, %v1904
  %v1906 = vrcp.pop %v1903
  %v1907 = vmul.f32 1.0, %v1906
  %v1908 = vmul.f32 %v1885, %v1905
  %v1909 = vmul.f32 %v1887, %v1907
  %v1910 = vmul.f32 %v1908, %v1847
  %v1911 = vmul.f32 %v1909, %v1848
  %v1912 = vmul.f32 %v1891, %v1905
  %v1913 = vmul.f32 %v1893, %v1907
  %v1914 = vmul.f32 %v1912, %v1849
  %v1915 = vmul.f32 %v1913, %v1850
  %v1916 = vadd.f32 %v1910, %v1914
  %v1917 = vadd.f32 %v1911, %v1915
  %v1918 = vmul.f32 %v1897, %v1905
  %v1919 = vmul.f32 %v1899, %v1907
  %v1920 = vmul.f32 %v1918, %v1852
  %v1921 = vmul.f32 %v1919, %v1853
  %v1922 = vadd.f32 %v1916, %v1920
  %v1923 = vadd.f32 %v1917, %v1921
  %s1924 = scalar_lea.vmem [#allocation3], 192
  %v1925 = vld [vmem:[%s1924] sm:$0xff]
  %v1926 = vld [vmem:[%s1924 + $0x8] sm:$0xff]
  %v1927 = vld [vmem:[%s1924 + $0x10] sm:$0xff]
  %v1928 = vld [vmem:[%s1924 + $0x18] sm:$0xff]
  %v1929 = vld [vmem:[%s2] sm:$0xff]
  %v1930 = vld [vmem:[%s2 + $0x8] sm:$0xff]
  %v1931 = vld [vmem:[%s2 + $0x10] sm:$0xff]
  %v1932 = vld [vmem:[%s2 + $0x18] sm:$0xff]
  %v1933 = vld [vmem:[%s2 + $0x20] sm:$0xff]
  %v1934 = vld [vmem:[%s2 + $0x28] sm:$0xff]
  %v1935 = vld [vmem:[%s2 + $0x30] sm:$0xff]
  %v1936 = vld [vmem:[%s2 + $0x38] sm:$0xff]
  %v1937 = vld [vmem:[%s2 + $0x40] sm:$0xff]
  %v1938 = vld [vmem:[%s2 + $0x48] sm:$0xff]
  %v1939 = vld [vmem:[%s2 + $0x50] sm:$0xff]
  %v1940 = vld [vmem:[%s2 + $0x58] sm:$0xff]
  %v1941 = vld [vmem:[%s2 + $0x60] sm:$0xff]
  %v1942 = vld [vmem:[%s2 + $0x68] sm:$0xff]
  %v1943 = vld [vmem:[%s2 + $0x70] sm:$0xff]
  %v1944 = vld [vmem:[%s2 + $0x78] sm:$0xff]
  %1945 = vmatprep.subr.mxu0 0.0
  %1946 = vmatpush1.msra.mxu0 %v1929
  %1947 = vmatprep.subr.mxu0 0.0
  %1948 = vmatpush1.msra.mxu0 %v1930
  %1949 = vmatprep.subr.mxu0 0.0
  %1950 = vmatpush1.msra.mxu0 %v1931
  %1951 = vmatprep.subr.mxu0 0.0
  %1952 = vmatpush1.msra.mxu0 %v1932
  %1953 = vmatprep.subr.mxu0 0.0
  %1954 = vmatpush1.msra.mxu0 %v1933
  %1955 = vmatprep.subr.mxu0 0.0
  %1956 = vmatpush1.msra.mxu0 %v1934
  %1957 = vmatprep.subr.mxu0 0.0
  %1958 = vmatpush1.msra.mxu0 %v1935
  %1959 = vmatprep.subr.mxu0 0.0
  %1960 = vmatpush1.msra.mxu0 %v1936
  %1961 = vmatprep.subr.mxu0 0.0
  %1962 = vmatpush1.msra.mxu0 %v1937
  %1963 = vmatprep.subr.mxu0 0.0
  %1964 = vmatpush1.msra.mxu0 %v1938
  %1965 = vmatprep.subr.mxu0 0.0
  %1966 = vmatpush1.msra.mxu0 %v1939
  %1967 = vmatprep.subr.mxu0 0.0
  %1968 = vmatpush1.msra.mxu0 %v1940
  %1969 = vmatprep.subr.mxu0 0.0
  %1970 = vmatpush1.msra.mxu0 %v1941
  %1971 = vmatprep.subr.mxu0 0.0
  %1972 = vmatpush1.msra.mxu0 %v1942
  %1973 = vmatprep.subr.mxu0 0.0
  %1974 = vmatpush1.msra.mxu0 %v1943
  %1975 = vmatprep.subr.mxu0 0.0
  %1976 = vmatpush1.msra.mxu0 %v1944
  %1977 = vmatprep.subr.mxu0 0.0
  %1978 = vmatpush1.msra.mxu0 0.0
  %1979 = vmatprep.subr.mxu0 0.0
  %1980 = vmatpush1.msra.mxu0 0.0
  %1981 = vmatprep.subr.mxu0 0.0
  %1982 = vmatpush1.msra.mxu0 0.0
  %1983 = vmatprep.subr.mxu0 0.0
  %1984 = vmatpush1.msra.mxu0 0.0
  %1985 = vmatprep.subr.mxu0 0.0
  %1986 = vmatpush1.msra.mxu0 0.0
  %1987 = vmatprep.subr.mxu0 0.0
  %1988 = vmatpush1.msra.mxu0 0.0
  %1989 = vmatprep.subr.mxu0 0.0
  %1990 = vmatpush1.msra.mxu0 0.0
  %1991 = vmatprep.subr.mxu0 0.0
  %1992 = vmatpush1.msra.mxu0 0.0
  %1993 = vmatprep.subr.mxu0 0.0
  %1994 = vmatpush1.msra.mxu0 0.0
  %1995 = vmatprep.subr.mxu0 0.0
  %1996 = vmatpush1.msra.mxu0 0.0
  %1997 = vmatprep.subr.mxu0 0.0
  %1998 = vmatpush1.msra.mxu0 0.0
  %1999 = vmatprep.subr.mxu0 0.0
  %2000 = vmatpush1.msra.mxu0 0.0
  %2001 = vmatprep.subr.mxu0 0.0
  %2002 = vmatpush1.msra.mxu0 0.0
  %2003 = vmatprep.subr.mxu0 0.0
  %2004 = vmatpush1.msra.mxu0 0.0
  %2005 = vmatprep.subr.mxu0 0.0
  %2006 = vmatpush1.msra.mxu0 0.0
  %2007 = vmatprep.subr.mxu0 0.0
  %2008 = vmatpush1.msra.mxu0 0.0
  %2009 = vmatprep.mubr.f32.mxu0 0.0
  %2010 = vmatmul.mubr.f32.gmra.mrb[0].mxu0 %v1922
  %v2011 = vpop.f32.mrb[0].mxu0
  %v2012 = vadd.f32 0.0, %v2011
  %v2013 = vpop.f32.mrb[0].mxu0
  %2014 = vmatprep.mubr.f32.mxu0 0.0
  %2015 = vmatmul.mubr.f32.gmra.mrb[0].mxu0 %v1923
  %v2016 = vpop.f32.mrb[0].mxu0
  %v2017 = vadd.f32 0.0, %v2016
  %v2018 = vpop.f32.mrb[0].mxu0
  %2019 = vdwg.mxu0
  %v2020 = vadd.f32 %v1926, %v2012
  %v2021 = vadd.f32 %v1928, %v2017
  %v2022 = vxor.u32 %v2020, 2147483648
  %v2023 = vxor.u32 %v2021, 2147483648
  %v2024 = vmul.f32 %v2022, 1.442695
  %v2025 = vpow.pop %v2024
  %v2026 = vmul.f32 %v2023, 1.442695
  %v2027 = vpow.pop %v2026
  %v2028 = vadd.f32 %v2025, 1.0
  %v2029 = vadd.f32 %v2027, 1.0
  %v2030 = vrcp.pop %v2028
  %v2031 = vmul.f32 1.0, %v2030
  %v2032 = vrcp.pop %v2029
  %v2033 = vmul.f32 1.0, %v2032
  %v2034 = vmul.f32 %v1922, %v2031
  %v2035 = vmul.f32 %v1923, %v2033
  %v2036 = vadd.f32 %v1925, %v2034
  %v2037 = vadd.f32 %v1927, %v2035
  %s2038 = scalar_lea.vmem %s4, 96
  %2039 = vst [vmem:[%s2038] sm:$0xff] %v2036
  %2040 = vst [vmem:[%s2038 + $0x8] sm:$0xff] %v2037
  %v2041 = vld [vmem:[%s1657] sm:$0xff]
  %v2042 = vld [vmem:[%s1657 + $0x8] sm:$0xff]
  %v2043 = vld [vmem:[%s1851] sm:$0xff]
  %v2044 = vld [vmem:[%s1851 + $0x8] sm:$0xff]
  %v2045 = vmul.f32 %v2041, %v2036
  %v2046 = vmul.f32 %v2042, %v2037
  %2047 = vadd.xlane.f32.xlu0 %v2045
  %v2048 = vpop.xlane.xlu0 %2047
  %2049 = vadd.xlane.f32.xlu0 %v2046
  %v2050 = vpop.xlane.xlu0 %2049
  %v2051 = vmul.f32 %v2048, 0.17677669
  %v2052 = vmul.f32 %v2050, 0.17677669
  %v2053 = vmul.f32 %v2043, %v2036
  %v2054 = vmul.f32 %v2044, %v2037
  %2055 = vadd.xlane.f32.xlu0 %v2053
  %v2056 = vpop.xlane.xlu0 %2055
  %2057 = vadd.xlane.f32.xlu0 %v2054
  %v2058 = vpop.xlane.xlu0 %2057
  %v2059 = vmul.f32 %v2056, 0.17677669
  %v2060 = vmul.f32 %v2058, 0.17677669
  %v2061 = vmul.f32 %v2036, 0.0
  %v2062 = vmul.f32 %v2037, 0.0
  %2063 = vadd.xlane.f32.xlu0 %v2061
  %v2064 = vpop.xlane.xlu0 %2063
  %2065 = vadd.xlane.f32.xlu0 %v2062
  %v2066 = vpop.xlane.xlu0 %2065
  %v2067 = vmul.f32 %v2064, 0.17677669
  %v2068 = vmul.f32 %v2066, 0.17677669
  %v2069 = vmax.f32 %v2051, %v2059
  %v2070 = vmax.f32 %v2052, %v2060
  %v2071 = vmax.f32 %v2069, %v2067
  %v2072 = vmax.f32 %v2070, %v2068
  %v2073 = vsub.f32 %v2051, %v2071
  %v2074 = vsub.f32 %v2052, %v2072
  %v2075 = vmul.f32 %v2073, 1.442695
  %v2076 = vpow.pop %v2075
  %v2077 = vmul.f32 %v2074, 1.442695
  %v2078 = vpow.pop %v2077
  %v2079 = vsub.f32 %v2059, %v2071
  %v2080 = vsub.f32 %v2060, %v2072
  %v2081 = vmul.f32 %v2079, 1.442695
  %v2082 = vpow.pop %v2081
  %v2083 = vmul.f32 %v2080, 1.442695
  %v2084 = vpow.pop %v2083
  %v2085 = vsub.f32 %v2067, %v2071
  %v2086 = vsub.f32 %v2068, %v2072
  %v2087 = vmul.f32 %v2085, 1.442695
  %v2088 = vpow.pop %v2087
  %v2089 = vmul.f32 %v2086, 1.442695
  %v2090 = vpow.pop %v2089
  %v2091 = vadd.f32 %v2076, %v2082
  %v2092 = vadd.f32 %v2078, %v2084
  %v2093 = vadd.f32 %v2091, %v2088
  %v2094 = vadd.f32 %v2092, %v2090
  %v2095 = vrcp.pop %v2093
  %v2096 = vmul.f32 1.0, %v2095
  %v2097 = vrcp.pop %v2094
  %v2098 = vmul.f32 1.0, %v2097
  %v2099 = vmul.f32 %v2076, %v2096
  %v2100 = vmul.f32 %v2078, %v2098
  %v2101 = vmul.f32 %v2099, %v2041
  %v2102 = vmul.f32 %v2100, %v2042
  %v2103 = vmul.f32 %v2082, %v2096
  %v2104 = vmul.f32 %v2084, %v2098
  %v2105 = vmul.f32 %v2103, %v2043
  %v2106 = vmul.f32 %v2104, %v2044
  %v2107 = vadd.f32 %v2101, %v2105
  %v2108 = vadd.f32 %v2102, %v2106
  %v2109 = vmul.f32 %v2088, %v2096
  %v2110 = vmul.f32 %v2090, %v2098
  %v2111 = vmul.f32 %v2109, 0.0
  %v2112 = vmul.f32 %v2110, 0.0
  %v2113 = vadd.f32 %v2107, %v2111
  %v2114 = vadd.f32 %v2108, %v2112
  %s2115 = scalar_lea.vmem [#allocation3], 224
  %v2116 = vld [vmem:[%s2115] sm:$0xff]
  %v2117 = vld [vmem:[%s2115 + $0x8] sm:$0xff]
  %v2118 = vld [vmem:[%s2115 + $0x10] sm:$0xff]
  %v2119 = vld [vmem:[%s2115 + $0x18] sm:$0xff]
  %v2120 = vld [vmem:[%s2] sm:$0xff]
  %v2121 = vld [vmem:[%s2 + $0x8] sm:$0xff]
  %v2122 = vld [vmem:[%s2 + $0x10] sm:$0xff]
  %v2123 = vld [vmem:[%s2 + $0x18] sm:$0xff]
  %v2124 = vld [vmem:[%s2 + $0x20] sm:$0xff]
  %v2125 = vld [vmem:[%s2 + $0x28] sm:$0xff]
  %v2126 = vld [vmem:[%s2 + $0x30] sm:$0xff]
  %v2127 = vld [vmem:[%s2 + $0x38] sm:$0xff]
  %v2128 = vld [vmem:[%s2 + $0x40] sm:$0xff]
  %v2129 = vld [vmem:[%s2 + $0x48] sm:$0xff]
  %v2130 = vld [vmem:[%s2 + $0x50] sm:$0xff]
  %v2131 = vld [vmem:[%s2 + $0x58] sm:$0xff]
  %v2132 = vld [vmem:[%s2 + $0x60] sm:$0xff]
  %v2133 = vld [vmem:[%s2 + $0x68] sm:$0xff]
  %v2134 = vld [vmem:[%s2 + $0x70] sm:$0xff]
  %v2135 = vld [vmem:[%s2 + $0x78] sm:$0xff]
  %2136 = vmatprep.subr.mxu0 0.0
  %2137 = vmatpush1.msra.mxu0 %v2120
  %2138 = vmatprep.subr.mxu0 0.0
  %2139 = vmatpush1.msra.mxu0 %v2121
  %2140 = vmatprep.subr.mxu0 0.0
  %2141 = vmatpush1.msra.mxu0 %v2122
  %2142 = vmatprep.subr.mxu0 0.0
  %2143 = vmatpush1.msra.mxu0 %v2123
  %2144 = vmatprep.subr.mxu0 0.0
  %2145 = vmatpush1.msra.mxu0 %v2124
  %2146 = vmatprep.subr.mxu0 0.0
  %2147 = vmatpush1.msra.mxu0 %v2125
  %2148 = vmatprep.subr.mxu0 0.0
  %2149 = vmatpush1.msra.mxu0 %v2126
  %2150 = vmatprep.subr.mxu0 0.0
  %2151 = vmatpush1.msra.mxu0 %v2127
  %2152 = vmatprep.subr.mxu0 0.0
  %2153 = vmatpush1.msra.mxu0 %v2128
  %2154 = vmatprep.subr.mxu0 0.0
  %2155 = vmatpush1.msra.mxu0 %v2129
  %2156 = vmatprep.subr.mxu0 0.0
  %2157 = vmatpush1.msra.mxu0 %v2130
  %2158 = vmatprep.subr.mxu0 0.0
  %2159 = vmatpush1.msra.mxu0 %v2131
  %2160 = vmatprep.subr.mxu0 0.0
  %2161 = vmatpush1.msra.mxu0 %v2132
  %2162 = vmatprep.subr.mxu0 0.0
  %2163 = vmatpush1.msra.mxu0 %v2133
  %2164 = vmatprep.subr.mxu0 0.0
  %2165 = vmatpush1.msra.mxu0 %v2134
  %2166 = vmatprep.subr.mxu0 0.0
  %2167 = vmatpush1.msra.mxu0 %v2135
  %2168 = vmatprep.subr.mxu0 0.0
  %2169 = vmatpush1.msra.mxu0 0.0
  %2170 = vmatprep.subr.mxu0 0.0
  %2171 = vmatpush1.msra.mxu0 0.0
  %2172 = vmatprep.subr.mxu0 0.0
  %2173 = vmatpush1.msra.mxu0 0.0
  %2174 = vmatprep.subr.mxu0 0.0
  %2175 = vmatpush1.msra.mxu0 0.0
  %2176 = vmatprep.subr.mxu0 0.0
  %2177 = vmatpush1.msra.mxu0 0.0
  %2178 = vmatprep.subr.mxu0 0.0
  %2179 = vmatpush1.msra.mxu0 0.0
  %2180 = vmatprep.subr.mxu0 0.0
  %2181 = vmatpush1.msra.mxu0 0.0
  %2182 = vmatprep.subr.mxu0 0.0
  %2183 = vmatpush1.msra.mxu0 0.0
  %2184 = vmatprep.subr.mxu0 0.0
  %2185 = vmatpush1.msra.mxu0 0.0
  %2186 = vmatprep.subr.mxu0 0.0
  %2187 = vmatpush1.msra.mxu0 0.0
  %2188 = vmatprep.subr.mxu0 0.0
  %2189 = vmatpush1.msra.mxu0 0.0
  %2190 = vmatprep.subr.mxu0 0.0
  %2191 = vmatpush1.msra.mxu0 0.0
  %2192 = vmatprep.subr.mxu0 0.0
  %2193 = vmatpush1.msra.mxu0 0.0
  %2194 = vmatprep.subr.mxu0 0.0
  %2195 = vmatpush1.msra.mxu0 0.0
  %2196 = vmatprep.subr.mxu0 0.0
  %2197 = vmatpush1.msra.mxu0 0.0
  %2198 = vmatprep.subr.mxu0 0.0
  %2199 = vmatpush1.msra.mxu0 0.0
  %2200 = vmatprep.mubr.f32.mxu0 0.0
  %2201 = vmatmul.mubr.f32.gmra.mrb[0].mxu0 %v2113
  %v2202 = vpop.f32.mrb[0].mxu0
  %v2203 = vadd.f32 0.0, %v2202
  %v2204 = vpop.f32.mrb[0].mxu0
  %2205 = vmatprep.mubr.f32.mxu0 0.0
  %2206 = vmatmul.mubr.f32.gmra.mrb[0].mxu0 %v2114
  %v2207 = vpop.f32.mrb[0].mxu0
  %v2208 = vadd.f32 0.0, %v2207
  %v2209 = vpop.f32.mrb[0].mxu0
  %2210 = vdwg.mxu0
  %v2211 = vadd.f32 %v2117, %v2203
  %v2212 = vadd.f32 %v2119, %v2208
  %v2213 = vxor.u32 %v2211, 2147483648
  %v2214 = vxor.u32 %v2212, 2147483648
  %v2215 = vmul.f32 %v2213, 1.442695
  %v2216 = vpow.pop %v2215
  %v2217 = vmul.f32 %v2214, 1.442695
  %v2218 = vpow.pop %v2217
  %v2219 = vadd.f32 %v2216, 1.0
  %v2220 = vadd.f32 %v2218, 1.0
  %v2221 = vrcp.pop %v2219
  %v2222 = vmul.f32 1.0, %v2221
  %v2223 = vrcp.pop %v2220
  %v2224 = vmul.f32 1.0, %v2223
  %v2225 = vmul.f32 %v2113, %v2222
  %v2226 = vmul.f32 %v2114, %v2224
  %v2227 = vadd.f32 %v2116, %v2225
  %v2228 = vadd.f32 %v2118, %v2226
  %s2229 = scalar_lea.vmem %s4, 112
  %2230 = vst [vmem:[%s2229] sm:$0xff] %v2227
  %2231 = vst [vmem:[%s2229 + $0x8] sm:$0xff] %v2228
  // Predicated region
  $region18: #{bimru_forward.1} parent=0 // pred_check
    _
  $region19: #{bimru_forward.1} parent=0 // pred_check_branch
    %2233 = sbr.rel (0) target = $region21
  $region20: #{bimru_forward.1} parent=0 // pred_region
    _
  $region21: #{bimru_forward.1} parent=0 // pred_fallthru
    _
  // Predicated region
  $region22: #{bimru_forward.1} parent=0 // pred_check
    _
  $region23: #{bimru_forward.1} parent=0 // pred_check_branch
    %2235 = sbr.rel (0) target = $region25
  $region24: #{bimru_forward.1} parent=0 // pred_region
    _
  $region25: #{bimru_forward.1} parent=0 // pred_fallthru
    _

</llo_original>
